<compile_context>
chip_gen: v7x
topology: tpu7x:2x2x1
jax: 0.10.0
libtpu: 0.0.40
codegen_flags: <defaults>
</compile_context>

<pallas_src>
import functools

import jax
import jax.numpy as jnp
from jax.experimental import pallas as pl
from jax.experimental.pallas import tpu as pltpu

NUM_CLASSES = 62
NUM_CLASSES_PAD = 128    # lane-dense classifier output (sliced back to 62)
FEAT_DIM = 1024          # densenet121 feature channels
PATCH = 8                # stand-in encoder patch size
LANE = 128
SUBLANE = 8
TM_TARGET = 256          # MXU M-fill on v6e/v7x (128 already fills v5e's MXU)


def _round_up(x, m):
    return ((x + m - 1) // m) * m


def _pick_tile(p):
    """Row tile for the flattened patch matmul (always a multiple of 8)."""
    if p >= TM_TARGET:
        return TM_TARGET
    return _round_up(p, SUBLANE)


def _enc_pool_kernel(patches_ref, we_ref, be_ref, out_ref):
    """Encoder stand-in projection + ReLU + spatial-sum accumulation.

    grid = (B, NPT); axis 1 is the spatial (patch) reduction axis.

    patches_ref : (TM, Kpad)   bf16 streamed patch tile
    we_ref      : (Kpad, C)    bf16 resident encoder weight
    be_ref      : (1, C)       f32  resident encoder bias
    out_ref     : (1, 8, C)    f32  resident per-image partial spatial sums
                               (8 sublane partial sums, reduced later)
    """
    p_idx = pl.program_id(1)

    @pl.when(p_idx == 0)
    def _init():
        out_ref[...] = jnp.zeros_like(out_ref)

    # encoder stand-in: per-patch projection to 1024 channels (MXU, f32 acc)
    feats = jnp.dot(patches_ref[...], we_ref[...],
                    preferred_element_type=jnp.float32)          # (TM, C)

    # forward(): F.relu(features)  (VPU work, hides under the MXU)
    feats = jnp.maximum(feats + be_ref[...], 0.0)

    # full-width VPU accumulate: fold TM rows into 8 sublane partial sums
    tm, c = feats.shape
    partial = feats.reshape(tm // SUBLANE, SUBLANE, c).sum(axis=0)  # (8, C)
    out_ref[...] += partial[None]


def _classifier_kernel(inv_p, n_pad, part_ref, be_ref, wc_ref, bc_ref, out_ref):
    """Global-avg-pool finalize + nn.Linear(1024, 62) for the whole batch.

    part_ref : (Bp, 8, C)  f32 per-image sublane partial spatial sums
    be_ref   : (1, C)      f32 encoder bias (padded-row correction)
    wc_ref   : (C, 128)    f32 classifier weight (padded 62 -> 128 lanes)
    bc_ref   : (1, 128)    f32 classifier bias
    out_ref  : (Bp, 128)   f32 logits
    """
    # single cross-sublane reduce of the 8 partial-sum rows
    pooled = jnp.sum(part_ref[...], axis=1)                      # (Bp, C)
    if n_pad:
        # Padded patch rows are all-zero inputs; each contributed exactly
        # relu(be) to the spatial sum.  Remove that known constant so the
        # mean is over the true P patches only.
        pooled = pooled - n_pad * jnp.maximum(be_ref[...], 0.0)
    pooled = pooled * inv_p                                       # true mean

    # self.classifier = nn.Linear(1024, 62), f32 like PyTorch
    out_ref[...] = jnp.dot(pooled, wc_ref[...],
                           preferred_element_type=jnp.float32) + bc_ref[...]


def init_params(key):
    """Deterministic synthetic parameters (shapes follow Model.__init__)."""
    k_we, k_be, k_wc, k_bc = jax.random.split(key, 4)
    k_in = 3 * PATCH * PATCH
    we = jax.random.normal(k_we, (k_in, FEAT_DIM), jnp.float32) * (1.0 / k_in ** 0.5)
    be = jax.random.normal(k_be, (FEAT_DIM,), jnp.float32) * 0.1
    # nn.Linear(1024, NUM_CLASSES): weight [62, 1024], bias [62]; stored
    # transposed so the kernel can do pooled @ wc directly.
    wc = jax.random.normal(k_wc, (FEAT_DIM, NUM_CLASSES), jnp.float32) * (1.0 / FEAT_DIM ** 0.5)
    bc = jax.random.normal(k_bc, (NUM_CLASSES,), jnp.float32) * 0.01
    return we, be, wc, bc


def fmow_forward(x, params):
    """x: [B, 3, H, W] float32 (NCHW, like the PyTorch module). Returns [B, 62] f32."""
    we, be, wc, bc = params
    B, C_in, H, W = x.shape
    assert H % PATCH == 0 and W % PATCH == 0
    ph, pw = H // PATCH, W // PATCH
    P = ph * pw
    K = C_in * PATCH * PATCH
    assert we.shape == (K, FEAT_DIM)

    kpad = _round_up(K, LANE)
    TM = _pick_tile(P)
    P_pad = _round_up(P, TM)
    NPT = P_pad // TM
    n_pad = P_pad - P

    # ---- glue (plain JAX, fused by XLA under jit): patchify NCHW, pad, cast ----
    xp = x.reshape(B, C_in, ph, PATCH, pw, PATCH)
    xp = xp.transpose(0, 2, 4, 1, 3, 5).reshape(B, P, K)
    xp = jnp.pad(xp, ((0, 0), (0, n_pad), (0, kpad - K)))
    xp = xp.reshape(B * P_pad, kpad).astype(jnp.bfloat16)

    we_p = jnp.pad(we, ((0, kpad - K), (0, 0))).astype(jnp.bfloat16)
    be_p = be.reshape(1, FEAT_DIM).astype(jnp.float32)

    # ---- kernel 1: encoder projection + relu + spatial-sum over patches ----
    part = pl.pallas_call(
        _enc_pool_kernel,
        out_shape=jax.ShapeDtypeStruct((B, SUBLANE, FEAT_DIM), jnp.float32),
        grid=(B, NPT),
        in_specs=[
            # streamed patch tile: rows [(b*NPT+p)*TM, ...) of (B*P_pad, kpad)
            pl.BlockSpec((TM, kpad), lambda b, p: (b * NPT + p, 0)),
            # weights/bias: constant index_map -> VMEM-resident across steps
            pl.BlockSpec((kpad, FEAT_DIM), lambda b, p: (0, 0)),
            pl.BlockSpec((1, FEAT_DIM), lambda b, p: (0, 0)),
        ],
        out_specs=pl.BlockSpec((1, SUBLANE, FEAT_DIM), lambda b, p: (b, 0, 0)),
        compiler_params=pltpu.CompilerParams(
            dimension_semantics=("parallel", "arbitrary")),
    )(xp, we_p, be_p)

    # ---- kernel 2: pool finalize + classifier (whole batch, one f32 matmul) ----
    B_pad = _round_up(B, SUBLANE)
    part_p = jnp.pad(part, ((0, B_pad - B), (0, 0), (0, 0)))
    wc_p = jnp.pad(wc, ((0, 0), (0, NUM_CLASSES_PAD - NUM_CLASSES))).astype(jnp.float32)
    bc_p = jnp.pad(bc.reshape(1, NUM_CLASSES),
                   ((0, 0), (0, NUM_CLASSES_PAD - NUM_CLASSES))).astype(jnp.float32)

    logits = pl.pallas_call(
        functools.partial(_classifier_kernel, 1.0 / P, n_pad),
        out_shape=jax.ShapeDtypeStruct((B_pad, NUM_CLASSES_PAD), jnp.float32),
    )(part_p, be_p, wc_p, bc_p)

    return logits[:B, :NUM_CLASSES]


if __name__ == "__main__":
    key = jax.random.PRNGKey(0)
    k_x, k_p = jax.random.split(key)

    # Small-but-representative input: P = (160/8)^2 = 400 patches/image ->
    # TM = 256, P_pad = 512, 2 grid steps per image.  Exercises multi-step
    # accumulation, the padded-row correction, and classifier batch padding.
    B, C_in, H, W = 2, 3, 160, 160
    x = jax.random.normal(k_x, (B, C_in, H, W), jnp.float32)
    params = init_params(k_p)

    fwd = jax.jit(fmow_forward)
    out = jax.block_until_ready(fwd(x, params))
    assert out.shape == (B, NUM_CLASSES) and out.dtype == jnp.float32

    # pure-JAX reference with matching bf16 rounding on the encoder matmul
    we, be, wc, bc = params
    ph, pw = H // PATCH, W // PATCH
    P = ph * pw
    K = C_in * PATCH * PATCH
    xp = x.reshape(B, C_in, ph, PATCH, pw, PATCH).transpose(0, 2, 4, 1, 3, 5)
    xp = xp.reshape(B, P, K)
    xq = xp.astype(jnp.bfloat16).astype(jnp.float32)
    weq = we.astype(jnp.bfloat16).astype(jnp.float32)
    feats = jnp.maximum(jnp.einsum("bpk,kc->bpc", xq, weq) + be, 0.0)
    pooled = jnp.mean(feats, axis=1)
    ref = pooled @ wc + bc

    err = float(jnp.max(jnp.abs(out - ref)))
    assert jnp.allclose(out, ref, atol=2e-3, rtol=2e-3), f"max abs err {err}"

    print("KERNEL_OK")
</pallas_src>

<mosaic_0001>
module attributes {stable_mosaic.version = 11 : i64} {
  func.func @_enc_pool_kernel(%arg0: i32, %arg1: i32, %arg2: memref<256x256xbf16, #tpu.memory_space<vmem>>, %arg3: memref<256x1024xbf16, #tpu.memory_space<vmem>>, %arg4: memref<1x1024xf32, #tpu.memory_space<vmem>>, %arg5: memref<1x8x1024xf32, #tpu.memory_space<vmem>>) attributes {dimension_semantics = [#tpu.dimension_semantics<parallel>, #tpu.dimension_semantics<arbitrary>], iteration_bounds = array<i64: 2, 2>, scalar_prefetch = 0 : i64, scratch_operands = 0 : i64, tpu.core_type = #tpu.core_type<tc>, window_params = [{transform_indices = @transform_0, window_bounds = array<i64: 256, 256>}, {pipeline_mode = #tpu.pipeline_mode<synchronous>, transform_indices = @transform_1, window_bounds = array<i64: 256, 1024>}, {pipeline_mode = #tpu.pipeline_mode<synchronous>, transform_indices = @transform_2, window_bounds = array<i64: 1, 1024>}, {transform_indices = @transform_3, window_bounds = array<i64: 1, 8, 1024>}]} {
    %c0_i32 = arith.constant 0 : i32
    %0 = arith.cmpi eq, %arg1, %c0_i32 : i32
    %1 = arith.extui %0 : i1 to i32
    %c0_i32_0 = arith.constant 0 : i32
    %2 = arith.cmpi ne, %1, %c0_i32_0 : i32
    scf.if %2 {
      %cst_14 = arith.constant 0.000000e+00 : f32
      %17 = vector.broadcast %cst_14 : f32 to vector<1x8x1024xf32>
      %c0_15 = arith.constant 0 : index
      %c0_16 = arith.constant 0 : index
      %c0_17 = arith.constant 0 : index
      %18 = vector.load %arg5[%c0_15, %c0_16, %c0_17] : memref<1x8x1024xf32, #tpu.memory_space<vmem>>, vector<1x8x1024xf32>
      tpu.vector_store %arg5[%c0_15, %c0_16, %c0_17], %17 {strides = array<i32>} : memref<1x8x1024xf32, #tpu.memory_space<vmem>>, vector<1x8x1024xf32>,
    } else {
    }
    %c0 = arith.constant 0 : index
    %c0_1 = arith.constant 0 : index
    %3 = vector.load %arg2[%c0, %c0_1] : memref<256x256xbf16, #tpu.memory_space<vmem>>, vector<256x256xbf16>
    %c0_2 = arith.constant 0 : index
    %c0_3 = arith.constant 0 : index
    %4 = vector.load %arg3[%c0_2, %c0_3] : memref<256x1024xbf16, #tpu.memory_space<vmem>>, vector<256x1024xbf16>
    %cst = arith.constant dense<0.000000e+00> : vector<256x1024xf32>
    %5 = tpu.matmul %3, %4, %cst {dimension_numbers = #tpu.dot_dimension_numbers<[1], [0], [0], [1], [0, 0, 1, 1], [], []>} : vector<256x256xbf16>, vector<256x1024xbf16>, vector<256x1024xf32> -> vector<256x1024xf32>
    %c0_4 = arith.constant 0 : index
    %c0_5 = arith.constant 0 : index
    %6 = vector.load %arg4[%c0_4, %c0_5] : memref<1x1024xf32, #tpu.memory_space<vmem>>, vector<1x1024xf32>
    %7 = vector.broadcast %6 : vector<1x1024xf32> to vector<256x1024xf32>
    %8 = arith.addf %5, %7 : vector<256x1024xf32>
    %cst_6 = arith.constant 0.000000e+00 : f32
    %9 = vector.broadcast %cst_6 : f32 to vector<256x1024xf32>
    %10 = arith.maximumf %8, %9 : vector<256x1024xf32>
    %11 = vector.shape_cast %10 : vector<256x1024xf32> to vector<32x8x1024xf32>
    %cst_7 = arith.constant dense<0.000000e+00> : vector<8x1024xf32>
    %12 = vector.multi_reduction <add>, %11, %cst_7 [0] : vector<32x8x1024xf32> to vector<8x1024xf32>
    %c0_8 = arith.constant 0 : index
    %c0_9 = arith.constant 0 : index
    %c0_10 = arith.constant 0 : index
    %13 = vector.load %arg5[%c0_8, %c0_9, %c0_10] : memref<1x8x1024xf32, #tpu.memory_space<vmem>>, vector<1x8x1024xf32>
    %14 = vector.shape_cast %12 : vector<8x1024xf32> to vector<1x8x1024xf32>
    %15 = arith.addf %13, %14 : vector<1x8x1024xf32>
    %c0_11 = arith.constant 0 : index
    %c0_12 = arith.constant 0 : index
    %c0_13 = arith.constant 0 : index
    %16 = vector.load %arg5[%c0_11, %c0_12, %c0_13] : memref<1x8x1024xf32, #tpu.memory_space<vmem>>, vector<1x8x1024xf32>
    tpu.vector_store %arg5[%c0_11, %c0_12, %c0_13], %15 {strides = array<i32>} : memref<1x8x1024xf32, #tpu.memory_space<vmem>>, vector<1x8x1024xf32>,
    return
  }
  func.func @transform_0(%arg0: i32, %arg1: i32) -> (i32, i32) {
    %c2_i32 = arith.constant 2 : i32
    %0 = arith.muli %arg0, %c2_i32 : i32
    %1 = arith.addi %0, %arg1 : i32
    %c0_i32 = arith.constant 0 : i32
    %c0_i32_0 = arith.constant 0 : i32
    return %1, %c0_i32 : i32, i32
  }
  func.func @transform_1(%arg0: i32, %arg1: i32) -> (i32, i32) {
    %c0_i32 = arith.constant 0 : i32
    %c0_i32_0 = arith.constant 0 : i32
    %c0_i32_1 = arith.constant 0 : i32
    return %c0_i32, %c0_i32_0 : i32, i32
  }
  func.func @transform_2(%arg0: i32, %arg1: i32) -> (i32, i32) {
    %c0_i32 = arith.constant 0 : i32
    %c0_i32_0 = arith.constant 0 : i32
    %c0_i32_1 = arith.constant 0 : i32
    return %c0_i32, %c0_i32_0 : i32, i32
  }
  func.func @transform_3(%arg0: i32, %arg1: i32) -> (i32, i32, i32) {
    %c0_i32 = arith.constant 0 : i32
    %c0_i32_0 = arith.constant 0 : i32
    %c0_i32_1 = arith.constant 0 : i32
    return %arg0, %c0_i32, %c0_i32_0 : i32, i32, i32
  }
}

module attributes {stable_mosaic.version = 11 : i64} {
  func.func @_classifier_kernel(%arg0: memref<8x8x1024xf32, #tpu.memory_space<vmem>>, %arg1: memref<1x1024xf32, #tpu.memory_space<vmem>>, %arg2: memref<1024x128xf32, #tpu.memory_space<vmem>>, %arg3: memref<1x128xf32, #tpu.memory_space<vmem>>, %arg4: memref<8x128xf32, #tpu.memory_space<vmem>>) attributes {dimension_semantics = [], scalar_prefetch = 0 : i64, scratch_operands = 0 : i64, tpu.core_type = #tpu.core_type<tc>} {
    %c0 = arith.constant 0 : index
    %c0_0 = arith.constant 0 : index
    %c0_1 = arith.constant 0 : index
    %0 = vector.load %arg0[%c0, %c0_0, %c0_1] : memref<8x8x1024xf32, #tpu.memory_space<vmem>>, vector<8x8x1024xf32>
    %cst = arith.constant dense<0.000000e+00> : vector<8x1024xf32>
    %1 = vector.multi_reduction <add>, %0, %cst [1] : vector<8x8x1024xf32> to vector<8x1024xf32>
    %c0_2 = arith.constant 0 : index
    %c0_3 = arith.constant 0 : index
    %2 = vector.load %arg1[%c0_2, %c0_3] : memref<1x1024xf32, #tpu.memory_space<vmem>>, vector<1x1024xf32>
    %cst_4 = arith.constant 0.000000e+00 : f32
    %3 = vector.broadcast %cst_4 : f32 to vector<1x1024xf32>
    %4 = arith.maximumf %2, %3 : vector<1x1024xf32>
    %cst_5 = arith.constant 1.120000e+02 : f32
    %5 = vector.broadcast %cst_5 : f32 to vector<1x1024xf32>
    %6 = arith.mulf %5, %4 : vector<1x1024xf32>
    %7 = vector.broadcast %6 : vector<1x1024xf32> to vector<8x1024xf32>
    %8 = arith.subf %1, %7 : vector<8x1024xf32>
    %cst_6 = arith.constant 2.500000e-03 : f32
    %9 = vector.broadcast %cst_6 : f32 to vector<8x1024xf32>
    %10 = arith.mulf %8, %9 : vector<8x1024xf32>
    %c0_7 = arith.constant 0 : index
    %c0_8 = arith.constant 0 : index
    %11 = vector.load %arg2[%c0_7, %c0_8] : memref<1024x128xf32, #tpu.memory_space<vmem>>, vector<1024x128xf32>
    %cst_9 = arith.constant dense<0.000000e+00> : vector<8x128xf32>
    %12 = tpu.matmul %10, %11, %cst_9 {dimension_numbers = #tpu.dot_dimension_numbers<[1], [0], [0], [1], [0, 0, 1, 1], [], []>} : vector<8x1024xf32>, vector<1024x128xf32>, vector<8x128xf32> -> vector<8x128xf32>
    %c0_10 = arith.constant 0 : index
    %c0_11 = arith.constant 0 : index
    %13 = vector.load %arg3[%c0_10, %c0_11] : memref<1x128xf32, #tpu.memory_space<vmem>>, vector<1x128xf32>
    %14 = vector.broadcast %13 : vector<1x128xf32> to vector<8x128xf32>
    %15 = arith.addf %12, %14 : vector<8x128xf32>
    %c0_12 = arith.constant 0 : index
    %c0_13 = arith.constant 0 : index
    %16 = vector.load %arg4[%c0_12, %c0_13] : memref<8x128xf32, #tpu.memory_space<vmem>>, vector<8x128xf32>
    tpu.vector_store %arg4[%c0_12, %c0_13], %15 {strides = array<i32>} : memref<8x128xf32, #tpu.memory_space<vmem>>, vector<8x128xf32>,
    return
  }
}

</mosaic_0001>

<llo_original>
// kernel: fmow_forward.2
$region0: #{fmow_forward.2}
  #allocation0 [shape = 'u32[]', space=smem, size = 0x4, offset = 0x4, fixed_abs, tag = 'smem constant byte address 0x4 - core index']
  #allocation1 [shape = 'u32[144,128]{1,0:T(1,128)}', space=vmem, size = 0x12000, scoped, tag = 'internal scratch']
  %s0 = inlined_call_operand.vmem [shape: bf16[1024,256], index: 0, kind: input, shape index: {}]
  %s1 = inlined_call_operand.vmem [shape: bf16[256,1024], index: 1, kind: input, shape index: {}]
  %s2 = inlined_call_operand.vmem [shape: f32[1,1024], index: 2, kind: input, shape index: {}]
  %s3 = inlined_call_operand.vmem [shape: f32[2,8,1024], index: 3, kind: output, shape index: {}]
  %s4 = sld [smem:[#allocation0]]
  $region49: #{fmow_forward.2} parent=0
    _
  %s6 = ssub.s32 1, %s4
  %s7 = scalar_select 0, %s6, %s4
  loop: start=0, step=1, limit=6
  $region2: #{fmow_forward.2} parent=0 // loop_pre_header
    _
  $region3: #{fmow_forward.2} parent=0 // loop_header
    %s9 = sphi 0, %s13
    %p10 = scmp.ge.s32.totalorder %s9, 6
    %s16 = sphi 0, %s28
    %s17 = sphi 0, %s24
    %s18 = sphi 0, %s16
    %s19 = sphi 0, %s17
    %s20 = sphi 0, %s18
    %s21 = sphi 0, %s19
    %s35 = sphi 0, %s37
    %s38 = sphi 0, %s35
    %s39 = sphi 0, %s38
    %s55 = sphi 0, %s39
    %s59 = sphi 0, %s59
    %s61 = sphi 0, %s59
    %s62 = sphi 0, %s61
    %s76 = sphi 0, %s62
    %s80 = sphi 0, %s80
    %s82 = sphi 0, %s80
    %s83 = sphi 0, %s82
    %s97 = sphi 0, %s83
    %s103 = sphi 0, %s105
    %s106 = sphi 0, %s103
    %s107 = sphi 0, %s106
    %s123 = sphi 0, %s107
  $region4: #{fmow_forward.2} parent=0 // loop_header_branch
    %12 = sbr.rel (%p10) target = $region8
  $region5: #{fmow_forward.2} parent=0 // loop_body
    %s14 = ssub.s32 %s9, 1
    %s15 = ssub.s32 %s9, 2
    %s22 = sadd.s32 1, %s17
    %p23 = scmp.ge.s32.totalorder %s22, 2
    %s24 = scalar_select %p23, 0, %s22
    %s25 = sadd.s32 1, %s16
    %s26 = scalar_select %p23, %s25, %s16
    %p27 = scmp.ge.s32.totalorder %s26, 2
    %s28 = scalar_select %p27, 0, %s26
    %s29 = smul.u32 %s16, 2
    %s30 = sadd.s32 %s29, %s17
    %s31 = smul.u32 %s28, 2
    %s32 = sadd.s32 %s31, %s24
    %s33 = ssub.s32 %s30, %s32
    %p34 = scmp.eq.s32.totalorder %s33, 0
    %s36 = sadd.s32 %s35, 1
    %s37 = scalar_select %p34, %s35, %s36
    %p40 = pneg %p34
    %p41 = scmp.eq.s32.totalorder %s9, 3
    %p42 = por %p40, %p41
    %p43 = scmp.ne.s32.totalorder %s35, %s38
    %p44 = scmp.eq.s32.totalorder %s9, 0
    %p45 = por %p43, %p44
    %p46 = scmp.ne.s32.totalorder %s35, %s38
    %p47 = scmp.eq.s32.totalorder %s14, 3
    %p48 = por %p46, %p47
    %p49 = scmp.ne.s32.totalorder %s38, %s39
    %p50 = scmp.eq.s32.totalorder %s14, 0
    %p51 = por %p49, %p50
    %p52 = scmp.ne.s32.totalorder %s38, %s39
    %p53 = scmp.eq.s32.totalorder %s15, 3
    %p54 = por %p52, %p53
    %p56 = scmp.ne.s32.totalorder %s39, %s55
    %p57 = scmp.eq.s32.totalorder %s15, 0
    %p58 = por %p56, %p57
    %s60 = sadd.s32 %s59, 1
    %p63 = scmp.eq.s32.totalorder %s9, 3
    %p64 = scmp.ne.s32.totalorder %s59, %s61
    %p65 = scmp.eq.s32.totalorder %s9, 0
    %p66 = por %p64, %p65
    %p67 = scmp.ne.s32.totalorder %s59, %s61
    %p68 = scmp.eq.s32.totalorder %s14, 3
    %p69 = por %p67, %p68
    %p70 = scmp.ne.s32.totalorder %s61, %s62
    %p71 = scmp.eq.s32.totalorder %s14, 0
    %p72 = por %p70, %p71
    %p73 = scmp.ne.s32.totalorder %s61, %s62
    %p74 = scmp.eq.s32.totalorder %s15, 3
    %p75 = por %p73, %p74
    %p77 = scmp.ne.s32.totalorder %s62, %s76
    %p78 = scmp.eq.s32.totalorder %s15, 0
    %p79 = por %p77, %p78
    %s81 = sadd.s32 %s80, 1
    %p84 = scmp.eq.s32.totalorder %s9, 3
    %p85 = scmp.ne.s32.totalorder %s80, %s82
    %p86 = scmp.eq.s32.totalorder %s9, 0
    %p87 = por %p85, %p86
    %p88 = scmp.ne.s32.totalorder %s80, %s82
    %p89 = scmp.eq.s32.totalorder %s14, 3
    %p90 = por %p88, %p89
    %p91 = scmp.ne.s32.totalorder %s82, %s83
    %p92 = scmp.eq.s32.totalorder %s14, 0
    %p93 = por %p91, %p92
    %p94 = scmp.ne.s32.totalorder %s82, %s83
    %p95 = scmp.eq.s32.totalorder %s15, 3
    %p96 = por %p94, %p95
    %p98 = scmp.ne.s32.totalorder %s83, %s97
    %p99 = scmp.eq.s32.totalorder %s15, 0
    %p100 = por %p98, %p99
    %s101 = ssub.s32 %s16, %s28
    %p102 = scmp.eq.s32.totalorder %s101, 0
    %s104 = sadd.s32 %s103, 1
    %s105 = scalar_select %p102, %s103, %s104
    %p108 = pneg %p102
    %p109 = scmp.eq.s32.totalorder %s9, 3
    %p110 = por %p108, %p109
    %p111 = scmp.ne.s32.totalorder %s103, %s106
    %p112 = scmp.eq.s32.totalorder %s9, 0
    %p113 = por %p111, %p112
    %p114 = scmp.ne.s32.totalorder %s103, %s106
    %p115 = scmp.eq.s32.totalorder %s14, 3
    %p116 = por %p114, %p115
    %p117 = scmp.ne.s32.totalorder %s106, %s107
    %p118 = scmp.eq.s32.totalorder %s14, 0
    %p119 = por %p117, %p118
    %p120 = scmp.ne.s32.totalorder %s106, %s107
    %p121 = scmp.eq.s32.totalorder %s15, 3
    %p122 = por %p120, %p121
    %p124 = scmp.ne.s32.totalorder %s107, %s123
    %p125 = scmp.eq.s32.totalorder %s15, 0
    %p126 = por %p124, %p125
    %p127 = scmp.le.s32.totalorder 1, %s9
    %p128 = scmp.lt.s32.totalorder %s9, 5
    %p129 = pnand %p127, %p128
    %p130 = pneg %p129
    // Predicated region
    $region9: #{fmow_forward.2} parent=5 // pred_check
      _
    $region10: #{fmow_forward.2} parent=5 // pred_check_branch
      %132 = sbr.rel (%p129) target = $region12
    $region11: #{fmow_forward.2} parent=5 // pred_region
      %s133 = ssub.s32 %s9, 1
      // Predicated region
      $region13: #{fmow_forward.2} parent=11 // pred_check
        %p134 = pneg %p72
      $region14: #{fmow_forward.2} parent=11 // pred_check_branch
        %136 = sbr.rel (%p134) target = $region16
      $region15: #{fmow_forward.2} parent=11 // pred_region
        _
      $region16: #{fmow_forward.2} parent=11 // pred_fallthru
        _
      // Predicated region
      $region17: #{fmow_forward.2} parent=11 // pred_check
        %p137 = pneg %p93
      $region18: #{fmow_forward.2} parent=11 // pred_check_branch
        %139 = sbr.rel (%p137) target = $region20
      $region19: #{fmow_forward.2} parent=11 // pred_region
        _
      $region20: #{fmow_forward.2} parent=11 // pred_fallthru
        _
    $region12: #{fmow_forward.2} parent=5 // pred_fallthru
      _
    %p140 = scmp.lt.s32.totalorder %s9, 4
    // Predicated region
    $region21: #{fmow_forward.2} parent=5 // pred_check
      %p141 = pneg %p140
    $region22: #{fmow_forward.2} parent=5 // pred_check_branch
      %143 = sbr.rel (%p141) target = $region24
    $region23: #{fmow_forward.2} parent=5 // pred_region
      // Predicated region
      $region25: #{fmow_forward.2} parent=23 // pred_check
        %p144 = pneg %p45
      $region26: #{fmow_forward.2} parent=23 // pred_check_branch
        %146 = sbr.rel (%p144) target = $region28
      $region27: #{fmow_forward.2} parent=23 // pred_region
        %s147 = smul.u32 %s16, 2
        %s148 = sadd.s32 %s147, %s17
        %s149 = smul.u32 32, %s148
        %p150 = scmp.lt.s32.totalorder %s149, 127
        %s151 = scalar_select %p150, %s149, 127
        %s152 = smul.addr %s151, 2
        %s153 = smul.addr %s152, 4
        %s154 = scalar_lea.vmem %s0, %s153
        %s155 = smul.u32 %s16, 2
        %s156 = sadd.s32 %s155, %s17
        %s157 = smul.u32 32, %s156
      $region28: #{fmow_forward.2} parent=23 // pred_fallthru
        _
    $region24: #{fmow_forward.2} parent=5 // pred_fallthru
      _
    %p158 = scmp.le.s32.totalorder 1, %s9
    %p159 = scmp.lt.s32.totalorder %s9, 5
    %p160 = pnand %p158, %p159
    %p161 = pneg %p160
    // Predicated region
    $region29: #{fmow_forward.2} parent=5 // pred_check
      _
    $region30: #{fmow_forward.2} parent=5 // pred_check_branch
      %163 = sbr.rel (%p160) target = $region32
    $region31: #{fmow_forward.2} parent=5 // pred_region
      %s164 = ssub.s32 %s9, 1
      %s165 = smul.u32 %s18, 2
      %s166 = sadd.s32 %s165, %s19
      %s167 = smul.u32 32, %s166
      %p168 = scmp.lt.s32.totalorder %s167, 127
      %s169 = scalar_select %p168, %s167, 127
      %s170 = smul.addr %s169, 2
      %s171 = smul.addr %s170, 4
      %s172 = scalar_lea.vmem %s0, %s171
      %p173 = pneg %p51
      %p174 = pneg %p48
      %p175 = pneg %p72
      %p176 = pneg %p69
      %p177 = pneg %p93
      %p178 = pneg %p90
      %p179 = pneg %p119
      %p180 = pneg %p116
      %p181 = scmp.lt.s32.totalorder %s18, 1
      %s182 = scalar_select %p181, %s18, 1
      %s183 = smul.addr %s182, 8
      %s184 = smul.addr %s183, 8
      %s185 = scalar_lea.vmem %s3, %s184
      %s186 = smul.u32 %s18, 2
      %s187 = sadd.s32 %s186, %s19
      %s188 = smul.u32 32, %s187
      %p189 = scmp.lt.s32.totalorder %s188, 127
      %s190 = scalar_select %p189, %s188, 127
      %s191 = smul.addr %s190, 2
      %s192 = smul.addr %s191, 4
      %s193 = scalar_lea.vmem %s0, %s192
      %s194 = smul.u32 %s18, 2
      %s195 = sadd.s32 %s194, %s19
      %s196 = smul.u32 32, %s195
      %p197 = scmp.lt.s32.totalorder %s18, 1
      %s198 = scalar_select %p197, %s18, 1
      %s199 = smul.addr %s198, 8
      %s200 = smul.addr %s199, 8
      %s201 = scalar_lea.vmem %s3, %s200
      %p202 = scmp.eq.s32.totalorder %s19, 0
      // Predicated region
      $region33: #{fmow_forward.2} parent=31 // pred_check
        %p203 = pneg %p202
      $region34: #{fmow_forward.2} parent=31 // pred_check_branch
        %205 = sbr.rel (%p203) target = $region36
      $region35: #{fmow_forward.2} parent=31 // pred_region
        %206 = vst [vmem:[%s201] sm:$0xff] 0.0
        %207 = vst [vmem:[%s201 + $0x8] sm:$0xff] 0.0
        %208 = vst [vmem:[%s201 + $0x10] sm:$0xff] 0.0
        %209 = vst [vmem:[%s201 + $0x18] sm:$0xff] 0.0
        %210 = vst [vmem:[%s201 + $0x20] sm:$0xff] 0.0
        %211 = vst [vmem:[%s201 + $0x28] sm:$0xff] 0.0
        %212 = vst [vmem:[%s201 + $0x30] sm:$0xff] 0.0
        %213 = vst [vmem:[%s201 + $0x38] sm:$0xff] 0.0
      $region36: #{fmow_forward.2} parent=31 // pred_fallthru
        _
      %v214 = vld [vmem:[%s193] sm:$0xff]
      %v215 = vld [vmem:[%s193 + $0x8] sm:$0xff]
      %v216 = vld [vmem:[%s193 + $0x10] sm:$0xff]
      %v217 = vld [vmem:[%s193 + $0x18] sm:$0xff]
      %v218 = vld [vmem:[%s193 + $0x20] sm:$0xff]
      %v219 = vld [vmem:[%s193 + $0x28] sm:$0xff]
      %v220 = vld [vmem:[%s193 + $0x30] sm:$0xff]
      %v221 = vld [vmem:[%s193 + $0x38] sm:$0xff]
      %v222 = vld [vmem:[%s193 + $0x40] sm:$0xff]
      %v223 = vld [vmem:[%s193 + $0x48] sm:$0xff]
      %v224 = vld [vmem:[%s193 + $0x50] sm:$0xff]
      %v225 = vld [vmem:[%s193 + $0x58] sm:$0xff]
      %v226 = vld [vmem:[%s193 + $0x60] sm:$0xff]
      %v227 = vld [vmem:[%s193 + $0x68] sm:$0xff]
      %v228 = vld [vmem:[%s193 + $0x70] sm:$0xff]
      %v229 = vld [vmem:[%s193 + $0x78] sm:$0xff]
      %v230 = vld [vmem:[%s193 + $0x80] sm:$0xff]
      %v231 = vld [vmem:[%s193 + $0x88] sm:$0xff]
      %v232 = vld [vmem:[%s193 + $0x90] sm:$0xff]
      %v233 = vld [vmem:[%s193 + $0x98] sm:$0xff]
      %v234 = vld [vmem:[%s193 + $0xa0] sm:$0xff]
      %v235 = vld [vmem:[%s193 + $0xa8] sm:$0xff]
      %v236 = vld [vmem:[%s193 + $0xb0] sm:$0xff]
      %v237 = vld [vmem:[%s193 + $0xb8] sm:$0xff]
      %v238 = vld [vmem:[%s193 + $0xc0] sm:$0xff]
      %v239 = vld [vmem:[%s193 + $0xc8] sm:$0xff]
      %v240 = vld [vmem:[%s193 + $0xd0] sm:$0xff]
      %v241 = vld [vmem:[%s193 + $0xd8] sm:$0xff]
      %v242 = vld [vmem:[%s193 + $0xe0] sm:$0xff]
      %v243 = vld [vmem:[%s193 + $0xe8] sm:$0xff]
      %v244 = vld [vmem:[%s193 + $0xf0] sm:$0xff]
      %v245 = vld [vmem:[%s193 + $0xf8] sm:$0xff]
      %v246 = vld [vmem:[%s1] sm:$0xff]
      %v247 = vld [vmem:[%s1 + $0x8] sm:$0xff]
      %v248 = vld [vmem:[%s1 + $0x10] sm:$0xff]
      %v249 = vld [vmem:[%s1 + $0x18] sm:$0xff]
      %v250 = vld [vmem:[%s1 + $0x20] sm:$0xff]
      %v251 = vld [vmem:[%s1 + $0x28] sm:$0xff]
      %v252 = vld [vmem:[%s1 + $0x30] sm:$0xff]
      %v253 = vld [vmem:[%s1 + $0x38] sm:$0xff]
      %v254 = vld [vmem:[%s1 + $0x40] sm:$0xff]
      %v255 = vld [vmem:[%s1 + $0x48] sm:$0xff]
      %v256 = vld [vmem:[%s1 + $0x50] sm:$0xff]
      %v257 = vld [vmem:[%s1 + $0x58] sm:$0xff]
      %v258 = vld [vmem:[%s1 + $0x60] sm:$0xff]
      %v259 = vld [vmem:[%s1 + $0x68] sm:$0xff]
      %v260 = vld [vmem:[%s1 + $0x70] sm:$0xff]
      %v261 = vld [vmem:[%s1 + $0x78] sm:$0xff]
      %v262 = vld [vmem:[%s1 + $0x80] sm:$0xff]
      %v263 = vld [vmem:[%s1 + $0x88] sm:$0xff]
      %v264 = vld [vmem:[%s1 + $0x90] sm:$0xff]
      %v265 = vld [vmem:[%s1 + $0x98] sm:$0xff]
      %v266 = vld [vmem:[%s1 + $0xa0] sm:$0xff]
      %v267 = vld [vmem:[%s1 + $0xa8] sm:$0xff]
      %v268 = vld [vmem:[%s1 + $0xb0] sm:$0xff]
      %v269 = vld [vmem:[%s1 + $0xb8] sm:$0xff]
      %v270 = vld [vmem:[%s1 + $0xc0] sm:$0xff]
      %v271 = vld [vmem:[%s1 + $0xc8] sm:$0xff]
      %v272 = vld [vmem:[%s1 + $0xd0] sm:$0xff]
      %v273 = vld [vmem:[%s1 + $0xd8] sm:$0xff]
      %v274 = vld [vmem:[%s1 + $0xe0] sm:$0xff]
      %v275 = vld [vmem:[%s1 + $0xe8] sm:$0xff]
      %v276 = vld [vmem:[%s1 + $0xf0] sm:$0xff]
      %v277 = vld [vmem:[%s1 + $0xf8] sm:$0xff]
      %v278 = vld [vmem:[%s1 + $0x100] sm:$0xff]
      %v279 = vld [vmem:[%s1 + $0x108] sm:$0xff]
      %v280 = vld [vmem:[%s1 + $0x110] sm:$0xff]
      %v281 = vld [vmem:[%s1 + $0x118] sm:$0xff]
      %v282 = vld [vmem:[%s1 + $0x120] sm:$0xff]
      %v283 = vld [vmem:[%s1 + $0x128] sm:$0xff]
      %v284 = vld [vmem:[%s1 + $0x130] sm:$0xff]
      %v285 = vld [vmem:[%s1 + $0x138] sm:$0xff]
      %v286 = vld [vmem:[%s1 + $0x140] sm:$0xff]
      %v287 = vld [vmem:[%s1 + $0x148] sm:$0xff]
      %v288 = vld [vmem:[%s1 + $0x150] sm:$0xff]
      %v289 = vld [vmem:[%s1 + $0x158] sm:$0xff]
      %v290 = vld [vmem:[%s1 + $0x160] sm:$0xff]
      %v291 = vld [vmem:[%s1 + $0x168] sm:$0xff]
      %v292 = vld [vmem:[%s1 + $0x170] sm:$0xff]
      %v293 = vld [vmem:[%s1 + $0x178] sm:$0xff]
      %v294 = vld [vmem:[%s1 + $0x180] sm:$0xff]
      %v295 = vld [vmem:[%s1 + $0x188] sm:$0xff]
      %v296 = vld [vmem:[%s1 + $0x190] sm:$0xff]
      %v297 = vld [vmem:[%s1 + $0x198] sm:$0xff]
      %v298 = vld [vmem:[%s1 + $0x1a0] sm:$0xff]
      %v299 = vld [vmem:[%s1 + $0x1a8] sm:$0xff]
      %v300 = vld [vmem:[%s1 + $0x1b0] sm:$0xff]
      %v301 = vld [vmem:[%s1 + $0x1b8] sm:$0xff]
      %v302 = vld [vmem:[%s1 + $0x1c0] sm:$0xff]
      %v303 = vld [vmem:[%s1 + $0x1c8] sm:$0xff]
      %v304 = vld [vmem:[%s1 + $0x1d0] sm:$0xff]
      %v305 = vld [vmem:[%s1 + $0x1d8] sm:$0xff]
      %v306 = vld [vmem:[%s1 + $0x1e0] sm:$0xff]
      %v307 = vld [vmem:[%s1 + $0x1e8] sm:$0xff]
      %v308 = vld [vmem:[%s1 + $0x1f0] sm:$0xff]
      %v309 = vld [vmem:[%s1 + $0x1f8] sm:$0xff]
      %v310 = vld [vmem:[%s1 + $0x200] sm:$0xff]
      %v311 = vld [vmem:[%s1 + $0x208] sm:$0xff]
      %v312 = vld [vmem:[%s1 + $0x210] sm:$0xff]
      %v313 = vld [vmem:[%s1 + $0x218] sm:$0xff]
      %v314 = vld [vmem:[%s1 + $0x220] sm:$0xff]
      %v315 = vld [vmem:[%s1 + $0x228] sm:$0xff]
      %v316 = vld [vmem:[%s1 + $0x230] sm:$0xff]
      %v317 = vld [vmem:[%s1 + $0x238] sm:$0xff]
      %v318 = vld [vmem:[%s1 + $0x240] sm:$0xff]
      %v319 = vld [vmem:[%s1 + $0x248] sm:$0xff]
      %v320 = vld [vmem:[%s1 + $0x250] sm:$0xff]
      %v321 = vld [vmem:[%s1 + $0x258] sm:$0xff]
      %v322 = vld [vmem:[%s1 + $0x260] sm:$0xff]
      %v323 = vld [vmem:[%s1 + $0x268] sm:$0xff]
      %v324 = vld [vmem:[%s1 + $0x270] sm:$0xff]
      %v325 = vld [vmem:[%s1 + $0x278] sm:$0xff]
      %v326 = vld [vmem:[%s1 + $0x280] sm:$0xff]
      %v327 = vld [vmem:[%s1 + $0x288] sm:$0xff]
      %v328 = vld [vmem:[%s1 + $0x290] sm:$0xff]
      %v329 = vld [vmem:[%s1 + $0x298] sm:$0xff]
      %v330 = vld [vmem:[%s1 + $0x2a0] sm:$0xff]
      %v331 = vld [vmem:[%s1 + $0x2a8] sm:$0xff]
      %v332 = vld [vmem:[%s1 + $0x2b0] sm:$0xff]
      %v333 = vld [vmem:[%s1 + $0x2b8] sm:$0xff]
      %v334 = vld [vmem:[%s1 + $0x2c0] sm:$0xff]
      %v335 = vld [vmem:[%s1 + $0x2c8] sm:$0xff]
      %v336 = vld [vmem:[%s1 + $0x2d0] sm:$0xff]
      %v337 = vld [vmem:[%s1 + $0x2d8] sm:$0xff]
      %v338 = vld [vmem:[%s1 + $0x2e0] sm:$0xff]
      %v339 = vld [vmem:[%s1 + $0x2e8] sm:$0xff]
      %v340 = vld [vmem:[%s1 + $0x2f0] sm:$0xff]
      %v341 = vld [vmem:[%s1 + $0x2f8] sm:$0xff]
      %v342 = vld [vmem:[%s1 + $0x300] sm:$0xff]
      %v343 = vld [vmem:[%s1 + $0x308] sm:$0xff]
      %v344 = vld [vmem:[%s1 + $0x310] sm:$0xff]
      %v345 = vld [vmem:[%s1 + $0x318] sm:$0xff]
      %v346 = vld [vmem:[%s1 + $0x320] sm:$0xff]
      %v347 = vld [vmem:[%s1 + $0x328] sm:$0xff]
      %v348 = vld [vmem:[%s1 + $0x330] sm:$0xff]
      %v349 = vld [vmem:[%s1 + $0x338] sm:$0xff]
      %v350 = vld [vmem:[%s1 + $0x340] sm:$0xff]
      %v351 = vld [vmem:[%s1 + $0x348] sm:$0xff]
      %v352 = vld [vmem:[%s1 + $0x350] sm:$0xff]
      %v353 = vld [vmem:[%s1 + $0x358] sm:$0xff]
      %v354 = vld [vmem:[%s1 + $0x360] sm:$0xff]
      %v355 = vld [vmem:[%s1 + $0x368] sm:$0xff]
      %v356 = vld [vmem:[%s1 + $0x370] sm:$0xff]
      %v357 = vld [vmem:[%s1 + $0x378] sm:$0xff]
      %v358 = vld [vmem:[%s1 + $0x380] sm:$0xff]
      %v359 = vld [vmem:[%s1 + $0x388] sm:$0xff]
      %v360 = vld [vmem:[%s1 + $0x390] sm:$0xff]
      %v361 = vld [vmem:[%s1 + $0x398] sm:$0xff]
      %v362 = vld [vmem:[%s1 + $0x3a0] sm:$0xff]
      %v363 = vld [vmem:[%s1 + $0x3a8] sm:$0xff]
      %v364 = vld [vmem:[%s1 + $0x3b0] sm:$0xff]
      %v365 = vld [vmem:[%s1 + $0x3b8] sm:$0xff]
      %v366 = vld [vmem:[%s1 + $0x3c0] sm:$0xff]
      %v367 = vld [vmem:[%s1 + $0x3c8] sm:$0xff]
      %v368 = vld [vmem:[%s1 + $0x3d0] sm:$0xff]
      %v369 = vld [vmem:[%s1 + $0x3d8] sm:$0xff]
      %v370 = vld [vmem:[%s1 + $0x3e0] sm:$0xff]
      %v371 = vld [vmem:[%s1 + $0x3e8] sm:$0xff]
      %v372 = vld [vmem:[%s1 + $0x3f0] sm:$0xff]
      %v373 = vld [vmem:[%s1 + $0x3f8] sm:$0xff]
      %v374 = vld [vmem:[%s2] sm:$0xff]
      %v376 = vlaneseq
      %v377 = vshrl.u32 %v376, 7
      %v378 = vsub.s32 0, %v377
      %v379 = vrot.slane %v374, %v378
      %v380 = vlaneseq
      %v381 = vshrl.u32 %v380, 7
      %v382 = vsub.s32 1, %v381
      %v383 = vrot.slane %v374, %v382
      %v384 = vlaneseq
      %v385 = vshrl.u32 %v384, 7
      %v386 = vsub.s32 2, %v385
      %v387 = vrot.slane %v374, %v386
      %v388 = vlaneseq
      %v389 = vshrl.u32 %v388, 7
      %v390 = vsub.s32 3, %v389
      %v391 = vrot.slane %v374, %v390
      %v392 = vlaneseq
      %v393 = vshrl.u32 %v392, 7
      %v394 = vsub.s32 4, %v393
      %v395 = vrot.slane %v374, %v394
      %v396 = vlaneseq
      %v397 = vshrl.u32 %v396, 7
      %v398 = vsub.s32 5, %v397
      %v399 = vrot.slane %v374, %v398
      %v400 = vlaneseq
      %v401 = vshrl.u32 %v400, 7
      %v402 = vsub.s32 6, %v401
      %v403 = vrot.slane %v374, %v402
      %v404 = vlaneseq
      %v405 = vshrl.u32 %v404, 7
      %v406 = vsub.s32 7, %v405
      %v407 = vrot.slane %v374, %v406
      %v448 = vunpack.c.l.b16 %v214
      %v449 = vunpack.c.h.b16 %v214
      %v450 = vunpack.c.l.b16 %v215
      %v451 = vunpack.c.h.b16 %v215
      %v452 = vunpack.c.l.b16 %v216
      %v453 = vunpack.c.h.b16 %v216
      %v454 = vunpack.c.l.b16 %v217
      %v455 = vunpack.c.h.b16 %v217
      %v456 = vunpack.c.l.b16 %v218
      %v457 = vunpack.c.h.b16 %v218
      %v458 = vunpack.c.l.b16 %v219
      %v459 = vunpack.c.h.b16 %v219
      %v460 = vunpack.c.l.b16 %v220
      %v461 = vunpack.c.h.b16 %v220
      %v462 = vunpack.c.l.b16 %v221
      %v463 = vunpack.c.h.b16 %v221
      %v464 = vunpack.c.l.b16 %v222
      %v465 = vunpack.c.h.b16 %v222
      %v466 = vunpack.c.l.b16 %v223
      %v467 = vunpack.c.h.b16 %v223
      %v468 = vunpack.c.l.b16 %v224
      %v469 = vunpack.c.h.b16 %v224
      %v470 = vunpack.c.l.b16 %v225
      %v471 = vunpack.c.h.b16 %v225
      %v472 = vunpack.c.l.b16 %v226
      %v473 = vunpack.c.h.b16 %v226
      %v474 = vunpack.c.l.b16 %v227
      %v475 = vunpack.c.h.b16 %v227
      %v476 = vunpack.c.l.b16 %v228
      %v477 = vunpack.c.h.b16 %v228
      %v478 = vunpack.c.l.b16 %v229
      %v479 = vunpack.c.h.b16 %v229
      %v480 = vunpack.c.l.b16 %v230
      %v481 = vunpack.c.h.b16 %v230
      %v482 = vunpack.c.l.b16 %v231
      %v483 = vunpack.c.h.b16 %v231
      %v484 = vunpack.c.l.b16 %v232
      %v485 = vunpack.c.h.b16 %v232
      %v486 = vunpack.c.l.b16 %v233
      %v487 = vunpack.c.h.b16 %v233
      %v488 = vunpack.c.l.b16 %v234
      %v489 = vunpack.c.h.b16 %v234
      %v490 = vunpack.c.l.b16 %v235
      %v491 = vunpack.c.h.b16 %v235
      %v492 = vunpack.c.l.b16 %v236
      %v493 = vunpack.c.h.b16 %v236
      %v494 = vunpack.c.l.b16 %v237
      %v495 = vunpack.c.h.b16 %v237
      %v496 = vunpack.c.l.b16 %v238
      %v497 = vunpack.c.h.b16 %v238
      %v498 = vunpack.c.l.b16 %v239
      %v499 = vunpack.c.h.b16 %v239
      %v500 = vunpack.c.l.b16 %v240
      %v501 = vunpack.c.h.b16 %v240
      %v502 = vunpack.c.l.b16 %v241
      %v503 = vunpack.c.h.b16 %v241
      %v504 = vunpack.c.l.b16 %v242
      %v505 = vunpack.c.h.b16 %v242
      %v506 = vunpack.c.l.b16 %v243
      %v507 = vunpack.c.h.b16 %v243
      %v508 = vunpack.c.l.b16 %v244
      %v509 = vunpack.c.h.b16 %v244
      %v510 = vunpack.c.l.b16 %v245
      %v511 = vunpack.c.h.b16 %v245
      %v512 = vpack.c.b16 %v450, %v448
      %v513 = vpack.c.b16 %v451, %v449
      %v514 = vpack.c.b16 %v454, %v452
      %v515 = vpack.c.b16 %v455, %v453
      %v516 = vpack.c.b16 %v458, %v456
      %v517 = vpack.c.b16 %v459, %v457
      %v518 = vpack.c.b16 %v462, %v460
      %v519 = vpack.c.b16 %v463, %v461
      %v520 = vpack.c.b16 %v466, %v464
      %v521 = vpack.c.b16 %v467, %v465
      %v522 = vpack.c.b16 %v470, %v468
      %v523 = vpack.c.b16 %v471, %v469
      %v524 = vpack.c.b16 %v474, %v472
      %v525 = vpack.c.b16 %v475, %v473
      %v526 = vpack.c.b16 %v478, %v476
      %v527 = vpack.c.b16 %v479, %v477
      %v528 = vpack.c.b16 %v482, %v480
      %v529 = vpack.c.b16 %v483, %v481
      %v530 = vpack.c.b16 %v486, %v484
      %v531 = vpack.c.b16 %v487, %v485
      %v532 = vpack.c.b16 %v490, %v488
      %v533 = vpack.c.b16 %v491, %v489
      %v534 = vpack.c.b16 %v494, %v492
      %v535 = vpack.c.b16 %v495, %v493
      %v536 = vpack.c.b16 %v498, %v496
      %v537 = vpack.c.b16 %v499, %v497
      %v538 = vpack.c.b16 %v502, %v500
      %v539 = vpack.c.b16 %v503, %v501
      %v540 = vpack.c.b16 %v506, %v504
      %v541 = vpack.c.b16 %v507, %v505
      %v542 = vpack.c.b16 %v510, %v508
      %v543 = vpack.c.b16 %v511, %v509
      %v704 = vunpack.c.l.b16 %v246
      %v705 = vunpack.c.h.b16 %v246
      %v706 = vunpack.c.l.b16 %v247
      %v707 = vunpack.c.h.b16 %v247
      %v708 = vunpack.c.l.b16 %v248
      %v709 = vunpack.c.h.b16 %v248
      %v710 = vunpack.c.l.b16 %v249
      %v711 = vunpack.c.h.b16 %v249
      %v712 = vunpack.c.l.b16 %v250
      %v713 = vunpack.c.h.b16 %v250
      %v714 = vunpack.c.l.b16 %v251
      %v715 = vunpack.c.h.b16 %v251
      %v716 = vunpack.c.l.b16 %v252
      %v717 = vunpack.c.h.b16 %v252
      %v718 = vunpack.c.l.b16 %v253
      %v719 = vunpack.c.h.b16 %v253
      %v720 = vunpack.c.l.b16 %v254
      %v721 = vunpack.c.h.b16 %v254
      %v722 = vunpack.c.l.b16 %v255
      %v723 = vunpack.c.h.b16 %v255
      %v724 = vunpack.c.l.b16 %v256
      %v725 = vunpack.c.h.b16 %v256
      %v726 = vunpack.c.l.b16 %v257
      %v727 = vunpack.c.h.b16 %v257
      %v728 = vunpack.c.l.b16 %v258
      %v729 = vunpack.c.h.b16 %v258
      %v730 = vunpack.c.l.b16 %v259
      %v731 = vunpack.c.h.b16 %v259
      %v732 = vunpack.c.l.b16 %v260
      %v733 = vunpack.c.h.b16 %v260
      %v734 = vunpack.c.l.b16 %v261
      %v735 = vunpack.c.h.b16 %v261
      %v736 = vunpack.c.l.b16 %v262
      %v737 = vunpack.c.h.b16 %v262
      %v738 = vunpack.c.l.b16 %v263
      %v739 = vunpack.c.h.b16 %v263
      %v740 = vunpack.c.l.b16 %v264
      %v741 = vunpack.c.h.b16 %v264
      %v742 = vunpack.c.l.b16 %v265
      %v743 = vunpack.c.h.b16 %v265
      %v744 = vunpack.c.l.b16 %v266
      %v745 = vunpack.c.h.b16 %v266
      %v746 = vunpack.c.l.b16 %v267
      %v747 = vunpack.c.h.b16 %v267
      %v748 = vunpack.c.l.b16 %v268
      %v749 = vunpack.c.h.b16 %v268
      %v750 = vunpack.c.l.b16 %v269
      %v751 = vunpack.c.h.b16 %v269
      %v752 = vunpack.c.l.b16 %v270
      %v753 = vunpack.c.h.b16 %v270
      %v754 = vunpack.c.l.b16 %v271
      %v755 = vunpack.c.h.b16 %v271
      %v756 = vunpack.c.l.b16 %v272
      %v757 = vunpack.c.h.b16 %v272
      %v758 = vunpack.c.l.b16 %v273
      %v759 = vunpack.c.h.b16 %v273
      %v760 = vunpack.c.l.b16 %v274
      %v761 = vunpack.c.h.b16 %v274
      %v762 = vunpack.c.l.b16 %v275
      %v763 = vunpack.c.h.b16 %v275
      %v764 = vunpack.c.l.b16 %v276
      %v765 = vunpack.c.h.b16 %v276
      %v766 = vunpack.c.l.b16 %v277
      %v767 = vunpack.c.h.b16 %v277
      %v768 = vunpack.c.l.b16 %v278
      %v769 = vunpack.c.h.b16 %v278
      %v770 = vunpack.c.l.b16 %v279
      %v771 = vunpack.c.h.b16 %v279
      %v772 = vunpack.c.l.b16 %v280
      %v773 = vunpack.c.h.b16 %v280
      %v774 = vunpack.c.l.b16 %v281
      %v775 = vunpack.c.h.b16 %v281
      %v776 = vunpack.c.l.b16 %v282
      %v777 = vunpack.c.h.b16 %v282
      %v778 = vunpack.c.l.b16 %v283
      %v779 = vunpack.c.h.b16 %v283
      %v780 = vunpack.c.l.b16 %v284
      %v781 = vunpack.c.h.b16 %v284
      %v782 = vunpack.c.l.b16 %v285
      %v783 = vunpack.c.h.b16 %v285
      %v784 = vunpack.c.l.b16 %v286
      %v785 = vunpack.c.h.b16 %v286
      %v786 = vunpack.c.l.b16 %v287
      %v787 = vunpack.c.h.b16 %v287
      %v788 = vunpack.c.l.b16 %v288
      %v789 = vunpack.c.h.b16 %v288
      %v790 = vunpack.c.l.b16 %v289
      %v791 = vunpack.c.h.b16 %v289
      %v792 = vunpack.c.l.b16 %v290
      %v793 = vunpack.c.h.b16 %v290
      %v794 = vunpack.c.l.b16 %v291
      %v795 = vunpack.c.h.b16 %v291
      %v796 = vunpack.c.l.b16 %v292
      %v797 = vunpack.c.h.b16 %v292
      %v798 = vunpack.c.l.b16 %v293
      %v799 = vunpack.c.h.b16 %v293
      %v800 = vunpack.c.l.b16 %v294
      %v801 = vunpack.c.h.b16 %v294
      %v802 = vunpack.c.l.b16 %v295
      %v803 = vunpack.c.h.b16 %v295
      %v804 = vunpack.c.l.b16 %v296
      %v805 = vunpack.c.h.b16 %v296
      %v806 = vunpack.c.l.b16 %v297
      %v807 = vunpack.c.h.b16 %v297
      %v808 = vunpack.c.l.b16 %v298
      %v809 = vunpack.c.h.b16 %v298
      %v810 = vunpack.c.l.b16 %v299
      %v811 = vunpack.c.h.b16 %v299
      %v812 = vunpack.c.l.b16 %v300
      %v813 = vunpack.c.h.b16 %v300
      %v814 = vunpack.c.l.b16 %v301
      %v815 = vunpack.c.h.b16 %v301
      %v816 = vunpack.c.l.b16 %v302
      %v817 = vunpack.c.h.b16 %v302
      %v818 = vunpack.c.l.b16 %v303
      %v819 = vunpack.c.h.b16 %v303
      %v820 = vunpack.c.l.b16 %v304
      %v821 = vunpack.c.h.b16 %v304
      %v822 = vunpack.c.l.b16 %v305
      %v823 = vunpack.c.h.b16 %v305
      %v824 = vunpack.c.l.b16 %v306
      %v825 = vunpack.c.h.b16 %v306
      %v826 = vunpack.c.l.b16 %v307
      %v827 = vunpack.c.h.b16 %v307
      %v828 = vunpack.c.l.b16 %v308
      %v829 = vunpack.c.h.b16 %v308
      %v830 = vunpack.c.l.b16 %v309
      %v831 = vunpack.c.h.b16 %v309
      %v832 = vunpack.c.l.b16 %v310
      %v833 = vunpack.c.h.b16 %v310
      %v834 = vunpack.c.l.b16 %v311
      %v835 = vunpack.c.h.b16 %v311
      %v836 = vunpack.c.l.b16 %v312
      %v837 = vunpack.c.h.b16 %v312
      %v838 = vunpack.c.l.b16 %v313
      %v839 = vunpack.c.h.b16 %v313
      %v840 = vunpack.c.l.b16 %v314
      %v841 = vunpack.c.h.b16 %v314
      %v842 = vunpack.c.l.b16 %v315
      %v843 = vunpack.c.h.b16 %v315
      %v844 = vunpack.c.l.b16 %v316
      %v845 = vunpack.c.h.b16 %v316
      %v846 = vunpack.c.l.b16 %v317
      %v847 = vunpack.c.h.b16 %v317
      %v848 = vunpack.c.l.b16 %v318
      %v849 = vunpack.c.h.b16 %v318
      %v850 = vunpack.c.l.b16 %v319
      %v851 = vunpack.c.h.b16 %v319
      %v852 = vunpack.c.l.b16 %v320
      %v853 = vunpack.c.h.b16 %v320
      %v854 = vunpack.c.l.b16 %v321
      %v855 = vunpack.c.h.b16 %v321
      %v856 = vunpack.c.l.b16 %v322
      %v857 = vunpack.c.h.b16 %v322
      %v858 = vunpack.c.l.b16 %v323
      %v859 = vunpack.c.h.b16 %v323
      %v860 = vunpack.c.l.b16 %v324
      %v861 = vunpack.c.h.b16 %v324
      %v862 = vunpack.c.l.b16 %v325
      %v863 = vunpack.c.h.b16 %v325
      %v864 = vunpack.c.l.b16 %v326
      %v865 = vunpack.c.h.b16 %v326
      %v866 = vunpack.c.l.b16 %v327
      %v867 = vunpack.c.h.b16 %v327
      %v868 = vunpack.c.l.b16 %v328
      %v869 = vunpack.c.h.b16 %v328
      %v870 = vunpack.c.l.b16 %v329
      %v871 = vunpack.c.h.b16 %v329
      %v872 = vunpack.c.l.b16 %v330
      %v873 = vunpack.c.h.b16 %v330
      %v874 = vunpack.c.l.b16 %v331
      %v875 = vunpack.c.h.b16 %v331
      %v876 = vunpack.c.l.b16 %v332
      %v877 = vunpack.c.h.b16 %v332
      %v878 = vunpack.c.l.b16 %v333
      %v879 = vunpack.c.h.b16 %v333
      %v880 = vunpack.c.l.b16 %v334
      %v881 = vunpack.c.h.b16 %v334
      %v882 = vunpack.c.l.b16 %v335
      %v883 = vunpack.c.h.b16 %v335
      %v884 = vunpack.c.l.b16 %v336
      %v885 = vunpack.c.h.b16 %v336
      %v886 = vunpack.c.l.b16 %v337
      %v887 = vunpack.c.h.b16 %v337
      %v888 = vunpack.c.l.b16 %v338
      %v889 = vunpack.c.h.b16 %v338
      %v890 = vunpack.c.l.b16 %v339
      %v891 = vunpack.c.h.b16 %v339
      %v892 = vunpack.c.l.b16 %v340
      %v893 = vunpack.c.h.b16 %v340
      %v894 = vunpack.c.l.b16 %v341
      %v895 = vunpack.c.h.b16 %v341
      %v896 = vunpack.c.l.b16 %v342
      %v897 = vunpack.c.h.b16 %v342
      %v898 = vunpack.c.l.b16 %v343
      %v899 = vunpack.c.h.b16 %v343
      %v900 = vunpack.c.l.b16 %v344
      %v901 = vunpack.c.h.b16 %v344
      %v902 = vunpack.c.l.b16 %v345
      %v903 = vunpack.c.h.b16 %v345
      %v904 = vunpack.c.l.b16 %v346
      %v905 = vunpack.c.h.b16 %v346
      %v906 = vunpack.c.l.b16 %v347
      %v907 = vunpack.c.h.b16 %v347
      %v908 = vunpack.c.l.b16 %v348
      %v909 = vunpack.c.h.b16 %v348
      %v910 = vunpack.c.l.b16 %v349
      %v911 = vunpack.c.h.b16 %v349
      %v912 = vunpack.c.l.b16 %v350
      %v913 = vunpack.c.h.b16 %v350
      %v914 = vunpack.c.l.b16 %v351
      %v915 = vunpack.c.h.b16 %v351
      %v916 = vunpack.c.l.b16 %v352
      %v917 = vunpack.c.h.b16 %v352
      %v918 = vunpack.c.l.b16 %v353
      %v919 = vunpack.c.h.b16 %v353
      %v920 = vunpack.c.l.b16 %v354
      %v921 = vunpack.c.h.b16 %v354
      %v922 = vunpack.c.l.b16 %v355
      %v923 = vunpack.c.h.b16 %v355
      %v924 = vunpack.c.l.b16 %v356
      %v925 = vunpack.c.h.b16 %v356
      %v926 = vunpack.c.l.b16 %v357
      %v927 = vunpack.c.h.b16 %v357
      %v928 = vunpack.c.l.b16 %v358
      %v929 = vunpack.c.h.b16 %v358
      %v930 = vunpack.c.l.b16 %v359
      %v931 = vunpack.c.h.b16 %v359
      %v932 = vunpack.c.l.b16 %v360
      %v933 = vunpack.c.h.b16 %v360
      %v934 = vunpack.c.l.b16 %v361
      %v935 = vunpack.c.h.b16 %v361
      %v936 = vunpack.c.l.b16 %v362
      %v937 = vunpack.c.h.b16 %v362
      %v938 = vunpack.c.l.b16 %v363
      %v939 = vunpack.c.h.b16 %v363
      %v940 = vunpack.c.l.b16 %v364
      %v941 = vunpack.c.h.b16 %v364
      %v942 = vunpack.c.l.b16 %v365
      %v943 = vunpack.c.h.b16 %v365
      %v944 = vunpack.c.l.b16 %v366
      %v945 = vunpack.c.h.b16 %v366
      %v946 = vunpack.c.l.b16 %v367
      %v947 = vunpack.c.h.b16 %v367
      %v948 = vunpack.c.l.b16 %v368
      %v949 = vunpack.c.h.b16 %v368
      %v950 = vunpack.c.l.b16 %v369
      %v951 = vunpack.c.h.b16 %v369
      %v952 = vunpack.c.l.b16 %v370
      %v953 = vunpack.c.h.b16 %v370
      %v954 = vunpack.c.l.b16 %v371
      %v955 = vunpack.c.h.b16 %v371
      %v956 = vunpack.c.l.b16 %v372
      %v957 = vunpack.c.h.b16 %v372
      %v958 = vunpack.c.l.b16 %v373
      %v959 = vunpack.c.h.b16 %v373
      %v960 = vpack.c.b16 %v712, %v704
      %v961 = vpack.c.b16 %v713, %v705
      %v962 = vpack.c.b16 %v714, %v706
      %v963 = vpack.c.b16 %v715, %v707
      %v964 = vpack.c.b16 %v716, %v708
      %v965 = vpack.c.b16 %v717, %v709
      %v966 = vpack.c.b16 %v718, %v710
      %v967 = vpack.c.b16 %v719, %v711
      %v968 = vpack.c.b16 %v728, %v720
      %v969 = vpack.c.b16 %v729, %v721
      %v970 = vpack.c.b16 %v730, %v722
      %v971 = vpack.c.b16 %v731, %v723
      %v972 = vpack.c.b16 %v732, %v724
      %v973 = vpack.c.b16 %v733, %v725
      %v974 = vpack.c.b16 %v734, %v726
      %v975 = vpack.c.b16 %v735, %v727
      %v976 = vpack.c.b16 %v744, %v736
      %v977 = vpack.c.b16 %v745, %v737
      %v978 = vpack.c.b16 %v746, %v738
      %v979 = vpack.c.b16 %v747, %v739
      %v980 = vpack.c.b16 %v748, %v740
      %v981 = vpack.c.b16 %v749, %v741
      %v982 = vpack.c.b16 %v750, %v742
      %v983 = vpack.c.b16 %v751, %v743
      %v984 = vpack.c.b16 %v760, %v752
      %v985 = vpack.c.b16 %v761, %v753
      %v986 = vpack.c.b16 %v762, %v754
      %v987 = vpack.c.b16 %v763, %v755
      %v988 = vpack.c.b16 %v764, %v756
      %v989 = vpack.c.b16 %v765, %v757
      %v990 = vpack.c.b16 %v766, %v758
      %v991 = vpack.c.b16 %v767, %v759
      %v992 = vpack.c.b16 %v776, %v768
      %v993 = vpack.c.b16 %v777, %v769
      %v994 = vpack.c.b16 %v778, %v770
      %v995 = vpack.c.b16 %v779, %v771
      %v996 = vpack.c.b16 %v780, %v772
      %v997 = vpack.c.b16 %v781, %v773
      %v998 = vpack.c.b16 %v782, %v774
      %v999 = vpack.c.b16 %v783, %v775
      %v1000 = vpack.c.b16 %v792, %v784
      %v1001 = vpack.c.b16 %v793, %v785
      %v1002 = vpack.c.b16 %v794, %v786
      %v1003 = vpack.c.b16 %v795, %v787
      %v1004 = vpack.c.b16 %v796, %v788
      %v1005 = vpack.c.b16 %v797, %v789
      %v1006 = vpack.c.b16 %v798, %v790
      %v1007 = vpack.c.b16 %v799, %v791
      %v1008 = vpack.c.b16 %v808, %v800
      %v1009 = vpack.c.b16 %v809, %v801
      %v1010 = vpack.c.b16 %v810, %v802
      %v1011 = vpack.c.b16 %v811, %v803
      %v1012 = vpack.c.b16 %v812, %v804
      %v1013 = vpack.c.b16 %v813, %v805
      %v1014 = vpack.c.b16 %v814, %v806
      %v1015 = vpack.c.b16 %v815, %v807
      %v1016 = vpack.c.b16 %v824, %v816
      %v1017 = vpack.c.b16 %v825, %v817
      %v1018 = vpack.c.b16 %v826, %v818
      %v1019 = vpack.c.b16 %v827, %v819
      %v1020 = vpack.c.b16 %v828, %v820
      %v1021 = vpack.c.b16 %v829, %v821
      %v1022 = vpack.c.b16 %v830, %v822
      %v1023 = vpack.c.b16 %v831, %v823
      %v1024 = vpack.c.b16 %v840, %v832
      %v1025 = vpack.c.b16 %v841, %v833
      %v1026 = vpack.c.b16 %v842, %v834
      %v1027 = vpack.c.b16 %v843, %v835
      %v1028 = vpack.c.b16 %v844, %v836
      %v1029 = vpack.c.b16 %v845, %v837
      %v1030 = vpack.c.b16 %v846, %v838
      %v1031 = vpack.c.b16 %v847, %v839
      %v1032 = vpack.c.b16 %v856, %v848
      %v1033 = vpack.c.b16 %v857, %v849
      %v1034 = vpack.c.b16 %v858, %v850
      %v1035 = vpack.c.b16 %v859, %v851
      %v1036 = vpack.c.b16 %v860, %v852
      %v1037 = vpack.c.b16 %v861, %v853
      %v1038 = vpack.c.b16 %v862, %v854
      %v1039 = vpack.c.b16 %v863, %v855
      %v1040 = vpack.c.b16 %v872, %v864
      %v1041 = vpack.c.b16 %v873, %v865
      %v1042 = vpack.c.b16 %v874, %v866
      %v1043 = vpack.c.b16 %v875, %v867
      %v1044 = vpack.c.b16 %v876, %v868
      %v1045 = vpack.c.b16 %v877, %v869
      %v1046 = vpack.c.b16 %v878, %v870
      %v1047 = vpack.c.b16 %v879, %v871
      %v1048 = vpack.c.b16 %v888, %v880
      %v1049 = vpack.c.b16 %v889, %v881
      %v1050 = vpack.c.b16 %v890, %v882
      %v1051 = vpack.c.b16 %v891, %v883
      %v1052 = vpack.c.b16 %v892, %v884
      %v1053 = vpack.c.b16 %v893, %v885
      %v1054 = vpack.c.b16 %v894, %v886
      %v1055 = vpack.c.b16 %v895, %v887
      %v1056 = vpack.c.b16 %v904, %v896
      %v1057 = vpack.c.b16 %v905, %v897
      %v1058 = vpack.c.b16 %v906, %v898
      %v1059 = vpack.c.b16 %v907, %v899
      %v1060 = vpack.c.b16 %v908, %v900
      %v1061 = vpack.c.b16 %v909, %v901
      %v1062 = vpack.c.b16 %v910, %v902
      %v1063 = vpack.c.b16 %v911, %v903
      %v1064 = vpack.c.b16 %v920, %v912
      %v1065 = vpack.c.b16 %v921, %v913
      %v1066 = vpack.c.b16 %v922, %v914
      %v1067 = vpack.c.b16 %v923, %v915
      %v1068 = vpack.c.b16 %v924, %v916
      %v1069 = vpack.c.b16 %v925, %v917
      %v1070 = vpack.c.b16 %v926, %v918
      %v1071 = vpack.c.b16 %v927, %v919
      %v1072 = vpack.c.b16 %v936, %v928
      %v1073 = vpack.c.b16 %v937, %v929
      %v1074 = vpack.c.b16 %v938, %v930
      %v1075 = vpack.c.b16 %v939, %v931
      %v1076 = vpack.c.b16 %v940, %v932
      %v1077 = vpack.c.b16 %v941, %v933
      %v1078 = vpack.c.b16 %v942, %v934
      %v1079 = vpack.c.b16 %v943, %v935
      %v1080 = vpack.c.b16 %v952, %v944
      %v1081 = vpack.c.b16 %v953, %v945
      %v1082 = vpack.c.b16 %v954, %v946
      %v1083 = vpack.c.b16 %v955, %v947
      %v1084 = vpack.c.b16 %v956, %v948
      %v1085 = vpack.c.b16 %v957, %v949
      %v1086 = vpack.c.b16 %v958, %v950
      %v1087 = vpack.c.b16 %v959, %v951
      %1216 = vmatprep.subr.bf16.mxu0 %v961
      %1217 = vmatpush1.bf16.msra.mxu0 %v960
      %1218 = vmatprep.subr.bf16.mxu0 %v969
      %1219 = vmatpush1.bf16.msra.mxu0 %v968
      %1220 = vmatprep.subr.bf16.mxu0 %v977
      %1221 = vmatpush1.bf16.msra.mxu0 %v976
      %1222 = vmatprep.subr.bf16.mxu0 %v985
      %1223 = vmatpush1.bf16.msra.mxu0 %v984
      %1224 = vmatprep.subr.bf16.mxu0 %v993
      %1225 = vmatpush1.bf16.msra.mxu0 %v992
      %1226 = vmatprep.subr.bf16.mxu0 %v1001
      %1227 = vmatpush1.bf16.msra.mxu0 %v1000
      %1228 = vmatprep.subr.bf16.mxu0 %v1009
      %1229 = vmatpush1.bf16.msra.mxu0 %v1008
      %1230 = vmatprep.subr.bf16.mxu0 %v1017
      %1231 = vmatpush1.bf16.msra.mxu0 %v1016
      %1232 = vmatprep.subr.bf16.mxu0 %v1025
      %1233 = vmatpush1.bf16.msra.mxu0 %v1024
      %1234 = vmatprep.subr.bf16.mxu0 %v1033
      %1235 = vmatpush1.bf16.msra.mxu0 %v1032
      %1236 = vmatprep.subr.bf16.mxu0 %v1041
      %1237 = vmatpush1.bf16.msra.mxu0 %v1040
      %1238 = vmatprep.subr.bf16.mxu0 %v1049
      %1239 = vmatpush1.bf16.msra.mxu0 %v1048
      %1240 = vmatprep.subr.bf16.mxu0 %v1057
      %1241 = vmatpush1.bf16.msra.mxu0 %v1056
      %1242 = vmatprep.subr.bf16.mxu0 %v1065
      %1243 = vmatpush1.bf16.msra.mxu0 %v1064
      %1244 = vmatprep.subr.bf16.mxu0 %v1073
      %1245 = vmatpush1.bf16.msra.mxu0 %v1072
      %1246 = vmatprep.subr.bf16.mxu0 %v1081
      %1247 = vmatpush1.bf16.msra.mxu0 %v1080
      %1248 = vmatprep.mubr.bf16.mxu0 %v513
      %1249 = vmatmul.mubr.bf16.gmra.mrb[0].mxu0 %v512
      %v1250 = vpop.f32.mrb[0].mxu0
      %v1251 = vadd.f32 %v379, %v1250
      %v1252 = vpop.f32.mrb[0].mxu0
      %v1253 = vadd.f32 %v383, %v1252
      %v1254 = vpop.f32.mrb[0].mxu0
      %v1255 = vadd.f32 %v379, %v1254
      %v1256 = vpop.f32.mrb[0].mxu0
      %v1257 = vadd.f32 %v383, %v1256
      %1258 = vmatprep.mubr.bf16.mxu0 %v515
      %1259 = vmatmul.mubr.bf16.gmra.mrb[0].mxu0 %v514
      %v1260 = vpop.f32.mrb[0].mxu0
      %v1261 = vadd.f32 %v379, %v1260
      %v1262 = vpop.f32.mrb[0].mxu0
      %v1263 = vadd.f32 %v383, %v1262
      %v1264 = vpop.f32.mrb[0].mxu0
      %v1265 = vadd.f32 %v379, %v1264
      %v1266 = vpop.f32.mrb[0].mxu0
      %v1267 = vadd.f32 %v383, %v1266
      %1268 = vmatprep.mubr.bf16.mxu0 %v517
      %1269 = vmatmul.mubr.bf16.gmra.mrb[0].mxu0 %v516
      %v1270 = vpop.f32.mrb[0].mxu0
      %v1271 = vadd.f32 %v379, %v1270
      %v1272 = vpop.f32.mrb[0].mxu0
      %v1273 = vadd.f32 %v383, %v1272
      %v1274 = vpop.f32.mrb[0].mxu0
      %v1275 = vadd.f32 %v379, %v1274
      %v1276 = vpop.f32.mrb[0].mxu0
      %v1277 = vadd.f32 %v383, %v1276
      %1278 = vmatprep.mubr.bf16.mxu0 %v519
      %1279 = vmatmul.mubr.bf16.gmra.mrb[0].mxu0 %v518
      %v1280 = vpop.f32.mrb[0].mxu0
      %v1281 = vadd.f32 %v379, %v1280
      %v1282 = vpop.f32.mrb[0].mxu0
      %v1283 = vadd.f32 %v383, %v1282
      %v1284 = vpop.f32.mrb[0].mxu0
      %v1285 = vadd.f32 %v379, %v1284
      %v1286 = vpop.f32.mrb[0].mxu0
      %v1287 = vadd.f32 %v383, %v1286
      %1288 = vmatprep.mubr.bf16.mxu0 %v521
      %1289 = vmatmul.mubr.bf16.gmra.mrb[0].mxu0 %v520
      %v1290 = vpop.f32.mrb[0].mxu0
      %v1291 = vadd.f32 %v379, %v1290
      %v1292 = vpop.f32.mrb[0].mxu0
      %v1293 = vadd.f32 %v383, %v1292
      %v1294 = vpop.f32.mrb[0].mxu0
      %v1295 = vadd.f32 %v379, %v1294
      %v1296 = vpop.f32.mrb[0].mxu0
      %v1297 = vadd.f32 %v383, %v1296
      %1298 = vmatprep.mubr.bf16.mxu0 %v523
      %1299 = vmatmul.mubr.bf16.gmra.mrb[0].mxu0 %v522
      %v1300 = vpop.f32.mrb[0].mxu0
      %v1301 = vadd.f32 %v379, %v1300
      %v1302 = vpop.f32.mrb[0].mxu0
      %v1303 = vadd.f32 %v383, %v1302
      %v1304 = vpop.f32.mrb[0].mxu0
      %v1305 = vadd.f32 %v379, %v1304
      %v1306 = vpop.f32.mrb[0].mxu0
      %v1307 = vadd.f32 %v383, %v1306
      %1308 = vmatprep.mubr.bf16.mxu0 %v525
      %1309 = vmatmul.mubr.bf16.gmra.mrb[0].mxu0 %v524
      %v1310 = vpop.f32.mrb[0].mxu0
      %v1311 = vadd.f32 %v379, %v1310
      %v1312 = vpop.f32.mrb[0].mxu0
      %v1313 = vadd.f32 %v383, %v1312
      %v1314 = vpop.f32.mrb[0].mxu0
      %v1315 = vadd.f32 %v379, %v1314
      %v1316 = vpop.f32.mrb[0].mxu0
      %v1317 = vadd.f32 %v383, %v1316
      %1318 = vmatprep.mubr.bf16.mxu0 %v527
      %1319 = vmatmul.mubr.bf16.gmra.mrb[0].mxu0 %v526
      %v1320 = vpop.f32.mrb[0].mxu0
      %v1321 = vadd.f32 %v379, %v1320
      %v1322 = vpop.f32.mrb[0].mxu0
      %v1323 = vadd.f32 %v383, %v1322
      %v1324 = vpop.f32.mrb[0].mxu0
      %v1325 = vadd.f32 %v379, %v1324
      %v1326 = vpop.f32.mrb[0].mxu0
      %v1327 = vadd.f32 %v383, %v1326
      %1328 = vmatprep.mubr.bf16.mxu0 %v529
      %1329 = vmatmul.mubr.bf16.gmra.mrb[0].mxu0 %v528
      %v1330 = vpop.f32.mrb[0].mxu0
      %v1331 = vadd.f32 %v379, %v1330
      %v1332 = vpop.f32.mrb[0].mxu0
      %v1333 = vadd.f32 %v383, %v1332
      %v1334 = vpop.f32.mrb[0].mxu0
      %v1335 = vadd.f32 %v379, %v1334
      %v1336 = vpop.f32.mrb[0].mxu0
      %v1337 = vadd.f32 %v383, %v1336
      %1338 = vmatprep.mubr.bf16.mxu0 %v531
      %1339 = vmatmul.mubr.bf16.gmra.mrb[0].mxu0 %v530
      %v1340 = vpop.f32.mrb[0].mxu0
      %v1341 = vadd.f32 %v379, %v1340
      %v1342 = vpop.f32.mrb[0].mxu0
      %v1343 = vadd.f32 %v383, %v1342
      %v1344 = vpop.f32.mrb[0].mxu0
      %v1345 = vadd.f32 %v379, %v1344
      %v1346 = vpop.f32.mrb[0].mxu0
      %v1347 = vadd.f32 %v383, %v1346
      %1348 = vmatprep.mubr.bf16.mxu0 %v533
      %1349 = vmatmul.mubr.bf16.gmra.mrb[0].mxu0 %v532
      %v1350 = vpop.f32.mrb[0].mxu0
      %v1351 = vadd.f32 %v379, %v1350
      %v1352 = vpop.f32.mrb[0].mxu0
      %v1353 = vadd.f32 %v383, %v1352
      %v1354 = vpop.f32.mrb[0].mxu0
      %v1355 = vadd.f32 %v379, %v1354
      %v1356 = vpop.f32.mrb[0].mxu0
      %v1357 = vadd.f32 %v383, %v1356
      %1358 = vmatprep.mubr.bf16.mxu0 %v535
      %1359 = vmatmul.mubr.bf16.gmra.mrb[0].mxu0 %v534
      %v1360 = vpop.f32.mrb[0].mxu0
      %v1361 = vadd.f32 %v379, %v1360
      %v1362 = vpop.f32.mrb[0].mxu0
      %v1363 = vadd.f32 %v383, %v1362
      %v1364 = vpop.f32.mrb[0].mxu0
      %v1365 = vadd.f32 %v379, %v1364
      %v1366 = vpop.f32.mrb[0].mxu0
      %v1367 = vadd.f32 %v383, %v1366
      %1368 = vmatprep.mubr.bf16.mxu0 %v537
      %1369 = vmatmul.mubr.bf16.gmra.mrb[0].mxu0 %v536
      %v1370 = vpop.f32.mrb[0].mxu0
      %v1371 = vadd.f32 %v379, %v1370
      %v1372 = vpop.f32.mrb[0].mxu0
      %v1373 = vadd.f32 %v383, %v1372
      %v1374 = vpop.f32.mrb[0].mxu0
      %v1375 = vadd.f32 %v379, %v1374
      %v1376 = vpop.f32.mrb[0].mxu0
      %v1377 = vadd.f32 %v383, %v1376
      %1378 = vmatprep.mubr.bf16.mxu0 %v539
      %1379 = vmatmul.mubr.bf16.gmra.mrb[0].mxu0 %v538
      %v1380 = vpop.f32.mrb[0].mxu0
      %v1381 = vadd.f32 %v379, %v1380
      %v1382 = vpop.f32.mrb[0].mxu0
      %v1383 = vadd.f32 %v383, %v1382
      %v1384 = vpop.f32.mrb[0].mxu0
      %v1385 = vadd.f32 %v379, %v1384
      %v1386 = vpop.f32.mrb[0].mxu0
      %v1387 = vadd.f32 %v383, %v1386
      %1388 = vmatprep.mubr.bf16.mxu0 %v541
      %1389 = vmatmul.mubr.bf16.gmra.mrb[0].mxu0 %v540
      %v1390 = vpop.f32.mrb[0].mxu0
      %v1391 = vadd.f32 %v379, %v1390
      %v1392 = vpop.f32.mrb[0].mxu0
      %v1393 = vadd.f32 %v383, %v1392
      %v1394 = vpop.f32.mrb[0].mxu0
      %v1395 = vadd.f32 %v379, %v1394
      %v1396 = vpop.f32.mrb[0].mxu0
      %v1397 = vadd.f32 %v383, %v1396
      %1398 = vmatprep.mubr.bf16.mxu0 %v543
      %1399 = vmatmul.mubr.bf16.gmra.mrb[0].mxu0 %v542
      %v1400 = vpop.f32.mrb[0].mxu0
      %v1401 = vadd.f32 %v379, %v1400
      %v1402 = vpop.f32.mrb[0].mxu0
      %v1403 = vadd.f32 %v383, %v1402
      %v1404 = vpop.f32.mrb[0].mxu0
      %v1405 = vadd.f32 %v379, %v1404
      %v1406 = vpop.f32.mrb[0].mxu0
      %v1407 = vadd.f32 %v383, %v1406
      %1408 = vdwg.mxu0
      %1409 = vmatprep.subr.bf16.mxu0 %v963
      %1410 = vmatpush1.bf16.msra.mxu0 %v962
      %1411 = vmatprep.subr.bf16.mxu0 %v971
      %1412 = vmatpush1.bf16.msra.mxu0 %v970
      %1413 = vmatprep.subr.bf16.mxu0 %v979
      %1414 = vmatpush1.bf16.msra.mxu0 %v978
      %1415 = vmatprep.subr.bf16.mxu0 %v987
      %1416 = vmatpush1.bf16.msra.mxu0 %v986
      %1417 = vmatprep.subr.bf16.mxu0 %v995
      %1418 = vmatpush1.bf16.msra.mxu0 %v994
      %1419 = vmatprep.subr.bf16.mxu0 %v1003
      %1420 = vmatpush1.bf16.msra.mxu0 %v1002
      %1421 = vmatprep.subr.bf16.mxu0 %v1011
      %1422 = vmatpush1.bf16.msra.mxu0 %v1010
      %1423 = vmatprep.subr.bf16.mxu0 %v1019
      %1424 = vmatpush1.bf16.msra.mxu0 %v1018
      %1425 = vmatprep.subr.bf16.mxu0 %v1027
      %1426 = vmatpush1.bf16.msra.mxu0 %v1026
      %1427 = vmatprep.subr.bf16.mxu0 %v1035
      %1428 = vmatpush1.bf16.msra.mxu0 %v1034
      %1429 = vmatprep.subr.bf16.mxu0 %v1043
      %1430 = vmatpush1.bf16.msra.mxu0 %v1042
      %1431 = vmatprep.subr.bf16.mxu0 %v1051
      %1432 = vmatpush1.bf16.msra.mxu0 %v1050
      %1433 = vmatprep.subr.bf16.mxu0 %v1059
      %1434 = vmatpush1.bf16.msra.mxu0 %v1058
      %1435 = vmatprep.subr.bf16.mxu0 %v1067
      %1436 = vmatpush1.bf16.msra.mxu0 %v1066
      %1437 = vmatprep.subr.bf16.mxu0 %v1075
      %1438 = vmatpush1.bf16.msra.mxu0 %v1074
      %1439 = vmatprep.subr.bf16.mxu0 %v1083
      %1440 = vmatpush1.bf16.msra.mxu0 %v1082
      %1441 = vmatprep.mubr.bf16.mxu0 %v513
      %1442 = vmatmul.mubr.bf16.gmra.mrb[0].mxu0 %v512
      %v1443 = vpop.f32.mrb[0].mxu0
      %v1444 = vadd.f32 %v387, %v1443
      %v1445 = vpop.f32.mrb[0].mxu0
      %v1446 = vadd.f32 %v391, %v1445
      %v1447 = vpop.f32.mrb[0].mxu0
      %v1448 = vadd.f32 %v387, %v1447
      %v1449 = vpop.f32.mrb[0].mxu0
      %v1450 = vadd.f32 %v391, %v1449
      %1451 = vmatprep.mubr.bf16.mxu0 %v515
      %1452 = vmatmul.mubr.bf16.gmra.mrb[0].mxu0 %v514
      %v1453 = vpop.f32.mrb[0].mxu0
      %v1454 = vadd.f32 %v387, %v1453
      %v1455 = vpop.f32.mrb[0].mxu0
      %v1456 = vadd.f32 %v391, %v1455
      %v1457 = vpop.f32.mrb[0].mxu0
      %v1458 = vadd.f32 %v387, %v1457
      %v1459 = vpop.f32.mrb[0].mxu0
      %v1460 = vadd.f32 %v391, %v1459
      %1461 = vmatprep.mubr.bf16.mxu0 %v517
      %1462 = vmatmul.mubr.bf16.gmra.mrb[0].mxu0 %v516
      %v1463 = vpop.f32.mrb[0].mxu0
      %v1464 = vadd.f32 %v387, %v1463
      %v1465 = vpop.f32.mrb[0].mxu0
      %v1466 = vadd.f32 %v391, %v1465
      %v1467 = vpop.f32.mrb[0].mxu0
      %v1468 = vadd.f32 %v387, %v1467
      %v1469 = vpop.f32.mrb[0].mxu0
      %v1470 = vadd.f32 %v391, %v1469
      %1471 = vmatprep.mubr.bf16.mxu0 %v519
      %1472 = vmatmul.mubr.bf16.gmra.mrb[0].mxu0 %v518
      %v1473 = vpop.f32.mrb[0].mxu0
      %v1474 = vadd.f32 %v387, %v1473
      %v1475 = vpop.f32.mrb[0].mxu0
      %v1476 = vadd.f32 %v391, %v1475
      %v1477 = vpop.f32.mrb[0].mxu0
      %v1478 = vadd.f32 %v387, %v1477
      %v1479 = vpop.f32.mrb[0].mxu0
      %v1480 = vadd.f32 %v391, %v1479
      %1481 = vmatprep.mubr.bf16.mxu0 %v521
      %1482 = vmatmul.mubr.bf16.gmra.mrb[0].mxu0 %v520
      %v1483 = vpop.f32.mrb[0].mxu0
      %v1484 = vadd.f32 %v387, %v1483
      %v1485 = vpop.f32.mrb[0].mxu0
      %v1486 = vadd.f32 %v391, %v1485
      %v1487 = vpop.f32.mrb[0].mxu0
      %v1488 = vadd.f32 %v387, %v1487
      %v1489 = vpop.f32.mrb[0].mxu0
      %v1490 = vadd.f32 %v391, %v1489
      %1491 = vmatprep.mubr.bf16.mxu0 %v523
      %1492 = vmatmul.mubr.bf16.gmra.mrb[0].mxu0 %v522
      %v1493 = vpop.f32.mrb[0].mxu0
      %v1494 = vadd.f32 %v387, %v1493
      %v1495 = vpop.f32.mrb[0].mxu0
      %v1496 = vadd.f32 %v391, %v1495
      %v1497 = vpop.f32.mrb[0].mxu0
      %v1498 = vadd.f32 %v387, %v1497
      %v1499 = vpop.f32.mrb[0].mxu0
      %v1500 = vadd.f32 %v391, %v1499
      %1501 = vmatprep.mubr.bf16.mxu0 %v525
      %1502 = vmatmul.mubr.bf16.gmra.mrb[0].mxu0 %v524
      %v1503 = vpop.f32.mrb[0].mxu0
      %v1504 = vadd.f32 %v387, %v1503
      %v1505 = vpop.f32.mrb[0].mxu0
      %v1506 = vadd.f32 %v391, %v1505
      %v1507 = vpop.f32.mrb[0].mxu0
      %v1508 = vadd.f32 %v387, %v1507
      %v1509 = vpop.f32.mrb[0].mxu0
      %v1510 = vadd.f32 %v391, %v1509
      %1511 = vmatprep.mubr.bf16.mxu0 %v527
      %1512 = vmatmul.mubr.bf16.gmra.mrb[0].mxu0 %v526
      %v1513 = vpop.f32.mrb[0].mxu0
      %v1514 = vadd.f32 %v387, %v1513
      %v1515 = vpop.f32.mrb[0].mxu0
      %v1516 = vadd.f32 %v391, %v1515
      %v1517 = vpop.f32.mrb[0].mxu0
      %v1518 = vadd.f32 %v387, %v1517
      %v1519 = vpop.f32.mrb[0].mxu0
      %v1520 = vadd.f32 %v391, %v1519
      %1521 = vmatprep.mubr.bf16.mxu0 %v529
      %1522 = vmatmul.mubr.bf16.gmra.mrb[0].mxu0 %v528
      %v1523 = vpop.f32.mrb[0].mxu0
      %v1524 = vadd.f32 %v387, %v1523
      %v1525 = vpop.f32.mrb[0].mxu0
      %v1526 = vadd.f32 %v391, %v1525
      %v1527 = vpop.f32.mrb[0].mxu0
      %v1528 = vadd.f32 %v387, %v1527
      %v1529 = vpop.f32.mrb[0].mxu0
      %v1530 = vadd.f32 %v391, %v1529
      %1531 = vmatprep.mubr.bf16.mxu0 %v531
      %1532 = vmatmul.mubr.bf16.gmra.mrb[0].mxu0 %v530
      %v1533 = vpop.f32.mrb[0].mxu0
      %v1534 = vadd.f32 %v387, %v1533
      %v1535 = vpop.f32.mrb[0].mxu0
      %v1536 = vadd.f32 %v391, %v1535
      %v1537 = vpop.f32.mrb[0].mxu0
      %v1538 = vadd.f32 %v387, %v1537
      %v1539 = vpop.f32.mrb[0].mxu0
      %v1540 = vadd.f32 %v391, %v1539
      %1541 = vmatprep.mubr.bf16.mxu0 %v533
      %1542 = vmatmul.mubr.bf16.gmra.mrb[0].mxu0 %v532
      %v1543 = vpop.f32.mrb[0].mxu0
      %v1544 = vadd.f32 %v387, %v1543
      %v1545 = vpop.f32.mrb[0].mxu0
      %v1546 = vadd.f32 %v391, %v1545
      %v1547 = vpop.f32.mrb[0].mxu0
      %v1548 = vadd.f32 %v387, %v1547
      %v1549 = vpop.f32.mrb[0].mxu0
      %v1550 = vadd.f32 %v391, %v1549
      %1551 = vmatprep.mubr.bf16.mxu0 %v535
      %1552 = vmatmul.mubr.bf16.gmra.mrb[0].mxu0 %v534
      %v1553 = vpop.f32.mrb[0].mxu0
      %v1554 = vadd.f32 %v387, %v1553
      %v1555 = vpop.f32.mrb[0].mxu0
      %v1556 = vadd.f32 %v391, %v1555
      %v1557 = vpop.f32.mrb[0].mxu0
      %v1558 = vadd.f32 %v387, %v1557
      %v1559 = vpop.f32.mrb[0].mxu0
      %v1560 = vadd.f32 %v391, %v1559
      %1561 = vmatprep.mubr.bf16.mxu0 %v537
      %1562 = vmatmul.mubr.bf16.gmra.mrb[0].mxu0 %v536
      %v1563 = vpop.f32.mrb[0].mxu0
      %v1564 = vadd.f32 %v387, %v1563
      %v1565 = vpop.f32.mrb[0].mxu0
      %v1566 = vadd.f32 %v391, %v1565
      %v1567 = vpop.f32.mrb[0].mxu0
      %v1568 = vadd.f32 %v387, %v1567
      %v1569 = vpop.f32.mrb[0].mxu0
      %v1570 = vadd.f32 %v391, %v1569
      %1571 = vmatprep.mubr.bf16.mxu0 %v539
      %1572 = vmatmul.mubr.bf16.gmra.mrb[0].mxu0 %v538
      %v1573 = vpop.f32.mrb[0].mxu0
      %v1574 = vadd.f32 %v387, %v1573
      %v1575 = vpop.f32.mrb[0].mxu0
      %v1576 = vadd.f32 %v391, %v1575
      %v1577 = vpop.f32.mrb[0].mxu0
      %v1578 = vadd.f32 %v387, %v1577
      %v1579 = vpop.f32.mrb[0].mxu0
      %v1580 = vadd.f32 %v391, %v1579
      %1581 = vmatprep.mubr.bf16.mxu0 %v541
      %1582 = vmatmul.mubr.bf16.gmra.mrb[0].mxu0 %v540
      %v1583 = vpop.f32.mrb[0].mxu0
      %v1584 = vadd.f32 %v387, %v1583
      %v1585 = vpop.f32.mrb[0].mxu0
      %v1586 = vadd.f32 %v391, %v1585
      %v1587 = vpop.f32.mrb[0].mxu0
      %v1588 = vadd.f32 %v387, %v1587
      %v1589 = vpop.f32.mrb[0].mxu0
      %v1590 = vadd.f32 %v391, %v1589
      %1591 = vmatprep.mubr.bf16.mxu0 %v543
      %1592 = vmatmul.mubr.bf16.gmra.mrb[0].mxu0 %v542
      %v1593 = vpop.f32.mrb[0].mxu0
      %v1594 = vadd.f32 %v387, %v1593
      %v1595 = vpop.f32.mrb[0].mxu0
      %v1596 = vadd.f32 %v391, %v1595
      %v1597 = vpop.f32.mrb[0].mxu0
      %v1598 = vadd.f32 %v387, %v1597
      %v1599 = vpop.f32.mrb[0].mxu0
      %v1600 = vadd.f32 %v391, %v1599
      %1601 = vdwg.mxu0
      %1602 = vmatprep.subr.bf16.mxu0 %v965
      %1603 = vmatpush1.bf16.msra.mxu0 %v964
      %1604 = vmatprep.subr.bf16.mxu0 %v973
      %1605 = vmatpush1.bf16.msra.mxu0 %v972
      %1606 = vmatprep.subr.bf16.mxu0 %v981
      %1607 = vmatpush1.bf16.msra.mxu0 %v980
      %1608 = vmatprep.subr.bf16.mxu0 %v989
      %1609 = vmatpush1.bf16.msra.mxu0 %v988
      %1610 = vmatprep.subr.bf16.mxu0 %v997
      %1611 = vmatpush1.bf16.msra.mxu0 %v996
      %1612 = vmatprep.subr.bf16.mxu0 %v1005
      %1613 = vmatpush1.bf16.msra.mxu0 %v1004
      %1614 = vmatprep.subr.bf16.mxu0 %v1013
      %1615 = vmatpush1.bf16.msra.mxu0 %v1012
      %1616 = vmatprep.subr.bf16.mxu0 %v1021
      %1617 = vmatpush1.bf16.msra.mxu0 %v1020
      %1618 = vmatprep.subr.bf16.mxu0 %v1029
      %1619 = vmatpush1.bf16.msra.mxu0 %v1028
      %1620 = vmatprep.subr.bf16.mxu0 %v1037
      %1621 = vmatpush1.bf16.msra.mxu0 %v1036
      %1622 = vmatprep.subr.bf16.mxu0 %v1045
      %1623 = vmatpush1.bf16.msra.mxu0 %v1044
      %1624 = vmatprep.subr.bf16.mxu0 %v1053
      %1625 = vmatpush1.bf16.msra.mxu0 %v1052
      %1626 = vmatprep.subr.bf16.mxu0 %v1061
      %1627 = vmatpush1.bf16.msra.mxu0 %v1060
      %1628 = vmatprep.subr.bf16.mxu0 %v1069
      %1629 = vmatpush1.bf16.msra.mxu0 %v1068
      %1630 = vmatprep.subr.bf16.mxu0 %v1077
      %1631 = vmatpush1.bf16.msra.mxu0 %v1076
      %1632 = vmatprep.subr.bf16.mxu0 %v1085
      %1633 = vmatpush1.bf16.msra.mxu0 %v1084
      %1634 = vmatprep.mubr.bf16.mxu0 %v513
      %1635 = vmatmul.mubr.bf16.gmra.mrb[0].mxu0 %v512
      %v1636 = vpop.f32.mrb[0].mxu0
      %v1637 = vadd.f32 %v395, %v1636
      %v1638 = vpop.f32.mrb[0].mxu0
      %v1639 = vadd.f32 %v399, %v1638
      %v1640 = vpop.f32.mrb[0].mxu0
      %v1641 = vadd.f32 %v395, %v1640
      %v1642 = vpop.f32.mrb[0].mxu0
      %v1643 = vadd.f32 %v399, %v1642
      %1644 = vmatprep.mubr.bf16.mxu0 %v515
      %1645 = vmatmul.mubr.bf16.gmra.mrb[0].mxu0 %v514
      %v1646 = vpop.f32.mrb[0].mxu0
      %v1647 = vadd.f32 %v395, %v1646
      %v1648 = vpop.f32.mrb[0].mxu0
      %v1649 = vadd.f32 %v399, %v1648
      %v1650 = vpop.f32.mrb[0].mxu0
      %v1651 = vadd.f32 %v395, %v1650
      %v1652 = vpop.f32.mrb[0].mxu0
      %v1653 = vadd.f32 %v399, %v1652
      %1654 = vmatprep.mubr.bf16.mxu0 %v517
      %1655 = vmatmul.mubr.bf16.gmra.mrb[0].mxu0 %v516
      %v1656 = vpop.f32.mrb[0].mxu0
      %v1657 = vadd.f32 %v395, %v1656
      %v1658 = vpop.f32.mrb[0].mxu0
      %v1659 = vadd.f32 %v399, %v1658
      %v1660 = vpop.f32.mrb[0].mxu0
      %v1661 = vadd.f32 %v395, %v1660
      %v1662 = vpop.f32.mrb[0].mxu0
      %v1663 = vadd.f32 %v399, %v1662
      %1664 = vmatprep.mubr.bf16.mxu0 %v519
      %1665 = vmatmul.mubr.bf16.gmra.mrb[0].mxu0 %v518
      %v1666 = vpop.f32.mrb[0].mxu0
      %v1667 = vadd.f32 %v395, %v1666
      %v1668 = vpop.f32.mrb[0].mxu0
      %v1669 = vadd.f32 %v399, %v1668
      %v1670 = vpop.f32.mrb[0].mxu0
      %v1671 = vadd.f32 %v395, %v1670
      %v1672 = vpop.f32.mrb[0].mxu0
      %v1673 = vadd.f32 %v399, %v1672
      %1674 = vmatprep.mubr.bf16.mxu0 %v521
      %1675 = vmatmul.mubr.bf16.gmra.mrb[0].mxu0 %v520
      %v1676 = vpop.f32.mrb[0].mxu0
      %v1677 = vadd.f32 %v395, %v1676
      %v1678 = vpop.f32.mrb[0].mxu0
      %v1679 = vadd.f32 %v399, %v1678
      %v1680 = vpop.f32.mrb[0].mxu0
      %v1681 = vadd.f32 %v395, %v1680
      %v1682 = vpop.f32.mrb[0].mxu0
      %v1683 = vadd.f32 %v399, %v1682
      %1684 = vmatprep.mubr.bf16.mxu0 %v523
      %1685 = vmatmul.mubr.bf16.gmra.mrb[0].mxu0 %v522
      %v1686 = vpop.f32.mrb[0].mxu0
      %v1687 = vadd.f32 %v395, %v1686
      %v1688 = vpop.f32.mrb[0].mxu0
      %v1689 = vadd.f32 %v399, %v1688
      %v1690 = vpop.f32.mrb[0].mxu0
      %v1691 = vadd.f32 %v395, %v1690
      %v1692 = vpop.f32.mrb[0].mxu0
      %v1693 = vadd.f32 %v399, %v1692
      %1694 = vmatprep.mubr.bf16.mxu0 %v525
      %1695 = vmatmul.mubr.bf16.gmra.mrb[0].mxu0 %v524
      %v1696 = vpop.f32.mrb[0].mxu0
      %v1697 = vadd.f32 %v395, %v1696
      %v1698 = vpop.f32.mrb[0].mxu0
      %v1699 = vadd.f32 %v399, %v1698
      %v1700 = vpop.f32.mrb[0].mxu0
      %v1701 = vadd.f32 %v395, %v1700
      %v1702 = vpop.f32.mrb[0].mxu0
      %v1703 = vadd.f32 %v399, %v1702
      %1704 = vmatprep.mubr.bf16.mxu0 %v527
      %1705 = vmatmul.mubr.bf16.gmra.mrb[0].mxu0 %v526
      %v1706 = vpop.f32.mrb[0].mxu0
      %v1707 = vadd.f32 %v395, %v1706
      %v1708 = vpop.f32.mrb[0].mxu0
      %v1709 = vadd.f32 %v399, %v1708
      %v1710 = vpop.f32.mrb[0].mxu0
      %v1711 = vadd.f32 %v395, %v1710
      %v1712 = vpop.f32.mrb[0].mxu0
      %v1713 = vadd.f32 %v399, %v1712
      %1714 = vmatprep.mubr.bf16.mxu0 %v529
      %1715 = vmatmul.mubr.bf16.gmra.mrb[0].mxu0 %v528
      %v1716 = vpop.f32.mrb[0].mxu0
      %v1717 = vadd.f32 %v395, %v1716
      %v1718 = vpop.f32.mrb[0].mxu0
      %v1719 = vadd.f32 %v399, %v1718
      %v1720 = vpop.f32.mrb[0].mxu0
      %v1721 = vadd.f32 %v395, %v1720
      %v1722 = vpop.f32.mrb[0].mxu0
      %v1723 = vadd.f32 %v399, %v1722
      %1724 = vmatprep.mubr.bf16.mxu0 %v531
      %1725 = vmatmul.mubr.bf16.gmra.mrb[0].mxu0 %v530
      %v1726 = vpop.f32.mrb[0].mxu0
      %v1727 = vadd.f32 %v395, %v1726
      %v1728 = vpop.f32.mrb[0].mxu0
      %v1729 = vadd.f32 %v399, %v1728
      %v1730 = vpop.f32.mrb[0].mxu0
      %v1731 = vadd.f32 %v395, %v1730
      %v1732 = vpop.f32.mrb[0].mxu0
      %v1733 = vadd.f32 %v399, %v1732
      %1734 = vmatprep.mubr.bf16.mxu0 %v533
      %1735 = vmatmul.mubr.bf16.gmra.mrb[0].mxu0 %v532
      %v1736 = vpop.f32.mrb[0].mxu0
      %v1737 = vadd.f32 %v395, %v1736
      %v1738 = vpop.f32.mrb[0].mxu0
      %v1739 = vadd.f32 %v399, %v1738
      %v1740 = vpop.f32.mrb[0].mxu0
      %v1741 = vadd.f32 %v395, %v1740
      %v1742 = vpop.f32.mrb[0].mxu0
      %v1743 = vadd.f32 %v399, %v1742
      %1744 = vmatprep.mubr.bf16.mxu0 %v535
      %1745 = vmatmul.mubr.bf16.gmra.mrb[0].mxu0 %v534
      %v1746 = vpop.f32.mrb[0].mxu0
      %v1747 = vadd.f32 %v395, %v1746
      %v1748 = vpop.f32.mrb[0].mxu0
      %v1749 = vadd.f32 %v399, %v1748
      %v1750 = vpop.f32.mrb[0].mxu0
      %v1751 = vadd.f32 %v395, %v1750
      %v1752 = vpop.f32.mrb[0].mxu0
      %v1753 = vadd.f32 %v399, %v1752
      %1754 = vmatprep.mubr.bf16.mxu0 %v537
      %1755 = vmatmul.mubr.bf16.gmra.mrb[0].mxu0 %v536
      %v1756 = vpop.f32.mrb[0].mxu0
      %v1757 = vadd.f32 %v395, %v1756
      %v1758 = vpop.f32.mrb[0].mxu0
      %v1759 = vadd.f32 %v399, %v1758
      %v1760 = vpop.f32.mrb[0].mxu0
      %v1761 = vadd.f32 %v395, %v1760
      %v1762 = vpop.f32.mrb[0].mxu0
      %v1763 = vadd.f32 %v399, %v1762
      %1764 = vmatprep.mubr.bf16.mxu0 %v539
      %1765 = vmatmul.mubr.bf16.gmra.mrb[0].mxu0 %v538
      %v1766 = vpop.f32.mrb[0].mxu0
      %v1767 = vadd.f32 %v395, %v1766
      %v1768 = vpop.f32.mrb[0].mxu0
      %v1769 = vadd.f32 %v399, %v1768
      %v1770 = vpop.f32.mrb[0].mxu0
      %v1771 = vadd.f32 %v395, %v1770
      %v1772 = vpop.f32.mrb[0].mxu0
      %v1773 = vadd.f32 %v399, %v1772
      %1774 = vmatprep.mubr.bf16.mxu0 %v541
      %1775 = vmatmul.mubr.bf16.gmra.mrb[0].mxu0 %v540
      %v1776 = vpop.f32.mrb[0].mxu0
      %v1777 = vadd.f32 %v395, %v1776
      %v1778 = vpop.f32.mrb[0].mxu0
      %v1779 = vadd.f32 %v399, %v1778
      %v1780 = vpop.f32.mrb[0].mxu0
      %v1781 = vadd.f32 %v395, %v1780
      %v1782 = vpop.f32.mrb[0].mxu0
      %v1783 = vadd.f32 %v399, %v1782
      %1784 = vmatprep.mubr.bf16.mxu0 %v543
      %1785 = vmatmul.mubr.bf16.gmra.mrb[0].mxu0 %v542
      %v1786 = vpop.f32.mrb[0].mxu0
      %v1787 = vadd.f32 %v395, %v1786
      %v1788 = vpop.f32.mrb[0].mxu0
      %v1789 = vadd.f32 %v399, %v1788
      %v1790 = vpop.f32.mrb[0].mxu0
      %v1791 = vadd.f32 %v395, %v1790
      %v1792 = vpop.f32.mrb[0].mxu0
      %v1793 = vadd.f32 %v399, %v1792
      %1794 = vdwg.mxu0
      %1795 = vmatprep.subr.bf16.mxu0 %v967
      %1796 = vmatpush1.bf16.msra.mxu0 %v966
      %1797 = vmatprep.subr.bf16.mxu0 %v975
      %1798 = vmatpush1.bf16.msra.mxu0 %v974
      %1799 = vmatprep.subr.bf16.mxu0 %v983
      %1800 = vmatpush1.bf16.msra.mxu0 %v982
      %1801 = vmatprep.subr.bf16.mxu0 %v991
      %1802 = vmatpush1.bf16.msra.mxu0 %v990
      %1803 = vmatprep.subr.bf16.mxu0 %v999
      %1804 = vmatpush1.bf16.msra.mxu0 %v998
      %1805 = vmatprep.subr.bf16.mxu0 %v1007
      %1806 = vmatpush1.bf16.msra.mxu0 %v1006
      %1807 = vmatprep.subr.bf16.mxu0 %v1015
      %1808 = vmatpush1.bf16.msra.mxu0 %v1014
      %1809 = vmatprep.subr.bf16.mxu0 %v1023
      %1810 = vmatpush1.bf16.msra.mxu0 %v1022
      %1811 = vmatprep.subr.bf16.mxu0 %v1031
      %1812 = vmatpush1.bf16.msra.mxu0 %v1030
      %1813 = vmatprep.subr.bf16.mxu0 %v1039
      %1814 = vmatpush1.bf16.msra.mxu0 %v1038
      %1815 = vmatprep.subr.bf16.mxu0 %v1047
      %1816 = vmatpush1.bf16.msra.mxu0 %v1046
      %1817 = vmatprep.subr.bf16.mxu0 %v1055
      %1818 = vmatpush1.bf16.msra.mxu0 %v1054
      %1819 = vmatprep.subr.bf16.mxu0 %v1063
      %1820 = vmatpush1.bf16.msra.mxu0 %v1062
      %1821 = vmatprep.subr.bf16.mxu0 %v1071
      %1822 = vmatpush1.bf16.msra.mxu0 %v1070
      %1823 = vmatprep.subr.bf16.mxu0 %v1079
      %1824 = vmatpush1.bf16.msra.mxu0 %v1078
      %1825 = vmatprep.subr.bf16.mxu0 %v1087
      %1826 = vmatpush1.bf16.msra.mxu0 %v1086
      %1827 = vmatprep.mubr.bf16.mxu0 %v513
      %1828 = vmatmul.mubr.bf16.gmra.mrb[0].mxu0 %v512
      %v1829 = vpop.f32.mrb[0].mxu0
      %v1830 = vadd.f32 %v403, %v1829
      %v1831 = vpop.f32.mrb[0].mxu0
      %v1832 = vadd.f32 %v407, %v1831
      %v1833 = vpop.f32.mrb[0].mxu0
      %v1834 = vadd.f32 %v403, %v1833
      %v1835 = vpop.f32.mrb[0].mxu0
      %v1836 = vadd.f32 %v407, %v1835
      %1837 = vmatprep.mubr.bf16.mxu0 %v515
      %1838 = vmatmul.mubr.bf16.gmra.mrb[0].mxu0 %v514
      %v1839 = vpop.f32.mrb[0].mxu0
      %v1840 = vadd.f32 %v403, %v1839
      %v1841 = vpop.f32.mrb[0].mxu0
      %v1842 = vadd.f32 %v407, %v1841
      %v1843 = vpop.f32.mrb[0].mxu0
      %v1844 = vadd.f32 %v403, %v1843
      %v1845 = vpop.f32.mrb[0].mxu0
      %v1846 = vadd.f32 %v407, %v1845
      %1847 = vmatprep.mubr.bf16.mxu0 %v517
      %1848 = vmatmul.mubr.bf16.gmra.mrb[0].mxu0 %v516
      %v1849 = vpop.f32.mrb[0].mxu0
      %v1850 = vadd.f32 %v403, %v1849
      %v1851 = vpop.f32.mrb[0].mxu0
      %v1852 = vadd.f32 %v407, %v1851
      %v1853 = vpop.f32.mrb[0].mxu0
      %v1854 = vadd.f32 %v403, %v1853
      %v1855 = vpop.f32.mrb[0].mxu0
      %v1856 = vadd.f32 %v407, %v1855
      %1857 = vmatprep.mubr.bf16.mxu0 %v519
      %1858 = vmatmul.mubr.bf16.gmra.mrb[0].mxu0 %v518
      %v1859 = vpop.f32.mrb[0].mxu0
      %v1860 = vadd.f32 %v403, %v1859
      %v1861 = vpop.f32.mrb[0].mxu0
      %v1862 = vadd.f32 %v407, %v1861
      %v1863 = vpop.f32.mrb[0].mxu0
      %v1864 = vadd.f32 %v403, %v1863
      %v1865 = vpop.f32.mrb[0].mxu0
      %v1866 = vadd.f32 %v407, %v1865
      %1867 = vmatprep.mubr.bf16.mxu0 %v521
      %1868 = vmatmul.mubr.bf16.gmra.mrb[0].mxu0 %v520
      %v1869 = vpop.f32.mrb[0].mxu0
      %v1870 = vadd.f32 %v403, %v1869
      %v1871 = vpop.f32.mrb[0].mxu0
      %v1872 = vadd.f32 %v407, %v1871
      %v1873 = vpop.f32.mrb[0].mxu0
      %v1874 = vadd.f32 %v403, %v1873
      %v1875 = vpop.f32.mrb[0].mxu0
      %v1876 = vadd.f32 %v407, %v1875
      %1877 = vmatprep.mubr.bf16.mxu0 %v523
      %1878 = vmatmul.mubr.bf16.gmra.mrb[0].mxu0 %v522
      %v1879 = vpop.f32.mrb[0].mxu0
      %v1880 = vadd.f32 %v403, %v1879
      %v1881 = vpop.f32.mrb[0].mxu0
      %v1882 = vadd.f32 %v407, %v1881
      %v1883 = vpop.f32.mrb[0].mxu0
      %v1884 = vadd.f32 %v403, %v1883
      %v1885 = vpop.f32.mrb[0].mxu0
      %v1886 = vadd.f32 %v407, %v1885
      %1887 = vmatprep.mubr.bf16.mxu0 %v525
      %1888 = vmatmul.mubr.bf16.gmra.mrb[0].mxu0 %v524
      %v1889 = vpop.f32.mrb[0].mxu0
      %v1890 = vadd.f32 %v403, %v1889
      %v1891 = vpop.f32.mrb[0].mxu0
      %v1892 = vadd.f32 %v407, %v1891
      %v1893 = vpop.f32.mrb[0].mxu0
      %v1894 = vadd.f32 %v403, %v1893
      %v1895 = vpop.f32.mrb[0].mxu0
      %v1896 = vadd.f32 %v407, %v1895
      %1897 = vmatprep.mubr.bf16.mxu0 %v527
      %1898 = vmatmul.mubr.bf16.gmra.mrb[0].mxu0 %v526
      %v1899 = vpop.f32.mrb[0].mxu0
      %v1900 = vadd.f32 %v403, %v1899
      %v1901 = vpop.f32.mrb[0].mxu0
      %v1902 = vadd.f32 %v407, %v1901
      %v1903 = vpop.f32.mrb[0].mxu0
      %v1904 = vadd.f32 %v403, %v1903
      %v1905 = vpop.f32.mrb[0].mxu0
      %v1906 = vadd.f32 %v407, %v1905
      %1907 = vmatprep.mubr.bf16.mxu0 %v529
      %1908 = vmatmul.mubr.bf16.gmra.mrb[0].mxu0 %v528
      %v1909 = vpop.f32.mrb[0].mxu0
      %v1910 = vadd.f32 %v403, %v1909
      %v1911 = vpop.f32.mrb[0].mxu0
      %v1912 = vadd.f32 %v407, %v1911
      %v1913 = vpop.f32.mrb[0].mxu0
      %v1914 = vadd.f32 %v403, %v1913
      %v1915 = vpop.f32.mrb[0].mxu0
      %v1916 = vadd.f32 %v407, %v1915
      %1917 = vmatprep.mubr.bf16.mxu0 %v531
      %1918 = vmatmul.mubr.bf16.gmra.mrb[0].mxu0 %v530
      %v1919 = vpop.f32.mrb[0].mxu0
      %v1920 = vadd.f32 %v403, %v1919
      %v1921 = vpop.f32.mrb[0].mxu0
      %v1922 = vadd.f32 %v407, %v1921
      %v1923 = vpop.f32.mrb[0].mxu0
      %v1924 = vadd.f32 %v403, %v1923
      %v1925 = vpop.f32.mrb[0].mxu0
      %v1926 = vadd.f32 %v407, %v1925
      %1927 = vmatprep.mubr.bf16.mxu0 %v533
      %1928 = vmatmul.mubr.bf16.gmra.mrb[0].mxu0 %v532
      %v1929 = vpop.f32.mrb[0].mxu0
      %v1930 = vadd.f32 %v403, %v1929
      %v1931 = vpop.f32.mrb[0].mxu0
      %v1932 = vadd.f32 %v407, %v1931
      %v1933 = vpop.f32.mrb[0].mxu0
      %v1934 = vadd.f32 %v403, %v1933
      %v1935 = vpop.f32.mrb[0].mxu0
      %v1936 = vadd.f32 %v407, %v1935
      %1937 = vmatprep.mubr.bf16.mxu0 %v535
      %1938 = vmatmul.mubr.bf16.gmra.mrb[0].mxu0 %v534
      %v1939 = vpop.f32.mrb[0].mxu0
      %v1940 = vadd.f32 %v403, %v1939
      %v1941 = vpop.f32.mrb[0].mxu0
      %v1942 = vadd.f32 %v407, %v1941
      %v1943 = vpop.f32.mrb[0].mxu0
      %v1944 = vadd.f32 %v403, %v1943
      %v1945 = vpop.f32.mrb[0].mxu0
      %v1946 = vadd.f32 %v407, %v1945
      %1947 = vmatprep.mubr.bf16.mxu0 %v537
      %1948 = vmatmul.mubr.bf16.gmra.mrb[0].mxu0 %v536
      %v1949 = vpop.f32.mrb[0].mxu0
      %v1950 = vadd.f32 %v403, %v1949
      %v1951 = vpop.f32.mrb[0].mxu0
      %v1952 = vadd.f32 %v407, %v1951
      %v1953 = vpop.f32.mrb[0].mxu0
      %v1954 = vadd.f32 %v403, %v1953
      %v1955 = vpop.f32.mrb[0].mxu0
      %v1956 = vadd.f32 %v407, %v1955
      %1957 = vmatprep.mubr.bf16.mxu0 %v539
      %1958 = vmatmul.mubr.bf16.gmra.mrb[0].mxu0 %v538
      %v1959 = vpop.f32.mrb[0].mxu0
      %v1960 = vadd.f32 %v403, %v1959
      %v1961 = vpop.f32.mrb[0].mxu0
      %v1962 = vadd.f32 %v407, %v1961
      %v1963 = vpop.f32.mrb[0].mxu0
      %v1964 = vadd.f32 %v403, %v1963
      %v1965 = vpop.f32.mrb[0].mxu0
      %v1966 = vadd.f32 %v407, %v1965
      %1967 = vmatprep.mubr.bf16.mxu0 %v541
      %1968 = vmatmul.mubr.bf16.gmra.mrb[0].mxu0 %v540
      %v1969 = vpop.f32.mrb[0].mxu0
      %v1970 = vadd.f32 %v403, %v1969
      %v1971 = vpop.f32.mrb[0].mxu0
      %v1972 = vadd.f32 %v407, %v1971
      %v1973 = vpop.f32.mrb[0].mxu0
      %v1974 = vadd.f32 %v403, %v1973
      %v1975 = vpop.f32.mrb[0].mxu0
      %v1976 = vadd.f32 %v407, %v1975
      %1977 = vmatprep.mubr.bf16.mxu0 %v543
      %1978 = vmatmul.mubr.bf16.gmra.mrb[0].mxu0 %v542
      %v1979 = vpop.f32.mrb[0].mxu0
      %v1980 = vadd.f32 %v403, %v1979
      %v1981 = vpop.f32.mrb[0].mxu0
      %v1982 = vadd.f32 %v407, %v1981
      %v1983 = vpop.f32.mrb[0].mxu0
      %v1984 = vadd.f32 %v403, %v1983
      %v1985 = vpop.f32.mrb[0].mxu0
      %v1986 = vadd.f32 %v407, %v1985
      %1987 = vdwg.mxu0
      %v1988 = vmax.f32 %v1251, 0.0
      %v1989 = vmax.f32 %v1253, 0.0
      %v1990 = vmax.f32 %v1444, 0.0
      %v1991 = vmax.f32 %v1446, 0.0
      %v1992 = vmax.f32 %v1637, 0.0
      %v1993 = vmax.f32 %v1639, 0.0
      %v1994 = vmax.f32 %v1830, 0.0
      %v1995 = vmax.f32 %v1832, 0.0
      %v1996 = vmax.f32 %v1255, 0.0
      %v1997 = vmax.f32 %v1257, 0.0
      %v1998 = vmax.f32 %v1448, 0.0
      %v1999 = vmax.f32 %v1450, 0.0
      %v2000 = vmax.f32 %v1641, 0.0
      %v2001 = vmax.f32 %v1643, 0.0
      %v2002 = vmax.f32 %v1834, 0.0
      %v2003 = vmax.f32 %v1836, 0.0
      %v2004 = vmax.f32 %v1261, 0.0
      %v2005 = vmax.f32 %v1263, 0.0
      %v2006 = vmax.f32 %v1454, 0.0
      %v2007 = vmax.f32 %v1456, 0.0
      %v2008 = vmax.f32 %v1647, 0.0
      %v2009 = vmax.f32 %v1649, 0.0
      %v2010 = vmax.f32 %v1840, 0.0
      %v2011 = vmax.f32 %v1842, 0.0
      %v2012 = vmax.f32 %v1265, 0.0
      %v2013 = vmax.f32 %v1267, 0.0
      %v2014 = vmax.f32 %v1458, 0.0
      %v2015 = vmax.f32 %v1460, 0.0
      %v2016 = vmax.f32 %v1651, 0.0
      %v2017 = vmax.f32 %v1653, 0.0
      %v2018 = vmax.f32 %v1844, 0.0
      %v2019 = vmax.f32 %v1846, 0.0
      %v2020 = vmax.f32 %v1271, 0.0
      %v2021 = vmax.f32 %v1273, 0.0
      %v2022 = vmax.f32 %v1464, 0.0
      %v2023 = vmax.f32 %v1466, 0.0
      %v2024 = vmax.f32 %v1657, 0.0
      %v2025 = vmax.f32 %v1659, 0.0
      %v2026 = vmax.f32 %v1850, 0.0
      %v2027 = vmax.f32 %v1852, 0.0
      %v2028 = vmax.f32 %v1275, 0.0
      %v2029 = vmax.f32 %v1277, 0.0
      %v2030 = vmax.f32 %v1468, 0.0
      %v2031 = vmax.f32 %v1470, 0.0
      %v2032 = vmax.f32 %v1661, 0.0
      %v2033 = vmax.f32 %v1663, 0.0
      %v2034 = vmax.f32 %v1854, 0.0
      %v2035 = vmax.f32 %v1856, 0.0
      %v2036 = vmax.f32 %v1281, 0.0
      %v2037 = vmax.f32 %v1283, 0.0
      %v2038 = vmax.f32 %v1474, 0.0
      %v2039 = vmax.f32 %v1476, 0.0
      %v2040 = vmax.f32 %v1667, 0.0
      %v2041 = vmax.f32 %v1669, 0.0
      %v2042 = vmax.f32 %v1860, 0.0
      %v2043 = vmax.f32 %v1862, 0.0
      %v2044 = vmax.f32 %v1285, 0.0
      %v2045 = vmax.f32 %v1287, 0.0
      %v2046 = vmax.f32 %v1478, 0.0
      %v2047 = vmax.f32 %v1480, 0.0
      %v2048 = vmax.f32 %v1671, 0.0
      %v2049 = vmax.f32 %v1673, 0.0
      %v2050 = vmax.f32 %v1864, 0.0
      %v2051 = vmax.f32 %v1866, 0.0
      %v2052 = vmax.f32 %v1291, 0.0
      %v2053 = vmax.f32 %v1293, 0.0
      %v2054 = vmax.f32 %v1484, 0.0
      %v2055 = vmax.f32 %v1486, 0.0
      %v2056 = vmax.f32 %v1677, 0.0
      %v2057 = vmax.f32 %v1679, 0.0
      %v2058 = vmax.f32 %v1870, 0.0
      %v2059 = vmax.f32 %v1872, 0.0
      %v2060 = vmax.f32 %v1295, 0.0
      %v2061 = vmax.f32 %v1297, 0.0
      %v2062 = vmax.f32 %v1488, 0.0
      %v2063 = vmax.f32 %v1490, 0.0
      %v2064 = vmax.f32 %v1681, 0.0
      %v2065 = vmax.f32 %v1683, 0.0
      %v2066 = vmax.f32 %v1874, 0.0
      %v2067 = vmax.f32 %v1876, 0.0
      %v2068 = vmax.f32 %v1301, 0.0
      %v2069 = vmax.f32 %v1303, 0.0
      %v2070 = vmax.f32 %v1494, 0.0
      %v2071 = vmax.f32 %v1496, 0.0
      %v2072 = vmax.f32 %v1687, 0.0
      %v2073 = vmax.f32 %v1689, 0.0
      %v2074 = vmax.f32 %v1880, 0.0
      %v2075 = vmax.f32 %v1882, 0.0
      %v2076 = vmax.f32 %v1305, 0.0
      %v2077 = vmax.f32 %v1307, 0.0
      %v2078 = vmax.f32 %v1498, 0.0
      %v2079 = vmax.f32 %v1500, 0.0
      %v2080 = vmax.f32 %v1691, 0.0
      %v2081 = vmax.f32 %v1693, 0.0
      %v2082 = vmax.f32 %v1884, 0.0
      %v2083 = vmax.f32 %v1886, 0.0
      %v2084 = vmax.f32 %v1311, 0.0
      %v2085 = vmax.f32 %v1313, 0.0
      %v2086 = vmax.f32 %v1504, 0.0
      %v2087 = vmax.f32 %v1506, 0.0
      %v2088 = vmax.f32 %v1697, 0.0
      %v2089 = vmax.f32 %v1699, 0.0
      %v2090 = vmax.f32 %v1890, 0.0
      %v2091 = vmax.f32 %v1892, 0.0
      %v2092 = vmax.f32 %v1315, 0.0
      %v2093 = vmax.f32 %v1317, 0.0
      %v2094 = vmax.f32 %v1508, 0.0
      %v2095 = vmax.f32 %v1510, 0.0
      %v2096 = vmax.f32 %v1701, 0.0
      %v2097 = vmax.f32 %v1703, 0.0
      %v2098 = vmax.f32 %v1894, 0.0
      %v2099 = vmax.f32 %v1896, 0.0
      %v2100 = vmax.f32 %v1321, 0.0
      %v2101 = vmax.f32 %v1323, 0.0
      %v2102 = vmax.f32 %v1514, 0.0
      %v2103 = vmax.f32 %v1516, 0.0
      %v2104 = vmax.f32 %v1707, 0.0
      %v2105 = vmax.f32 %v1709, 0.0
      %v2106 = vmax.f32 %v1900, 0.0
      %v2107 = vmax.f32 %v1902, 0.0
      %v2108 = vmax.f32 %v1325, 0.0
      %v2109 = vmax.f32 %v1327, 0.0
      %v2110 = vmax.f32 %v1518, 0.0
      %v2111 = vmax.f32 %v1520, 0.0
      %v2112 = vmax.f32 %v1711, 0.0
      %v2113 = vmax.f32 %v1713, 0.0
      %v2114 = vmax.f32 %v1904, 0.0
      %v2115 = vmax.f32 %v1906, 0.0
      %v2116 = vmax.f32 %v1331, 0.0
      %v2117 = vmax.f32 %v1333, 0.0
      %v2118 = vmax.f32 %v1524, 0.0
      %v2119 = vmax.f32 %v1526, 0.0
      %v2120 = vmax.f32 %v1717, 0.0
      %v2121 = vmax.f32 %v1719, 0.0
      %v2122 = vmax.f32 %v1910, 0.0
      %v2123 = vmax.f32 %v1912, 0.0
      %v2124 = vmax.f32 %v1335, 0.0
      %v2125 = vmax.f32 %v1337, 0.0
      %v2126 = vmax.f32 %v1528, 0.0
      %v2127 = vmax.f32 %v1530, 0.0
      %v2128 = vmax.f32 %v1721, 0.0
      %v2129 = vmax.f32 %v1723, 0.0
      %v2130 = vmax.f32 %v1914, 0.0
      %v2131 = vmax.f32 %v1916, 0.0
      %v2132 = vmax.f32 %v1341, 0.0
      %v2133 = vmax.f32 %v1343, 0.0
      %v2134 = vmax.f32 %v1534, 0.0
      %v2135 = vmax.f32 %v1536, 0.0
      %v2136 = vmax.f32 %v1727, 0.0
      %v2137 = vmax.f32 %v1729, 0.0
      %v2138 = vmax.f32 %v1920, 0.0
      %v2139 = vmax.f32 %v1922, 0.0
      %v2140 = vmax.f32 %v1345, 0.0
      %v2141 = vmax.f32 %v1347, 0.0
      %v2142 = vmax.f32 %v1538, 0.0
      %v2143 = vmax.f32 %v1540, 0.0
      %v2144 = vmax.f32 %v1731, 0.0
      %v2145 = vmax.f32 %v1733, 0.0
      %v2146 = vmax.f32 %v1924, 0.0
      %v2147 = vmax.f32 %v1926, 0.0
      %v2148 = vmax.f32 %v1351, 0.0
      %v2149 = vmax.f32 %v1353, 0.0
      %v2150 = vmax.f32 %v1544, 0.0
      %v2151 = vmax.f32 %v1546, 0.0
      %v2152 = vmax.f32 %v1737, 0.0
      %v2153 = vmax.f32 %v1739, 0.0
      %v2154 = vmax.f32 %v1930, 0.0
      %v2155 = vmax.f32 %v1932, 0.0
      %v2156 = vmax.f32 %v1355, 0.0
      %v2157 = vmax.f32 %v1357, 0.0
      %v2158 = vmax.f32 %v1548, 0.0
      %v2159 = vmax.f32 %v1550, 0.0
      %v2160 = vmax.f32 %v1741, 0.0
      %v2161 = vmax.f32 %v1743, 0.0
      %v2162 = vmax.f32 %v1934, 0.0
      %v2163 = vmax.f32 %v1936, 0.0
      %v2164 = vmax.f32 %v1361, 0.0
      %v2165 = vmax.f32 %v1363, 0.0
      %v2166 = vmax.f32 %v1554, 0.0
      %v2167 = vmax.f32 %v1556, 0.0
      %v2168 = vmax.f32 %v1747, 0.0
      %v2169 = vmax.f32 %v1749, 0.0
      %v2170 = vmax.f32 %v1940, 0.0
      %v2171 = vmax.f32 %v1942, 0.0
      %v2172 = vmax.f32 %v1365, 0.0
      %v2173 = vmax.f32 %v1367, 0.0
      %v2174 = vmax.f32 %v1558, 0.0
      %v2175 = vmax.f32 %v1560, 0.0
      %v2176 = vmax.f32 %v1751, 0.0
      %v2177 = vmax.f32 %v1753, 0.0
      %v2178 = vmax.f32 %v1944, 0.0
      %v2179 = vmax.f32 %v1946, 0.0
      %v2180 = vmax.f32 %v1371, 0.0
      %v2181 = vmax.f32 %v1373, 0.0
      %v2182 = vmax.f32 %v1564, 0.0
      %v2183 = vmax.f32 %v1566, 0.0
      %v2184 = vmax.f32 %v1757, 0.0
      %v2185 = vmax.f32 %v1759, 0.0
      %v2186 = vmax.f32 %v1950, 0.0
      %v2187 = vmax.f32 %v1952, 0.0
      %v2188 = vmax.f32 %v1375, 0.0
      %v2189 = vmax.f32 %v1377, 0.0
      %v2190 = vmax.f32 %v1568, 0.0
      %v2191 = vmax.f32 %v1570, 0.0
      %v2192 = vmax.f32 %v1761, 0.0
      %v2193 = vmax.f32 %v1763, 0.0
      %v2194 = vmax.f32 %v1954, 0.0
      %v2195 = vmax.f32 %v1956, 0.0
      %v2196 = vmax.f32 %v1381, 0.0
      %v2197 = vmax.f32 %v1383, 0.0
      %v2198 = vmax.f32 %v1574, 0.0
      %v2199 = vmax.f32 %v1576, 0.0
      %v2200 = vmax.f32 %v1767, 0.0
      %v2201 = vmax.f32 %v1769, 0.0
      %v2202 = vmax.f32 %v1960, 0.0
      %v2203 = vmax.f32 %v1962, 0.0
      %v2204 = vmax.f32 %v1385, 0.0
      %v2205 = vmax.f32 %v1387, 0.0
      %v2206 = vmax.f32 %v1578, 0.0
      %v2207 = vmax.f32 %v1580, 0.0
      %v2208 = vmax.f32 %v1771, 0.0
      %v2209 = vmax.f32 %v1773, 0.0
      %v2210 = vmax.f32 %v1964, 0.0
      %v2211 = vmax.f32 %v1966, 0.0
      %v2212 = vmax.f32 %v1391, 0.0
      %v2213 = vmax.f32 %v1393, 0.0
      %v2214 = vmax.f32 %v1584, 0.0
      %v2215 = vmax.f32 %v1586, 0.0
      %v2216 = vmax.f32 %v1777, 0.0
      %v2217 = vmax.f32 %v1779, 0.0
      %v2218 = vmax.f32 %v1970, 0.0
      %v2219 = vmax.f32 %v1972, 0.0
      %v2220 = vmax.f32 %v1395, 0.0
      %v2221 = vmax.f32 %v1397, 0.0
      %v2222 = vmax.f32 %v1588, 0.0
      %v2223 = vmax.f32 %v1590, 0.0
      %v2224 = vmax.f32 %v1781, 0.0
      %v2225 = vmax.f32 %v1783, 0.0
      %v2226 = vmax.f32 %v1974, 0.0
      %v2227 = vmax.f32 %v1976, 0.0
      %v2228 = vmax.f32 %v1401, 0.0
      %v2229 = vmax.f32 %v1403, 0.0
      %v2230 = vmax.f32 %v1594, 0.0
      %v2231 = vmax.f32 %v1596, 0.0
      %v2232 = vmax.f32 %v1787, 0.0
      %v2233 = vmax.f32 %v1789, 0.0
      %v2234 = vmax.f32 %v1980, 0.0
      %v2235 = vmax.f32 %v1982, 0.0
      %v2236 = vmax.f32 %v1405, 0.0
      %v2237 = vmax.f32 %v1407, 0.0
      %v2238 = vmax.f32 %v1598, 0.0
      %v2239 = vmax.f32 %v1600, 0.0
      %v2240 = vmax.f32 %v1791, 0.0
      %v2241 = vmax.f32 %v1793, 0.0
      %v2242 = vmax.f32 %v1984, 0.0
      %v2243 = vmax.f32 %v1986, 0.0
      %v2244 = vadd.f32 %v1988, %v1996
      %v2245 = vadd.f32 %v2244, %v2004
      %v2246 = vadd.f32 %v2245, %v2012
      %v2247 = vadd.f32 %v2246, %v2020
      %v2248 = vadd.f32 %v2247, %v2028
      %v2249 = vadd.f32 %v2248, %v2036
      %v2250 = vadd.f32 %v2249, %v2044
      %v2251 = vadd.f32 %v2250, %v2052
      %v2252 = vadd.f32 %v2251, %v2060
      %v2253 = vadd.f32 %v2252, %v2068
      %v2254 = vadd.f32 %v2253, %v2076
      %v2255 = vadd.f32 %v2254, %v2084
      %v2256 = vadd.f32 %v2255, %v2092
      %v2257 = vadd.f32 %v2256, %v2100
      %v2258 = vadd.f32 %v2257, %v2108
      %v2259 = vadd.f32 %v2258, %v2116
      %v2260 = vadd.f32 %v2259, %v2124
      %v2261 = vadd.f32 %v2260, %v2132
      %v2262 = vadd.f32 %v2261, %v2140
      %v2263 = vadd.f32 %v2262, %v2148
      %v2264 = vadd.f32 %v2263, %v2156
      %v2265 = vadd.f32 %v2264, %v2164
      %v2266 = vadd.f32 %v2265, %v2172
      %v2267 = vadd.f32 %v2266, %v2180
      %v2268 = vadd.f32 %v2267, %v2188
      %v2269 = vadd.f32 %v2268, %v2196
      %v2270 = vadd.f32 %v2269, %v2204
      %v2271 = vadd.f32 %v2270, %v2212
      %v2272 = vadd.f32 %v2271, %v2220
      %v2273 = vadd.f32 %v2272, %v2228
      %v2274 = vadd.f32 %v2273, %v2236
      %v2275 = vadd.f32 %v1989, %v1997
      %v2276 = vadd.f32 %v2275, %v2005
      %v2277 = vadd.f32 %v2276, %v2013
      %v2278 = vadd.f32 %v2277, %v2021
      %v2279 = vadd.f32 %v2278, %v2029
      %v2280 = vadd.f32 %v2279, %v2037
      %v2281 = vadd.f32 %v2280, %v2045
      %v2282 = vadd.f32 %v2281, %v2053
      %v2283 = vadd.f32 %v2282, %v2061
      %v2284 = vadd.f32 %v2283, %v2069
      %v2285 = vadd.f32 %v2284, %v2077
      %v2286 = vadd.f32 %v2285, %v2085
      %v2287 = vadd.f32 %v2286, %v2093
      %v2288 = vadd.f32 %v2287, %v2101
      %v2289 = vadd.f32 %v2288, %v2109
      %v2290 = vadd.f32 %v2289, %v2117
      %v2291 = vadd.f32 %v2290, %v2125
      %v2292 = vadd.f32 %v2291, %v2133
      %v2293 = vadd.f32 %v2292, %v2141
      %v2294 = vadd.f32 %v2293, %v2149
      %v2295 = vadd.f32 %v2294, %v2157
      %v2296 = vadd.f32 %v2295, %v2165
      %v2297 = vadd.f32 %v2296, %v2173
      %v2298 = vadd.f32 %v2297, %v2181
      %v2299 = vadd.f32 %v2298, %v2189
      %v2300 = vadd.f32 %v2299, %v2197
      %v2301 = vadd.f32 %v2300, %v2205
      %v2302 = vadd.f32 %v2301, %v2213
      %v2303 = vadd.f32 %v2302, %v2221
      %v2304 = vadd.f32 %v2303, %v2229
      %v2305 = vadd.f32 %v2304, %v2237
      %v2306 = vadd.f32 %v1990, %v1998
      %v2307 = vadd.f32 %v2306, %v2006
      %v2308 = vadd.f32 %v2307, %v2014
      %v2309 = vadd.f32 %v2308, %v2022
      %v2310 = vadd.f32 %v2309, %v2030
      %v2311 = vadd.f32 %v2310, %v2038
      %v2312 = vadd.f32 %v2311, %v2046
      %v2313 = vadd.f32 %v2312, %v2054
      %v2314 = vadd.f32 %v2313, %v2062
      %v2315 = vadd.f32 %v2314, %v2070
      %v2316 = vadd.f32 %v2315, %v2078
      %v2317 = vadd.f32 %v2316, %v2086
      %v2318 = vadd.f32 %v2317, %v2094
      %v2319 = vadd.f32 %v2318, %v2102
      %v2320 = vadd.f32 %v2319, %v2110
      %v2321 = vadd.f32 %v2320, %v2118
      %v2322 = vadd.f32 %v2321, %v2126
      %v2323 = vadd.f32 %v2322, %v2134
      %v2324 = vadd.f32 %v2323, %v2142
      %v2325 = vadd.f32 %v2324, %v2150
      %v2326 = vadd.f32 %v2325, %v2158
      %v2327 = vadd.f32 %v2326, %v2166
      %v2328 = vadd.f32 %v2327, %v2174
      %v2329 = vadd.f32 %v2328, %v2182
      %v2330 = vadd.f32 %v2329, %v2190
      %v2331 = vadd.f32 %v2330, %v2198
      %v2332 = vadd.f32 %v2331, %v2206
      %v2333 = vadd.f32 %v2332, %v2214
      %v2334 = vadd.f32 %v2333, %v2222
      %v2335 = vadd.f32 %v2334, %v2230
      %v2336 = vadd.f32 %v2335, %v2238
      %v2337 = vadd.f32 %v1991, %v1999
      %v2338 = vadd.f32 %v2337, %v2007
      %v2339 = vadd.f32 %v2338, %v2015
      %v2340 = vadd.f32 %v2339, %v2023
      %v2341 = vadd.f32 %v2340, %v2031
      %v2342 = vadd.f32 %v2341, %v2039
      %v2343 = vadd.f32 %v2342, %v2047
      %v2344 = vadd.f32 %v2343, %v2055
      %v2345 = vadd.f32 %v2344, %v2063
      %v2346 = vadd.f32 %v2345, %v2071
      %v2347 = vadd.f32 %v2346, %v2079
      %v2348 = vadd.f32 %v2347, %v2087
      %v2349 = vadd.f32 %v2348, %v2095
      %v2350 = vadd.f32 %v2349, %v2103
      %v2351 = vadd.f32 %v2350, %v2111
      %v2352 = vadd.f32 %v2351, %v2119
      %v2353 = vadd.f32 %v2352, %v2127
      %v2354 = vadd.f32 %v2353, %v2135
      %v2355 = vadd.f32 %v2354, %v2143
      %v2356 = vadd.f32 %v2355, %v2151
      %v2357 = vadd.f32 %v2356, %v2159
      %v2358 = vadd.f32 %v2357, %v2167
      %v2359 = vadd.f32 %v2358, %v2175
      %v2360 = vadd.f32 %v2359, %v2183
      %v2361 = vadd.f32 %v2360, %v2191
      %v2362 = vadd.f32 %v2361, %v2199
      %v2363 = vadd.f32 %v2362, %v2207
      %v2364 = vadd.f32 %v2363, %v2215
      %v2365 = vadd.f32 %v2364, %v2223
      %v2366 = vadd.f32 %v2365, %v2231
      %v2367 = vadd.f32 %v2366, %v2239
      %v2368 = vadd.f32 %v1992, %v2000
      %v2369 = vadd.f32 %v2368, %v2008
      %v2370 = vadd.f32 %v2369, %v2016
      %v2371 = vadd.f32 %v2370, %v2024
      %v2372 = vadd.f32 %v2371, %v2032
      %v2373 = vadd.f32 %v2372, %v2040
      %v2374 = vadd.f32 %v2373, %v2048
      %v2375 = vadd.f32 %v2374, %v2056
      %v2376 = vadd.f32 %v2375, %v2064
      %v2377 = vadd.f32 %v2376, %v2072
      %v2378 = vadd.f32 %v2377, %v2080
      %v2379 = vadd.f32 %v2378, %v2088
      %v2380 = vadd.f32 %v2379, %v2096
      %v2381 = vadd.f32 %v2380, %v2104
      %v2382 = vadd.f32 %v2381, %v2112
      %v2383 = vadd.f32 %v2382, %v2120
      %v2384 = vadd.f32 %v2383, %v2128
      %v2385 = vadd.f32 %v2384, %v2136
      %v2386 = vadd.f32 %v2385, %v2144
      %v2387 = vadd.f32 %v2386, %v2152
      %v2388 = vadd.f32 %v2387, %v2160
      %v2389 = vadd.f32 %v2388, %v2168
      %v2390 = vadd.f32 %v2389, %v2176
      %v2391 = vadd.f32 %v2390, %v2184
      %v2392 = vadd.f32 %v2391, %v2192
      %v2393 = vadd.f32 %v2392, %v2200
      %v2394 = vadd.f32 %v2393, %v2208
      %v2395 = vadd.f32 %v2394, %v2216
      %v2396 = vadd.f32 %v2395, %v2224
      %v2397 = vadd.f32 %v2396, %v2232
      %v2398 = vadd.f32 %v2397, %v2240
      %v2399 = vadd.f32 %v1993, %v2001
      %v2400 = vadd.f32 %v2399, %v2009
      %v2401 = vadd.f32 %v2400, %v2017
      %v2402 = vadd.f32 %v2401, %v2025
      %v2403 = vadd.f32 %v2402, %v2033
      %v2404 = vadd.f32 %v2403, %v2041
      %v2405 = vadd.f32 %v2404, %v2049
      %v2406 = vadd.f32 %v2405, %v2057
      %v2407 = vadd.f32 %v2406, %v2065
      %v2408 = vadd.f32 %v2407, %v2073
      %v2409 = vadd.f32 %v2408, %v2081
      %v2410 = vadd.f32 %v2409, %v2089
      %v2411 = vadd.f32 %v2410, %v2097
      %v2412 = vadd.f32 %v2411, %v2105
      %v2413 = vadd.f32 %v2412, %v2113
      %v2414 = vadd.f32 %v2413, %v2121
      %v2415 = vadd.f32 %v2414, %v2129
      %v2416 = vadd.f32 %v2415, %v2137
      %v2417 = vadd.f32 %v2416, %v2145
      %v2418 = vadd.f32 %v2417, %v2153
      %v2419 = vadd.f32 %v2418, %v2161
      %v2420 = vadd.f32 %v2419, %v2169
      %v2421 = vadd.f32 %v2420, %v2177
      %v2422 = vadd.f32 %v2421, %v2185
      %v2423 = vadd.f32 %v2422, %v2193
      %v2424 = vadd.f32 %v2423, %v2201
      %v2425 = vadd.f32 %v2424, %v2209
      %v2426 = vadd.f32 %v2425, %v2217
      %v2427 = vadd.f32 %v2426, %v2225
      %v2428 = vadd.f32 %v2427, %v2233
      %v2429 = vadd.f32 %v2428, %v2241
      %v2430 = vadd.f32 %v1994, %v2002
      %v2431 = vadd.f32 %v2430, %v2010
      %v2432 = vadd.f32 %v2431, %v2018
      %v2433 = vadd.f32 %v2432, %v2026
      %v2434 = vadd.f32 %v2433, %v2034
      %v2435 = vadd.f32 %v2434, %v2042
      %v2436 = vadd.f32 %v2435, %v2050
      %v2437 = vadd.f32 %v2436, %v2058
      %v2438 = vadd.f32 %v2437, %v2066
      %v2439 = vadd.f32 %v2438, %v2074
      %v2440 = vadd.f32 %v2439, %v2082
      %v2441 = vadd.f32 %v2440, %v2090
      %v2442 = vadd.f32 %v2441, %v2098
      %v2443 = vadd.f32 %v2442, %v2106
      %v2444 = vadd.f32 %v2443, %v2114
      %v2445 = vadd.f32 %v2444, %v2122
      %v2446 = vadd.f32 %v2445, %v2130
      %v2447 = vadd.f32 %v2446, %v2138
      %v2448 = vadd.f32 %v2447, %v2146
      %v2449 = vadd.f32 %v2448, %v2154
      %v2450 = vadd.f32 %v2449, %v2162
      %v2451 = vadd.f32 %v2450, %v2170
      %v2452 = vadd.f32 %v2451, %v2178
      %v2453 = vadd.f32 %v2452, %v2186
      %v2454 = vadd.f32 %v2453, %v2194
      %v2455 = vadd.f32 %v2454, %v2202
      %v2456 = vadd.f32 %v2455, %v2210
      %v2457 = vadd.f32 %v2456, %v2218
      %v2458 = vadd.f32 %v2457, %v2226
      %v2459 = vadd.f32 %v2458, %v2234
      %v2460 = vadd.f32 %v2459, %v2242
      %v2461 = vadd.f32 %v1995, %v2003
      %v2462 = vadd.f32 %v2461, %v2011
      %v2463 = vadd.f32 %v2462, %v2019
      %v2464 = vadd.f32 %v2463, %v2027
      %v2465 = vadd.f32 %v2464, %v2035
      %v2466 = vadd.f32 %v2465, %v2043
      %v2467 = vadd.f32 %v2466, %v2051
      %v2468 = vadd.f32 %v2467, %v2059
      %v2469 = vadd.f32 %v2468, %v2067
      %v2470 = vadd.f32 %v2469, %v2075
      %v2471 = vadd.f32 %v2470, %v2083
      %v2472 = vadd.f32 %v2471, %v2091
      %v2473 = vadd.f32 %v2472, %v2099
      %v2474 = vadd.f32 %v2473, %v2107
      %v2475 = vadd.f32 %v2474, %v2115
      %v2476 = vadd.f32 %v2475, %v2123
      %v2477 = vadd.f32 %v2476, %v2131
      %v2478 = vadd.f32 %v2477, %v2139
      %v2479 = vadd.f32 %v2478, %v2147
      %v2480 = vadd.f32 %v2479, %v2155
      %v2481 = vadd.f32 %v2480, %v2163
      %v2482 = vadd.f32 %v2481, %v2171
      %v2483 = vadd.f32 %v2482, %v2179
      %v2484 = vadd.f32 %v2483, %v2187
      %v2485 = vadd.f32 %v2484, %v2195
      %v2486 = vadd.f32 %v2485, %v2203
      %v2487 = vadd.f32 %v2486, %v2211
      %v2488 = vadd.f32 %v2487, %v2219
      %v2489 = vadd.f32 %v2488, %v2227
      %v2490 = vadd.f32 %v2489, %v2235
      %v2491 = vadd.f32 %v2490, %v2243
      %v2492 = vld [vmem:[%s201] sm:$0xff]
      %v2493 = vld [vmem:[%s201 + $0x8] sm:$0xff]
      %v2494 = vld [vmem:[%s201 + $0x10] sm:$0xff]
      %v2495 = vld [vmem:[%s201 + $0x18] sm:$0xff]
      %v2496 = vld [vmem:[%s201 + $0x20] sm:$0xff]
      %v2497 = vld [vmem:[%s201 + $0x28] sm:$0xff]
      %v2498 = vld [vmem:[%s201 + $0x30] sm:$0xff]
      %v2499 = vld [vmem:[%s201 + $0x38] sm:$0xff]
      %v2500 = vadd.f32 %v2492, %v2274
      %v2501 = vadd.f32 %v2493, %v2305
      %v2502 = vadd.f32 %v2494, %v2336
      %v2503 = vadd.f32 %v2495, %v2367
      %v2504 = vadd.f32 %v2496, %v2398
      %v2505 = vadd.f32 %v2497, %v2429
      %v2506 = vadd.f32 %v2498, %v2460
      %v2507 = vadd.f32 %v2499, %v2491
      %2508 = vst [vmem:[%s201] sm:$0xff] %v2500
      %2509 = vst [vmem:[%s201 + $0x8] sm:$0xff] %v2501
      %2510 = vst [vmem:[%s201 + $0x10] sm:$0xff] %v2502
      %2511 = vst [vmem:[%s201 + $0x18] sm:$0xff] %v2503
      %2512 = vst [vmem:[%s201 + $0x20] sm:$0xff] %v2504
      %2513 = vst [vmem:[%s201 + $0x28] sm:$0xff] %v2505
      %2514 = vst [vmem:[%s201 + $0x30] sm:$0xff] %v2506
      %2515 = vst [vmem:[%s201 + $0x38] sm:$0xff] %v2507
      %p2516 = scmp.lt.s32.totalorder %s18, 1
      %s2517 = scalar_select %p2516, %s18, 1
      %s2518 = smul.addr %s2517, 8
      %s2519 = smul.addr %s2518, 8
      %s2520 = scalar_lea.vmem %s3, %s2519
      // Predicated region
      $region37: #{fmow_forward.2} parent=31 // pred_check
        %p2521 = pneg %p116
      $region38: #{fmow_forward.2} parent=31 // pred_check_branch
        %2523 = sbr.rel (%p2521) target = $region40
      $region39: #{fmow_forward.2} parent=31 // pred_region
        _
      $region40: #{fmow_forward.2} parent=31 // pred_fallthru
        _
    $region32: #{fmow_forward.2} parent=5 // pred_fallthru
      _
    %p2524 = scmp.le.s32.totalorder 2, %s9
    // Predicated region
    $region41: #{fmow_forward.2} parent=5 // pred_check
      %p2525 = pneg %p2524
    $region42: #{fmow_forward.2} parent=5 // pred_check_branch
      %2527 = sbr.rel (%p2525) target = $region44
    $region43: #{fmow_forward.2} parent=5 // pred_region
      %s2528 = ssub.s32 %s9, 2
      // Predicated region
      $region45: #{fmow_forward.2} parent=43 // pred_check
        %p2529 = pneg %p122
      $region46: #{fmow_forward.2} parent=43 // pred_check_branch
        %2531 = sbr.rel (%p2529) target = $region48
      $region47: #{fmow_forward.2} parent=43 // pred_region
        %p2532 = scmp.lt.s32.totalorder %s20, 1
        %s2533 = scalar_select %p2532, %s20, 1
        %s2534 = smul.addr %s2533, 8
        %s2535 = smul.addr %s2534, 8
        %s2536 = scalar_lea.vmem %s3, %s2535
      $region48: #{fmow_forward.2} parent=43 // pred_fallthru
        _
    $region44: #{fmow_forward.2} parent=5 // pred_fallthru
      _
  $region6: #{fmow_forward.2} parent=0 // loop_footer
    %s13 = sadd.s32 1, %s9
  $region7: #{fmow_forward.2} parent=0 // loop_footer_branch
    %8 = sbr.rel target = $region3
  $region8: #{fmow_forward.2} parent=0 // loop_exit
    _

// kernel: fmow_forward.3
$region0: #{fmow_forward.3}
  #allocation0 [shape = 'u32[]', space=smem, size = 0x4, offset = 0x4, fixed_abs, tag = 'smem constant byte address 0x4 - core index']
  #allocation1 [shape = 'u32[144,128]{1,0:T(1,128)}', space=vmem, size = 0x12000, scoped, tag = 'internal scratch']
  %s0 = inlined_call_operand.vmem [shape: f32[8,8,1024], index: 0, kind: input, shape index: {}]
  %s1 = inlined_call_operand.vmem [shape: f32[1,1024], index: 1, kind: input, shape index: {}]
  %s2 = inlined_call_operand.vmem [shape: f32[1024,128], index: 2, kind: input, shape index: {}]
  %s3 = inlined_call_operand.vmem [shape: f32[1,128], index: 3, kind: input, shape index: {}]
  %s4 = inlined_call_operand.vmem [shape: f32[8,128], index: 4, kind: output, shape index: {}]
  %s5 = sld [smem:[#allocation0]]
  $region26: #{fmow_forward.3} parent=0
    _
  %s7 = ssub.s32 1, %s5
  %s8 = scalar_select 0, %s7, %s5
  // Predicated region
  $region2: #{fmow_forward.3} parent=0 // pred_check
    _
  $region3: #{fmow_forward.3} parent=0 // pred_check_branch
    %10 = sbr.rel (0) target = $region5
  $region4: #{fmow_forward.3} parent=0 // pred_region
    _
  $region5: #{fmow_forward.3} parent=0 // pred_fallthru
    _
  // Predicated region
  $region6: #{fmow_forward.3} parent=0 // pred_check
    _
  $region7: #{fmow_forward.3} parent=0 // pred_check_branch
    %12 = sbr.rel (0) target = $region9
  $region8: #{fmow_forward.3} parent=0 // pred_region
    _
  $region9: #{fmow_forward.3} parent=0 // pred_fallthru
    _
  // Predicated region
  $region10: #{fmow_forward.3} parent=0 // pred_check
    _
  $region11: #{fmow_forward.3} parent=0 // pred_check_branch
    %14 = sbr.rel (0) target = $region13
  $region12: #{fmow_forward.3} parent=0 // pred_region
    _
  $region13: #{fmow_forward.3} parent=0 // pred_fallthru
    _
  // Predicated region
  $region14: #{fmow_forward.3} parent=0 // pred_check
    _
  $region15: #{fmow_forward.3} parent=0 // pred_check_branch
    %16 = sbr.rel (0) target = $region17
  $region16: #{fmow_forward.3} parent=0 // pred_region
    _
  $region17: #{fmow_forward.3} parent=0 // pred_fallthru
    _
  %v17 = vld [vmem:[%s0] sm:$0xff]
  %v18 = vld [vmem:[%s0 + $0x8] sm:$0xff]
  %v19 = vld [vmem:[%s0 + $0x10] sm:$0xff]
  %v20 = vld [vmem:[%s0 + $0x18] sm:$0xff]
  %v21 = vld [vmem:[%s0 + $0x20] sm:$0xff]
  %v22 = vld [vmem:[%s0 + $0x28] sm:$0xff]
  %v23 = vld [vmem:[%s0 + $0x30] sm:$0xff]
  %v24 = vld [vmem:[%s0 + $0x38] sm:$0xff]
  %v25 = vld [vmem:[%s0 + $0x40] sm:$0xff]
  %v26 = vld [vmem:[%s0 + $0x48] sm:$0xff]
  %v27 = vld [vmem:[%s0 + $0x50] sm:$0xff]
  %v28 = vld [vmem:[%s0 + $0x58] sm:$0xff]
  %v29 = vld [vmem:[%s0 + $0x60] sm:$0xff]
  %v30 = vld [vmem:[%s0 + $0x68] sm:$0xff]
  %v31 = vld [vmem:[%s0 + $0x70] sm:$0xff]
  %v32 = vld [vmem:[%s0 + $0x78] sm:$0xff]
  %v33 = vld [vmem:[%s0 + $0x80] sm:$0xff]
  %v34 = vld [vmem:[%s0 + $0x88] sm:$0xff]
  %v35 = vld [vmem:[%s0 + $0x90] sm:$0xff]
  %v36 = vld [vmem:[%s0 + $0x98] sm:$0xff]
  %v37 = vld [vmem:[%s0 + $0xa0] sm:$0xff]
  %v38 = vld [vmem:[%s0 + $0xa8] sm:$0xff]
  %v39 = vld [vmem:[%s0 + $0xb0] sm:$0xff]
  %v40 = vld [vmem:[%s0 + $0xb8] sm:$0xff]
  %v41 = vld [vmem:[%s0 + $0xc0] sm:$0xff]
  %v42 = vld [vmem:[%s0 + $0xc8] sm:$0xff]
  %v43 = vld [vmem:[%s0 + $0xd0] sm:$0xff]
  %v44 = vld [vmem:[%s0 + $0xd8] sm:$0xff]
  %v45 = vld [vmem:[%s0 + $0xe0] sm:$0xff]
  %v46 = vld [vmem:[%s0 + $0xe8] sm:$0xff]
  %v47 = vld [vmem:[%s0 + $0xf0] sm:$0xff]
  %v48 = vld [vmem:[%s0 + $0xf8] sm:$0xff]
  %v49 = vld [vmem:[%s0 + $0x100] sm:$0xff]
  %v50 = vld [vmem:[%s0 + $0x108] sm:$0xff]
  %v51 = vld [vmem:[%s0 + $0x110] sm:$0xff]
  %v52 = vld [vmem:[%s0 + $0x118] sm:$0xff]
  %v53 = vld [vmem:[%s0 + $0x120] sm:$0xff]
  %v54 = vld [vmem:[%s0 + $0x128] sm:$0xff]
  %v55 = vld [vmem:[%s0 + $0x130] sm:$0xff]
  %v56 = vld [vmem:[%s0 + $0x138] sm:$0xff]
  %v57 = vld [vmem:[%s0 + $0x140] sm:$0xff]
  %v58 = vld [vmem:[%s0 + $0x148] sm:$0xff]
  %v59 = vld [vmem:[%s0 + $0x150] sm:$0xff]
  %v60 = vld [vmem:[%s0 + $0x158] sm:$0xff]
  %v61 = vld [vmem:[%s0 + $0x160] sm:$0xff]
  %v62 = vld [vmem:[%s0 + $0x168] sm:$0xff]
  %v63 = vld [vmem:[%s0 + $0x170] sm:$0xff]
  %v64 = vld [vmem:[%s0 + $0x178] sm:$0xff]
  %v65 = vld [vmem:[%s0 + $0x180] sm:$0xff]
  %v66 = vld [vmem:[%s0 + $0x188] sm:$0xff]
  %v67 = vld [vmem:[%s0 + $0x190] sm:$0xff]
  %v68 = vld [vmem:[%s0 + $0x198] sm:$0xff]
  %v69 = vld [vmem:[%s0 + $0x1a0] sm:$0xff]
  %v70 = vld [vmem:[%s0 + $0x1a8] sm:$0xff]
  %v71 = vld [vmem:[%s0 + $0x1b0] sm:$0xff]
  %v72 = vld [vmem:[%s0 + $0x1b8] sm:$0xff]
  %v73 = vld [vmem:[%s0 + $0x1c0] sm:$0xff]
  %v74 = vld [vmem:[%s0 + $0x1c8] sm:$0xff]
  %v75 = vld [vmem:[%s0 + $0x1d0] sm:$0xff]
  %v76 = vld [vmem:[%s0 + $0x1d8] sm:$0xff]
  %v77 = vld [vmem:[%s0 + $0x1e0] sm:$0xff]
  %v78 = vld [vmem:[%s0 + $0x1e8] sm:$0xff]
  %v79 = vld [vmem:[%s0 + $0x1f0] sm:$0xff]
  %v80 = vld [vmem:[%s0 + $0x1f8] sm:$0xff]
  %v81 = vrot.slane %v17, 4
  %v82 = vadd.f32 %v17, %v81
  %v83 = vrot.slane %v82, 2
  %v84 = vadd.f32 %v82, %v83
  %v85 = vrot.slane %v84, 1
  %v86 = vadd.f32 %v84, %v85
  %v87 = vrot.slane %v18, 4
  %v88 = vadd.f32 %v18, %v87
  %v89 = vrot.slane %v88, 2
  %v90 = vadd.f32 %v88, %v89
  %v91 = vrot.slane %v90, 1
  %v92 = vadd.f32 %v90, %v91
  %v93 = vrot.slane %v19, 4
  %v94 = vadd.f32 %v19, %v93
  %v95 = vrot.slane %v94, 2
  %v96 = vadd.f32 %v94, %v95
  %v97 = vrot.slane %v96, 1
  %v98 = vadd.f32 %v96, %v97
  %v99 = vrot.slane %v20, 4
  %v100 = vadd.f32 %v20, %v99
  %v101 = vrot.slane %v100, 2
  %v102 = vadd.f32 %v100, %v101
  %v103 = vrot.slane %v102, 1
  %v104 = vadd.f32 %v102, %v103
  %v105 = vrot.slane %v21, 4
  %v106 = vadd.f32 %v21, %v105
  %v107 = vrot.slane %v106, 2
  %v108 = vadd.f32 %v106, %v107
  %v109 = vrot.slane %v108, 1
  %v110 = vadd.f32 %v108, %v109
  %v111 = vrot.slane %v22, 4
  %v112 = vadd.f32 %v22, %v111
  %v113 = vrot.slane %v112, 2
  %v114 = vadd.f32 %v112, %v113
  %v115 = vrot.slane %v114, 1
  %v116 = vadd.f32 %v114, %v115
  %v117 = vrot.slane %v23, 4
  %v118 = vadd.f32 %v23, %v117
  %v119 = vrot.slane %v118, 2
  %v120 = vadd.f32 %v118, %v119
  %v121 = vrot.slane %v120, 1
  %v122 = vadd.f32 %v120, %v121
  %v123 = vrot.slane %v24, 4
  %v124 = vadd.f32 %v24, %v123
  %v125 = vrot.slane %v124, 2
  %v126 = vadd.f32 %v124, %v125
  %v127 = vrot.slane %v126, 1
  %v128 = vadd.f32 %v126, %v127
  %v129 = vrot.slane %v25, 4
  %v130 = vadd.f32 %v25, %v129
  %v131 = vrot.slane %v130, 2
  %v132 = vadd.f32 %v130, %v131
  %v133 = vrot.slane %v132, 1
  %v134 = vadd.f32 %v132, %v133
  %v135 = vrot.slane %v26, 4
  %v136 = vadd.f32 %v26, %v135
  %v137 = vrot.slane %v136, 2
  %v138 = vadd.f32 %v136, %v137
  %v139 = vrot.slane %v138, 1
  %v140 = vadd.f32 %v138, %v139
  %v141 = vrot.slane %v27, 4
  %v142 = vadd.f32 %v27, %v141
  %v143 = vrot.slane %v142, 2
  %v144 = vadd.f32 %v142, %v143
  %v145 = vrot.slane %v144, 1
  %v146 = vadd.f32 %v144, %v145
  %v147 = vrot.slane %v28, 4
  %v148 = vadd.f32 %v28, %v147
  %v149 = vrot.slane %v148, 2
  %v150 = vadd.f32 %v148, %v149
  %v151 = vrot.slane %v150, 1
  %v152 = vadd.f32 %v150, %v151
  %v153 = vrot.slane %v29, 4
  %v154 = vadd.f32 %v29, %v153
  %v155 = vrot.slane %v154, 2
  %v156 = vadd.f32 %v154, %v155
  %v157 = vrot.slane %v156, 1
  %v158 = vadd.f32 %v156, %v157
  %v159 = vrot.slane %v30, 4
  %v160 = vadd.f32 %v30, %v159
  %v161 = vrot.slane %v160, 2
  %v162 = vadd.f32 %v160, %v161
  %v163 = vrot.slane %v162, 1
  %v164 = vadd.f32 %v162, %v163
  %v165 = vrot.slane %v31, 4
  %v166 = vadd.f32 %v31, %v165
  %v167 = vrot.slane %v166, 2
  %v168 = vadd.f32 %v166, %v167
  %v169 = vrot.slane %v168, 1
  %v170 = vadd.f32 %v168, %v169
  %v171 = vrot.slane %v32, 4
  %v172 = vadd.f32 %v32, %v171
  %v173 = vrot.slane %v172, 2
  %v174 = vadd.f32 %v172, %v173
  %v175 = vrot.slane %v174, 1
  %v176 = vadd.f32 %v174, %v175
  %v177 = vrot.slane %v33, 4
  %v178 = vadd.f32 %v33, %v177
  %v179 = vrot.slane %v178, 2
  %v180 = vadd.f32 %v178, %v179
  %v181 = vrot.slane %v180, 1
  %v182 = vadd.f32 %v180, %v181
  %v183 = vrot.slane %v34, 4
  %v184 = vadd.f32 %v34, %v183
  %v185 = vrot.slane %v184, 2
  %v186 = vadd.f32 %v184, %v185
  %v187 = vrot.slane %v186, 1
  %v188 = vadd.f32 %v186, %v187
  %v189 = vrot.slane %v35, 4
  %v190 = vadd.f32 %v35, %v189
  %v191 = vrot.slane %v190, 2
  %v192 = vadd.f32 %v190, %v191
  %v193 = vrot.slane %v192, 1
  %v194 = vadd.f32 %v192, %v193
  %v195 = vrot.slane %v36, 4
  %v196 = vadd.f32 %v36, %v195
  %v197 = vrot.slane %v196, 2
  %v198 = vadd.f32 %v196, %v197
  %v199 = vrot.slane %v198, 1
  %v200 = vadd.f32 %v198, %v199
  %v201 = vrot.slane %v37, 4
  %v202 = vadd.f32 %v37, %v201
  %v203 = vrot.slane %v202, 2
  %v204 = vadd.f32 %v202, %v203
  %v205 = vrot.slane %v204, 1
  %v206 = vadd.f32 %v204, %v205
  %v207 = vrot.slane %v38, 4
  %v208 = vadd.f32 %v38, %v207
  %v209 = vrot.slane %v208, 2
  %v210 = vadd.f32 %v208, %v209
  %v211 = vrot.slane %v210, 1
  %v212 = vadd.f32 %v210, %v211
  %v213 = vrot.slane %v39, 4
  %v214 = vadd.f32 %v39, %v213
  %v215 = vrot.slane %v214, 2
  %v216 = vadd.f32 %v214, %v215
  %v217 = vrot.slane %v216, 1
  %v218 = vadd.f32 %v216, %v217
  %v219 = vrot.slane %v40, 4
  %v220 = vadd.f32 %v40, %v219
  %v221 = vrot.slane %v220, 2
  %v222 = vadd.f32 %v220, %v221
  %v223 = vrot.slane %v222, 1
  %v224 = vadd.f32 %v222, %v223
  %v225 = vrot.slane %v41, 4
  %v226 = vadd.f32 %v41, %v225
  %v227 = vrot.slane %v226, 2
  %v228 = vadd.f32 %v226, %v227
  %v229 = vrot.slane %v228, 1
  %v230 = vadd.f32 %v228, %v229
  %v231 = vrot.slane %v42, 4
  %v232 = vadd.f32 %v42, %v231
  %v233 = vrot.slane %v232, 2
  %v234 = vadd.f32 %v232, %v233
  %v235 = vrot.slane %v234, 1
  %v236 = vadd.f32 %v234, %v235
  %v237 = vrot.slane %v43, 4
  %v238 = vadd.f32 %v43, %v237
  %v239 = vrot.slane %v238, 2
  %v240 = vadd.f32 %v238, %v239
  %v241 = vrot.slane %v240, 1
  %v242 = vadd.f32 %v240, %v241
  %v243 = vrot.slane %v44, 4
  %v244 = vadd.f32 %v44, %v243
  %v245 = vrot.slane %v244, 2
  %v246 = vadd.f32 %v244, %v245
  %v247 = vrot.slane %v246, 1
  %v248 = vadd.f32 %v246, %v247
  %v249 = vrot.slane %v45, 4
  %v250 = vadd.f32 %v45, %v249
  %v251 = vrot.slane %v250, 2
  %v252 = vadd.f32 %v250, %v251
  %v253 = vrot.slane %v252, 1
  %v254 = vadd.f32 %v252, %v253
  %v255 = vrot.slane %v46, 4
  %v256 = vadd.f32 %v46, %v255
  %v257 = vrot.slane %v256, 2
  %v258 = vadd.f32 %v256, %v257
  %v259 = vrot.slane %v258, 1
  %v260 = vadd.f32 %v258, %v259
  %v261 = vrot.slane %v47, 4
  %v262 = vadd.f32 %v47, %v261
  %v263 = vrot.slane %v262, 2
  %v264 = vadd.f32 %v262, %v263
  %v265 = vrot.slane %v264, 1
  %v266 = vadd.f32 %v264, %v265
  %v267 = vrot.slane %v48, 4
  %v268 = vadd.f32 %v48, %v267
  %v269 = vrot.slane %v268, 2
  %v270 = vadd.f32 %v268, %v269
  %v271 = vrot.slane %v270, 1
  %v272 = vadd.f32 %v270, %v271
  %v273 = vrot.slane %v49, 4
  %v274 = vadd.f32 %v49, %v273
  %v275 = vrot.slane %v274, 2
  %v276 = vadd.f32 %v274, %v275
  %v277 = vrot.slane %v276, 1
  %v278 = vadd.f32 %v276, %v277
  %v279 = vrot.slane %v50, 4
  %v280 = vadd.f32 %v50, %v279
  %v281 = vrot.slane %v280, 2
  %v282 = vadd.f32 %v280, %v281
  %v283 = vrot.slane %v282, 1
  %v284 = vadd.f32 %v282, %v283
  %v285 = vrot.slane %v51, 4
  %v286 = vadd.f32 %v51, %v285
  %v287 = vrot.slane %v286, 2
  %v288 = vadd.f32 %v286, %v287
  %v289 = vrot.slane %v288, 1
  %v290 = vadd.f32 %v288, %v289
  %v291 = vrot.slane %v52, 4
  %v292 = vadd.f32 %v52, %v291
  %v293 = vrot.slane %v292, 2
  %v294 = vadd.f32 %v292, %v293
  %v295 = vrot.slane %v294, 1
  %v296 = vadd.f32 %v294, %v295
  %v297 = vrot.slane %v53, 4
  %v298 = vadd.f32 %v53, %v297
  %v299 = vrot.slane %v298, 2
  %v300 = vadd.f32 %v298, %v299
  %v301 = vrot.slane %v300, 1
  %v302 = vadd.f32 %v300, %v301
  %v303 = vrot.slane %v54, 4
  %v304 = vadd.f32 %v54, %v303
  %v305 = vrot.slane %v304, 2
  %v306 = vadd.f32 %v304, %v305
  %v307 = vrot.slane %v306, 1
  %v308 = vadd.f32 %v306, %v307
  %v309 = vrot.slane %v55, 4
  %v310 = vadd.f32 %v55, %v309
  %v311 = vrot.slane %v310, 2
  %v312 = vadd.f32 %v310, %v311
  %v313 = vrot.slane %v312, 1
  %v314 = vadd.f32 %v312, %v313
  %v315 = vrot.slane %v56, 4
  %v316 = vadd.f32 %v56, %v315
  %v317 = vrot.slane %v316, 2
  %v318 = vadd.f32 %v316, %v317
  %v319 = vrot.slane %v318, 1
  %v320 = vadd.f32 %v318, %v319
  %v321 = vrot.slane %v57, 4
  %v322 = vadd.f32 %v57, %v321
  %v323 = vrot.slane %v322, 2
  %v324 = vadd.f32 %v322, %v323
  %v325 = vrot.slane %v324, 1
  %v326 = vadd.f32 %v324, %v325
  %v327 = vrot.slane %v58, 4
  %v328 = vadd.f32 %v58, %v327
  %v329 = vrot.slane %v328, 2
  %v330 = vadd.f32 %v328, %v329
  %v331 = vrot.slane %v330, 1
  %v332 = vadd.f32 %v330, %v331
  %v333 = vrot.slane %v59, 4
  %v334 = vadd.f32 %v59, %v333
  %v335 = vrot.slane %v334, 2
  %v336 = vadd.f32 %v334, %v335
  %v337 = vrot.slane %v336, 1
  %v338 = vadd.f32 %v336, %v337
  %v339 = vrot.slane %v60, 4
  %v340 = vadd.f32 %v60, %v339
  %v341 = vrot.slane %v340, 2
  %v342 = vadd.f32 %v340, %v341
  %v343 = vrot.slane %v342, 1
  %v344 = vadd.f32 %v342, %v343
  %v345 = vrot.slane %v61, 4
  %v346 = vadd.f32 %v61, %v345
  %v347 = vrot.slane %v346, 2
  %v348 = vadd.f32 %v346, %v347
  %v349 = vrot.slane %v348, 1
  %v350 = vadd.f32 %v348, %v349
  %v351 = vrot.slane %v62, 4
  %v352 = vadd.f32 %v62, %v351
  %v353 = vrot.slane %v352, 2
  %v354 = vadd.f32 %v352, %v353
  %v355 = vrot.slane %v354, 1
  %v356 = vadd.f32 %v354, %v355
  %v357 = vrot.slane %v63, 4
  %v358 = vadd.f32 %v63, %v357
  %v359 = vrot.slane %v358, 2
  %v360 = vadd.f32 %v358, %v359
  %v361 = vrot.slane %v360, 1
  %v362 = vadd.f32 %v360, %v361
  %v363 = vrot.slane %v64, 4
  %v364 = vadd.f32 %v64, %v363
  %v365 = vrot.slane %v364, 2
  %v366 = vadd.f32 %v364, %v365
  %v367 = vrot.slane %v366, 1
  %v368 = vadd.f32 %v366, %v367
  %v369 = vrot.slane %v65, 4
  %v370 = vadd.f32 %v65, %v369
  %v371 = vrot.slane %v370, 2
  %v372 = vadd.f32 %v370, %v371
  %v373 = vrot.slane %v372, 1
  %v374 = vadd.f32 %v372, %v373
  %v375 = vrot.slane %v66, 4
  %v376 = vadd.f32 %v66, %v375
  %v377 = vrot.slane %v376, 2
  %v378 = vadd.f32 %v376, %v377
  %v379 = vrot.slane %v378, 1
  %v380 = vadd.f32 %v378, %v379
  %v381 = vrot.slane %v67, 4
  %v382 = vadd.f32 %v67, %v381
  %v383 = vrot.slane %v382, 2
  %v384 = vadd.f32 %v382, %v383
  %v385 = vrot.slane %v384, 1
  %v386 = vadd.f32 %v384, %v385
  %v387 = vrot.slane %v68, 4
  %v388 = vadd.f32 %v68, %v387
  %v389 = vrot.slane %v388, 2
  %v390 = vadd.f32 %v388, %v389
  %v391 = vrot.slane %v390, 1
  %v392 = vadd.f32 %v390, %v391
  %v393 = vrot.slane %v69, 4
  %v394 = vadd.f32 %v69, %v393
  %v395 = vrot.slane %v394, 2
  %v396 = vadd.f32 %v394, %v395
  %v397 = vrot.slane %v396, 1
  %v398 = vadd.f32 %v396, %v397
  %v399 = vrot.slane %v70, 4
  %v400 = vadd.f32 %v70, %v399
  %v401 = vrot.slane %v400, 2
  %v402 = vadd.f32 %v400, %v401
  %v403 = vrot.slane %v402, 1
  %v404 = vadd.f32 %v402, %v403
  %v405 = vrot.slane %v71, 4
  %v406 = vadd.f32 %v71, %v405
  %v407 = vrot.slane %v406, 2
  %v408 = vadd.f32 %v406, %v407
  %v409 = vrot.slane %v408, 1
  %v410 = vadd.f32 %v408, %v409
  %v411 = vrot.slane %v72, 4
  %v412 = vadd.f32 %v72, %v411
  %v413 = vrot.slane %v412, 2
  %v414 = vadd.f32 %v412, %v413
  %v415 = vrot.slane %v414, 1
  %v416 = vadd.f32 %v414, %v415
  %v417 = vrot.slane %v73, 4
  %v418 = vadd.f32 %v73, %v417
  %v419 = vrot.slane %v418, 2
  %v420 = vadd.f32 %v418, %v419
  %v421 = vrot.slane %v420, 1
  %v422 = vadd.f32 %v420, %v421
  %v423 = vrot.slane %v74, 4
  %v424 = vadd.f32 %v74, %v423
  %v425 = vrot.slane %v424, 2
  %v426 = vadd.f32 %v424, %v425
  %v427 = vrot.slane %v426, 1
  %v428 = vadd.f32 %v426, %v427
  %v429 = vrot.slane %v75, 4
  %v430 = vadd.f32 %v75, %v429
  %v431 = vrot.slane %v430, 2
  %v432 = vadd.f32 %v430, %v431
  %v433 = vrot.slane %v432, 1
  %v434 = vadd.f32 %v432, %v433
  %v435 = vrot.slane %v76, 4
  %v436 = vadd.f32 %v76, %v435
  %v437 = vrot.slane %v436, 2
  %v438 = vadd.f32 %v436, %v437
  %v439 = vrot.slane %v438, 1
  %v440 = vadd.f32 %v438, %v439
  %v441 = vrot.slane %v77, 4
  %v442 = vadd.f32 %v77, %v441
  %v443 = vrot.slane %v442, 2
  %v444 = vadd.f32 %v442, %v443
  %v445 = vrot.slane %v444, 1
  %v446 = vadd.f32 %v444, %v445
  %v447 = vrot.slane %v78, 4
  %v448 = vadd.f32 %v78, %v447
  %v449 = vrot.slane %v448, 2
  %v450 = vadd.f32 %v448, %v449
  %v451 = vrot.slane %v450, 1
  %v452 = vadd.f32 %v450, %v451
  %v453 = vrot.slane %v79, 4
  %v454 = vadd.f32 %v79, %v453
  %v455 = vrot.slane %v454, 2
  %v456 = vadd.f32 %v454, %v455
  %v457 = vrot.slane %v456, 1
  %v458 = vadd.f32 %v456, %v457
  %v459 = vrot.slane %v80, 4
  %v460 = vadd.f32 %v80, %v459
  %v461 = vrot.slane %v460, 2
  %v462 = vadd.f32 %v460, %v461
  %v463 = vrot.slane %v462, 1
  %v464 = vadd.f32 %v462, %v463
  %v465 = vld [vmem:[%s1] sm:$0xff]
  %v466 = vmax.f32 %v465, 0.0
  %v467 = vmul.f32 %v466, 112.0
  %v469 = vlaneseq
  %v470 = vshrl.u32 %v469, 7
  %v471 = vsub.s32 0, %v470
  %v472 = vrot.slane %v467, %v471
  %v473 = vlaneseq
  %v474 = vshrl.u32 %v473, 7
  %v475 = vsub.s32 1, %v474
  %v476 = vrot.slane %v467, %v475
  %v477 = vlaneseq
  %v478 = vshrl.u32 %v477, 7
  %v479 = vsub.s32 2, %v478
  %v480 = vrot.slane %v467, %v479
  %v481 = vlaneseq
  %v482 = vshrl.u32 %v481, 7
  %v483 = vsub.s32 3, %v482
  %v484 = vrot.slane %v467, %v483
  %v485 = vlaneseq
  %v486 = vshrl.u32 %v485, 7
  %v487 = vsub.s32 4, %v486
  %v488 = vrot.slane %v467, %v487
  %v489 = vlaneseq
  %v490 = vshrl.u32 %v489, 7
  %v491 = vsub.s32 5, %v490
  %v492 = vrot.slane %v467, %v491
  %v493 = vlaneseq
  %v494 = vshrl.u32 %v493, 7
  %v495 = vsub.s32 6, %v494
  %v496 = vrot.slane %v467, %v495
  %v497 = vlaneseq
  %v498 = vshrl.u32 %v497, 7
  %v499 = vsub.s32 7, %v498
  %v500 = vrot.slane %v467, %v499
  %v509 = vsub.f32 %v86, %v472
  %v510 = vsub.f32 %v92, %v476
  %v511 = vsub.f32 %v98, %v480
  %v512 = vsub.f32 %v104, %v484
  %v513 = vsub.f32 %v110, %v488
  %v514 = vsub.f32 %v116, %v492
  %v515 = vsub.f32 %v122, %v496
  %v516 = vsub.f32 %v128, %v500
  %v517 = vsub.f32 %v134, %v472
  %v518 = vsub.f32 %v140, %v476
  %v519 = vsub.f32 %v146, %v480
  %v520 = vsub.f32 %v152, %v484
  %v521 = vsub.f32 %v158, %v488
  %v522 = vsub.f32 %v164, %v492
  %v523 = vsub.f32 %v170, %v496
  %v524 = vsub.f32 %v176, %v500
  %v525 = vsub.f32 %v182, %v472
  %v526 = vsub.f32 %v188, %v476
  %v527 = vsub.f32 %v194, %v480
  %v528 = vsub.f32 %v200, %v484
  %v529 = vsub.f32 %v206, %v488
  %v530 = vsub.f32 %v212, %v492
  %v531 = vsub.f32 %v218, %v496
  %v532 = vsub.f32 %v224, %v500
  %v533 = vsub.f32 %v230, %v472
  %v534 = vsub.f32 %v236, %v476
  %v535 = vsub.f32 %v242, %v480
  %v536 = vsub.f32 %v248, %v484
  %v537 = vsub.f32 %v254, %v488
  %v538 = vsub.f32 %v260, %v492
  %v539 = vsub.f32 %v266, %v496
  %v540 = vsub.f32 %v272, %v500
  %v541 = vsub.f32 %v278, %v472
  %v542 = vsub.f32 %v284, %v476
  %v543 = vsub.f32 %v290, %v480
  %v544 = vsub.f32 %v296, %v484
  %v545 = vsub.f32 %v302, %v488
  %v546 = vsub.f32 %v308, %v492
  %v547 = vsub.f32 %v314, %v496
  %v548 = vsub.f32 %v320, %v500
  %v549 = vsub.f32 %v326, %v472
  %v550 = vsub.f32 %v332, %v476
  %v551 = vsub.f32 %v338, %v480
  %v552 = vsub.f32 %v344, %v484
  %v553 = vsub.f32 %v350, %v488
  %v554 = vsub.f32 %v356, %v492
  %v555 = vsub.f32 %v362, %v496
  %v556 = vsub.f32 %v368, %v500
  %v557 = vsub.f32 %v374, %v472
  %v558 = vsub.f32 %v380, %v476
  %v559 = vsub.f32 %v386, %v480
  %v560 = vsub.f32 %v392, %v484
  %v561 = vsub.f32 %v398, %v488
  %v562 = vsub.f32 %v404, %v492
  %v563 = vsub.f32 %v410, %v496
  %v564 = vsub.f32 %v416, %v500
  %v565 = vsub.f32 %v422, %v472
  %v566 = vsub.f32 %v428, %v476
  %v567 = vsub.f32 %v434, %v480
  %v568 = vsub.f32 %v440, %v484
  %v569 = vsub.f32 %v446, %v488
  %v570 = vsub.f32 %v452, %v492
  %v571 = vsub.f32 %v458, %v496
  %v572 = vsub.f32 %v464, %v500
  %v573 = vmul.f32 %v509, 0.0025
  %v574 = vmul.f32 %v510, 0.0025
  %v575 = vmul.f32 %v511, 0.0025
  %v576 = vmul.f32 %v512, 0.0025
  %v577 = vmul.f32 %v513, 0.0025
  %v578 = vmul.f32 %v514, 0.0025
  %v579 = vmul.f32 %v515, 0.0025
  %v580 = vmul.f32 %v516, 0.0025
  %v581 = vmul.f32 %v517, 0.0025
  %v582 = vmul.f32 %v518, 0.0025
  %v583 = vmul.f32 %v519, 0.0025
  %v584 = vmul.f32 %v520, 0.0025
  %v585 = vmul.f32 %v521, 0.0025
  %v586 = vmul.f32 %v522, 0.0025
  %v587 = vmul.f32 %v523, 0.0025
  %v588 = vmul.f32 %v524, 0.0025
  %v589 = vmul.f32 %v525, 0.0025
  %v590 = vmul.f32 %v526, 0.0025
  %v591 = vmul.f32 %v527, 0.0025
  %v592 = vmul.f32 %v528, 0.0025
  %v593 = vmul.f32 %v529, 0.0025
  %v594 = vmul.f32 %v530, 0.0025
  %v595 = vmul.f32 %v531, 0.0025
  %v596 = vmul.f32 %v532, 0.0025
  %v597 = vmul.f32 %v533, 0.0025
  %v598 = vmul.f32 %v534, 0.0025
  %v599 = vmul.f32 %v535, 0.0025
  %v600 = vmul.f32 %v536, 0.0025
  %v601 = vmul.f32 %v537, 0.0025
  %v602 = vmul.f32 %v538, 0.0025
  %v603 = vmul.f32 %v539, 0.0025
  %v604 = vmul.f32 %v540, 0.0025
  %v605 = vmul.f32 %v541, 0.0025
  %v606 = vmul.f32 %v542, 0.0025
  %v607 = vmul.f32 %v543, 0.0025
  %v608 = vmul.f32 %v544, 0.0025
  %v609 = vmul.f32 %v545, 0.0025
  %v610 = vmul.f32 %v546, 0.0025
  %v611 = vmul.f32 %v547, 0.0025
  %v612 = vmul.f32 %v548, 0.0025
  %v613 = vmul.f32 %v549, 0.0025
  %v614 = vmul.f32 %v550, 0.0025
  %v615 = vmul.f32 %v551, 0.0025
  %v616 = vmul.f32 %v552, 0.0025
  %v617 = vmul.f32 %v553, 0.0025
  %v618 = vmul.f32 %v554, 0.0025
  %v619 = vmul.f32 %v555, 0.0025
  %v620 = vmul.f32 %v556, 0.0025
  %v621 = vmul.f32 %v557, 0.0025
  %v622 = vmul.f32 %v558, 0.0025
  %v623 = vmul.f32 %v559, 0.0025
  %v624 = vmul.f32 %v560, 0.0025
  %v625 = vmul.f32 %v561, 0.0025
  %v626 = vmul.f32 %v562, 0.0025
  %v627 = vmul.f32 %v563, 0.0025
  %v628 = vmul.f32 %v564, 0.0025
  %v629 = vmul.f32 %v565, 0.0025
  %v630 = vmul.f32 %v566, 0.0025
  %v631 = vmul.f32 %v567, 0.0025
  %v632 = vmul.f32 %v568, 0.0025
  %v633 = vmul.f32 %v569, 0.0025
  %v634 = vmul.f32 %v570, 0.0025
  %v635 = vmul.f32 %v571, 0.0025
  %v636 = vmul.f32 %v572, 0.0025
  %v637 = vld [vmem:[%s2] sm:$0xff]
  %v638 = vld [vmem:[%s2 + $0x8] sm:$0xff]
  %v639 = vld [vmem:[%s2 + $0x10] sm:$0xff]
  %v640 = vld [vmem:[%s2 + $0x18] sm:$0xff]
  %v641 = vld [vmem:[%s2 + $0x20] sm:$0xff]
  %v642 = vld [vmem:[%s2 + $0x28] sm:$0xff]
  %v643 = vld [vmem:[%s2 + $0x30] sm:$0xff]
  %v644 = vld [vmem:[%s2 + $0x38] sm:$0xff]
  %v645 = vld [vmem:[%s2 + $0x40] sm:$0xff]
  %v646 = vld [vmem:[%s2 + $0x48] sm:$0xff]
  %v647 = vld [vmem:[%s2 + $0x50] sm:$0xff]
  %v648 = vld [vmem:[%s2 + $0x58] sm:$0xff]
  %v649 = vld [vmem:[%s2 + $0x60] sm:$0xff]
  %v650 = vld [vmem:[%s2 + $0x68] sm:$0xff]
  %v651 = vld [vmem:[%s2 + $0x70] sm:$0xff]
  %v652 = vld [vmem:[%s2 + $0x78] sm:$0xff]
  %v653 = vld [vmem:[%s2 + $0x80] sm:$0xff]
  %v654 = vld [vmem:[%s2 + $0x88] sm:$0xff]
  %v655 = vld [vmem:[%s2 + $0x90] sm:$0xff]
  %v656 = vld [vmem:[%s2 + $0x98] sm:$0xff]
  %v657 = vld [vmem:[%s2 + $0xa0] sm:$0xff]
  %v658 = vld [vmem:[%s2 + $0xa8] sm:$0xff]
  %v659 = vld [vmem:[%s2 + $0xb0] sm:$0xff]
  %v660 = vld [vmem:[%s2 + $0xb8] sm:$0xff]
  %v661 = vld [vmem:[%s2 + $0xc0] sm:$0xff]
  %v662 = vld [vmem:[%s2 + $0xc8] sm:$0xff]
  %v663 = vld [vmem:[%s2 + $0xd0] sm:$0xff]
  %v664 = vld [vmem:[%s2 + $0xd8] sm:$0xff]
  %v665 = vld [vmem:[%s2 + $0xe0] sm:$0xff]
  %v666 = vld [vmem:[%s2 + $0xe8] sm:$0xff]
  %v667 = vld [vmem:[%s2 + $0xf0] sm:$0xff]
  %v668 = vld [vmem:[%s2 + $0xf8] sm:$0xff]
  %v669 = vld [vmem:[%s2 + $0x100] sm:$0xff]
  %v670 = vld [vmem:[%s2 + $0x108] sm:$0xff]
  %v671 = vld [vmem:[%s2 + $0x110] sm:$0xff]
  %v672 = vld [vmem:[%s2 + $0x118] sm:$0xff]
  %v673 = vld [vmem:[%s2 + $0x120] sm:$0xff]
  %v674 = vld [vmem:[%s2 + $0x128] sm:$0xff]
  %v675 = vld [vmem:[%s2 + $0x130] sm:$0xff]
  %v676 = vld [vmem:[%s2 + $0x138] sm:$0xff]
  %v677 = vld [vmem:[%s2 + $0x140] sm:$0xff]
  %v678 = vld [vmem:[%s2 + $0x148] sm:$0xff]
  %v679 = vld [vmem:[%s2 + $0x150] sm:$0xff]
  %v680 = vld [vmem:[%s2 + $0x158] sm:$0xff]
  %v681 = vld [vmem:[%s2 + $0x160] sm:$0xff]
  %v682 = vld [vmem:[%s2 + $0x168] sm:$0xff]
  %v683 = vld [vmem:[%s2 + $0x170] sm:$0xff]
  %v684 = vld [vmem:[%s2 + $0x178] sm:$0xff]
  %v685 = vld [vmem:[%s2 + $0x180] sm:$0xff]
  %v686 = vld [vmem:[%s2 + $0x188] sm:$0xff]
  %v687 = vld [vmem:[%s2 + $0x190] sm:$0xff]
  %v688 = vld [vmem:[%s2 + $0x198] sm:$0xff]
  %v689 = vld [vmem:[%s2 + $0x1a0] sm:$0xff]
  %v690 = vld [vmem:[%s2 + $0x1a8] sm:$0xff]
  %v691 = vld [vmem:[%s2 + $0x1b0] sm:$0xff]
  %v692 = vld [vmem:[%s2 + $0x1b8] sm:$0xff]
  %v693 = vld [vmem:[%s2 + $0x1c0] sm:$0xff]
  %v694 = vld [vmem:[%s2 + $0x1c8] sm:$0xff]
  %v695 = vld [vmem:[%s2 + $0x1d0] sm:$0xff]
  %v696 = vld [vmem:[%s2 + $0x1d8] sm:$0xff]
  %v697 = vld [vmem:[%s2 + $0x1e0] sm:$0xff]
  %v698 = vld [vmem:[%s2 + $0x1e8] sm:$0xff]
  %v699 = vld [vmem:[%s2 + $0x1f0] sm:$0xff]
  %v700 = vld [vmem:[%s2 + $0x1f8] sm:$0xff]
  %v701 = vld [vmem:[%s2 + $0x200] sm:$0xff]
  %v702 = vld [vmem:[%s2 + $0x208] sm:$0xff]
  %v703 = vld [vmem:[%s2 + $0x210] sm:$0xff]
  %v704 = vld [vmem:[%s2 + $0x218] sm:$0xff]
  %v705 = vld [vmem:[%s2 + $0x220] sm:$0xff]
  %v706 = vld [vmem:[%s2 + $0x228] sm:$0xff]
  %v707 = vld [vmem:[%s2 + $0x230] sm:$0xff]
  %v708 = vld [vmem:[%s2 + $0x238] sm:$0xff]
  %v709 = vld [vmem:[%s2 + $0x240] sm:$0xff]
  %v710 = vld [vmem:[%s2 + $0x248] sm:$0xff]
  %v711 = vld [vmem:[%s2 + $0x250] sm:$0xff]
  %v712 = vld [vmem:[%s2 + $0x258] sm:$0xff]
  %v713 = vld [vmem:[%s2 + $0x260] sm:$0xff]
  %v714 = vld [vmem:[%s2 + $0x268] sm:$0xff]
  %v715 = vld [vmem:[%s2 + $0x270] sm:$0xff]
  %v716 = vld [vmem:[%s2 + $0x278] sm:$0xff]
  %v717 = vld [vmem:[%s2 + $0x280] sm:$0xff]
  %v718 = vld [vmem:[%s2 + $0x288] sm:$0xff]
  %v719 = vld [vmem:[%s2 + $0x290] sm:$0xff]
  %v720 = vld [vmem:[%s2 + $0x298] sm:$0xff]
  %v721 = vld [vmem:[%s2 + $0x2a0] sm:$0xff]
  %v722 = vld [vmem:[%s2 + $0x2a8] sm:$0xff]
  %v723 = vld [vmem:[%s2 + $0x2b0] sm:$0xff]
  %v724 = vld [vmem:[%s2 + $0x2b8] sm:$0xff]
  %v725 = vld [vmem:[%s2 + $0x2c0] sm:$0xff]
  %v726 = vld [vmem:[%s2 + $0x2c8] sm:$0xff]
  %v727 = vld [vmem:[%s2 + $0x2d0] sm:$0xff]
  %v728 = vld [vmem:[%s2 + $0x2d8] sm:$0xff]
  %v729 = vld [vmem:[%s2 + $0x2e0] sm:$0xff]
  %v730 = vld [vmem:[%s2 + $0x2e8] sm:$0xff]
  %v731 = vld [vmem:[%s2 + $0x2f0] sm:$0xff]
  %v732 = vld [vmem:[%s2 + $0x2f8] sm:$0xff]
  %v733 = vld [vmem:[%s2 + $0x300] sm:$0xff]
  %v734 = vld [vmem:[%s2 + $0x308] sm:$0xff]
  %v735 = vld [vmem:[%s2 + $0x310] sm:$0xff]
  %v736 = vld [vmem:[%s2 + $0x318] sm:$0xff]
  %v737 = vld [vmem:[%s2 + $0x320] sm:$0xff]
  %v738 = vld [vmem:[%s2 + $0x328] sm:$0xff]
  %v739 = vld [vmem:[%s2 + $0x330] sm:$0xff]
  %v740 = vld [vmem:[%s2 + $0x338] sm:$0xff]
  %v741 = vld [vmem:[%s2 + $0x340] sm:$0xff]
  %v742 = vld [vmem:[%s2 + $0x348] sm:$0xff]
  %v743 = vld [vmem:[%s2 + $0x350] sm:$0xff]
  %v744 = vld [vmem:[%s2 + $0x358] sm:$0xff]
  %v745 = vld [vmem:[%s2 + $0x360] sm:$0xff]
  %v746 = vld [vmem:[%s2 + $0x368] sm:$0xff]
  %v747 = vld [vmem:[%s2 + $0x370] sm:$0xff]
  %v748 = vld [vmem:[%s2 + $0x378] sm:$0xff]
  %v749 = vld [vmem:[%s2 + $0x380] sm:$0xff]
  %v750 = vld [vmem:[%s2 + $0x388] sm:$0xff]
  %v751 = vld [vmem:[%s2 + $0x390] sm:$0xff]
  %v752 = vld [vmem:[%s2 + $0x398] sm:$0xff]
  %v753 = vld [vmem:[%s2 + $0x3a0] sm:$0xff]
  %v754 = vld [vmem:[%s2 + $0x3a8] sm:$0xff]
  %v755 = vld [vmem:[%s2 + $0x3b0] sm:$0xff]
  %v756 = vld [vmem:[%s2 + $0x3b8] sm:$0xff]
  %v757 = vld [vmem:[%s2 + $0x3c0] sm:$0xff]
  %v758 = vld [vmem:[%s2 + $0x3c8] sm:$0xff]
  %v759 = vld [vmem:[%s2 + $0x3d0] sm:$0xff]
  %v760 = vld [vmem:[%s2 + $0x3d8] sm:$0xff]
  %v761 = vld [vmem:[%s2 + $0x3e0] sm:$0xff]
  %v762 = vld [vmem:[%s2 + $0x3e8] sm:$0xff]
  %v763 = vld [vmem:[%s2 + $0x3f0] sm:$0xff]
  %v764 = vld [vmem:[%s2 + $0x3f8] sm:$0xff]
  %v765 = vld [vmem:[%s3] sm:$0x1]
  %v767 = vlaneseq
  %v768 = vshrl.u32 %v767, 7
  %v769 = vsub.s32 0, %v768
  %v770 = vrot.slane %v765, %v769
  %v836 = vrot.slane %v581, 7
  %vm837 = vcmask 1041409
  %v838 = vsel %vm837, %v836, %v573
  %v839 = vrot.slane %v589, 6
  %vm840 = vcmask 1042434
  %v841 = vsel %vm840, %v839, %v838
  %v842 = vrot.slane %v597, 5
  %vm843 = vcmask 1043459
  %v844 = vsel %vm843, %v842, %v841
  %v845 = vrot.slane %v605, 4
  %vm846 = vcmask 1044484
  %v847 = vsel %vm846, %v845, %v844
  %v848 = vrot.slane %v613, 3
  %vm849 = vcmask 1045509
  %v850 = vsel %vm849, %v848, %v847
  %v851 = vrot.slane %v621, 2
  %vm852 = vcmask 1046534
  %v853 = vsel %vm852, %v851, %v850
  %v854 = vrot.slane %v629, 1
  %vm855 = vcmask 1047559
  %v856 = vsel %vm855, %v854, %v853
  %v857 = vrot.slane %v582, 7
  %v858 = vsel %vm837, %v857, %v574
  %v859 = vrot.slane %v590, 6
  %v860 = vsel %vm840, %v859, %v858
  %v861 = vrot.slane %v598, 5
  %v862 = vsel %vm843, %v861, %v860
  %v863 = vrot.slane %v606, 4
  %v864 = vsel %vm846, %v863, %v862
  %v865 = vrot.slane %v614, 3
  %v866 = vsel %vm849, %v865, %v864
  %v867 = vrot.slane %v622, 2
  %v868 = vsel %vm852, %v867, %v866
  %v869 = vrot.slane %v630, 1
  %v870 = vsel %vm855, %v869, %v868
  %v871 = vrot.slane %v583, 7
  %v872 = vsel %vm837, %v871, %v575
  %v873 = vrot.slane %v591, 6
  %v874 = vsel %vm840, %v873, %v872
  %v875 = vrot.slane %v599, 5
  %v876 = vsel %vm843, %v875, %v874
  %v877 = vrot.slane %v607, 4
  %v878 = vsel %vm846, %v877, %v876
  %v879 = vrot.slane %v615, 3
  %v880 = vsel %vm849, %v879, %v878
  %v881 = vrot.slane %v623, 2
  %v882 = vsel %vm852, %v881, %v880
  %v883 = vrot.slane %v631, 1
  %v884 = vsel %vm855, %v883, %v882
  %v885 = vrot.slane %v584, 7
  %v886 = vsel %vm837, %v885, %v576
  %v887 = vrot.slane %v592, 6
  %v888 = vsel %vm840, %v887, %v886
  %v889 = vrot.slane %v600, 5
  %v890 = vsel %vm843, %v889, %v888
  %v891 = vrot.slane %v608, 4
  %v892 = vsel %vm846, %v891, %v890
  %v893 = vrot.slane %v616, 3
  %v894 = vsel %vm849, %v893, %v892
  %v895 = vrot.slane %v624, 2
  %v896 = vsel %vm852, %v895, %v894
  %v897 = vrot.slane %v632, 1
  %v898 = vsel %vm855, %v897, %v896
  %v899 = vrot.slane %v585, 7
  %v900 = vsel %vm837, %v899, %v577
  %v901 = vrot.slane %v593, 6
  %v902 = vsel %vm840, %v901, %v900
  %v903 = vrot.slane %v601, 5
  %v904 = vsel %vm843, %v903, %v902
  %v905 = vrot.slane %v609, 4
  %v906 = vsel %vm846, %v905, %v904
  %v907 = vrot.slane %v617, 3
  %v908 = vsel %vm849, %v907, %v906
  %v909 = vrot.slane %v625, 2
  %v910 = vsel %vm852, %v909, %v908
  %v911 = vrot.slane %v633, 1
  %v912 = vsel %vm855, %v911, %v910
  %v913 = vrot.slane %v586, 7
  %v914 = vsel %vm837, %v913, %v578
  %v915 = vrot.slane %v594, 6
  %v916 = vsel %vm840, %v915, %v914
  %v917 = vrot.slane %v602, 5
  %v918 = vsel %vm843, %v917, %v916
  %v919 = vrot.slane %v610, 4
  %v920 = vsel %vm846, %v919, %v918
  %v921 = vrot.slane %v618, 3
  %v922 = vsel %vm849, %v921, %v920
  %v923 = vrot.slane %v626, 2
  %v924 = vsel %vm852, %v923, %v922
  %v925 = vrot.slane %v634, 1
  %v926 = vsel %vm855, %v925, %v924
  %v927 = vrot.slane %v587, 7
  %v928 = vsel %vm837, %v927, %v579
  %v929 = vrot.slane %v595, 6
  %v930 = vsel %vm840, %v929, %v928
  %v931 = vrot.slane %v603, 5
  %v932 = vsel %vm843, %v931, %v930
  %v933 = vrot.slane %v611, 4
  %v934 = vsel %vm846, %v933, %v932
  %v935 = vrot.slane %v619, 3
  %v936 = vsel %vm849, %v935, %v934
  %v937 = vrot.slane %v627, 2
  %v938 = vsel %vm852, %v937, %v936
  %v939 = vrot.slane %v635, 1
  %v940 = vsel %vm855, %v939, %v938
  %v941 = vrot.slane %v588, 7
  %v942 = vsel %vm837, %v941, %v580
  %v943 = vrot.slane %v596, 6
  %v944 = vsel %vm840, %v943, %v942
  %v945 = vrot.slane %v604, 5
  %v946 = vsel %vm843, %v945, %v944
  %v947 = vrot.slane %v612, 4
  %v948 = vsel %vm846, %v947, %v946
  %v949 = vrot.slane %v620, 3
  %v950 = vsel %vm849, %v949, %v948
  %v951 = vrot.slane %v628, 2
  %v952 = vsel %vm852, %v951, %v950
  %v953 = vrot.slane %v636, 1
  %v954 = vsel %vm855, %v953, %v952
  %963 = vmatprep.subr.mxu0 0.0
  %964 = vmatpush1.msra.mxu0 %v637
  %965 = vmatprep.subr.mxu0 0.0
  %966 = vmatpush1.msra.mxu0 %v638
  %967 = vmatprep.subr.mxu0 0.0
  %968 = vmatpush1.msra.mxu0 %v639
  %969 = vmatprep.subr.mxu0 0.0
  %970 = vmatpush1.msra.mxu0 %v640
  %971 = vmatprep.subr.mxu0 0.0
  %972 = vmatpush1.msra.mxu0 %v641
  %973 = vmatprep.subr.mxu0 0.0
  %974 = vmatpush1.msra.mxu0 %v642
  %975 = vmatprep.subr.mxu0 0.0
  %976 = vmatpush1.msra.mxu0 %v643
  %977 = vmatprep.subr.mxu0 0.0
  %978 = vmatpush1.msra.mxu0 %v644
  %979 = vmatprep.subr.mxu0 0.0
  %980 = vmatpush1.msra.mxu0 %v645
  %981 = vmatprep.subr.mxu0 0.0
  %982 = vmatpush1.msra.mxu0 %v646
  %983 = vmatprep.subr.mxu0 0.0
  %984 = vmatpush1.msra.mxu0 %v647
  %985 = vmatprep.subr.mxu0 0.0
  %986 = vmatpush1.msra.mxu0 %v648
  %987 = vmatprep.subr.mxu0 0.0
  %988 = vmatpush1.msra.mxu0 %v649
  %989 = vmatprep.subr.mxu0 0.0
  %990 = vmatpush1.msra.mxu0 %v650
  %991 = vmatprep.subr.mxu0 0.0
  %992 = vmatpush1.msra.mxu0 %v651
  %993 = vmatprep.subr.mxu0 0.0
  %994 = vmatpush1.msra.mxu0 %v652
  %995 = vmatprep.subr.mxu0 0.0
  %996 = vmatpush1.msra.mxu0 %v653
  %997 = vmatprep.subr.mxu0 0.0
  %998 = vmatpush1.msra.mxu0 %v654
  %999 = vmatprep.subr.mxu0 0.0
  %1000 = vmatpush1.msra.mxu0 %v655
  %1001 = vmatprep.subr.mxu0 0.0
  %1002 = vmatpush1.msra.mxu0 %v656
  %1003 = vmatprep.subr.mxu0 0.0
  %1004 = vmatpush1.msra.mxu0 %v657
  %1005 = vmatprep.subr.mxu0 0.0
  %1006 = vmatpush1.msra.mxu0 %v658
  %1007 = vmatprep.subr.mxu0 0.0
  %1008 = vmatpush1.msra.mxu0 %v659
  %1009 = vmatprep.subr.mxu0 0.0
  %1010 = vmatpush1.msra.mxu0 %v660
  %1011 = vmatprep.subr.mxu0 0.0
  %1012 = vmatpush1.msra.mxu0 %v661
  %1013 = vmatprep.subr.mxu0 0.0
  %1014 = vmatpush1.msra.mxu0 %v662
  %1015 = vmatprep.subr.mxu0 0.0
  %1016 = vmatpush1.msra.mxu0 %v663
  %1017 = vmatprep.subr.mxu0 0.0
  %1018 = vmatpush1.msra.mxu0 %v664
  %1019 = vmatprep.subr.mxu0 0.0
  %1020 = vmatpush1.msra.mxu0 %v665
  %1021 = vmatprep.subr.mxu0 0.0
  %1022 = vmatpush1.msra.mxu0 %v666
  %1023 = vmatprep.subr.mxu0 0.0
  %1024 = vmatpush1.msra.mxu0 %v667
  %1025 = vmatprep.subr.mxu0 0.0
  %1026 = vmatpush1.msra.mxu0 %v668
  %1027 = vmatprep.mubr.f32.mxu0 %v870
  %1028 = vmatmul.mubr.f32.gmra.mrb[0].mxu0 %v856
  %v1029 = vpop.f32.mrb[0].mxu0
  %v1030 = vadd.f32 %v770, %v1029
  %v1031 = vpop.f32.mrb[0].mxu0
  %1032 = vdwg.mxu0
  %1033 = vmatprep.subr.mxu0 0.0
  %1034 = vmatpush1.msra.mxu0 %v669
  %1035 = vmatprep.subr.mxu0 0.0
  %1036 = vmatpush1.msra.mxu0 %v670
  %1037 = vmatprep.subr.mxu0 0.0
  %1038 = vmatpush1.msra.mxu0 %v671
  %1039 = vmatprep.subr.mxu0 0.0
  %1040 = vmatpush1.msra.mxu0 %v672
  %1041 = vmatprep.subr.mxu0 0.0
  %1042 = vmatpush1.msra.mxu0 %v673
  %1043 = vmatprep.subr.mxu0 0.0
  %1044 = vmatpush1.msra.mxu0 %v674
  %1045 = vmatprep.subr.mxu0 0.0
  %1046 = vmatpush1.msra.mxu0 %v675
  %1047 = vmatprep.subr.mxu0 0.0
  %1048 = vmatpush1.msra.mxu0 %v676
  %1049 = vmatprep.subr.mxu0 0.0
  %1050 = vmatpush1.msra.mxu0 %v677
  %1051 = vmatprep.subr.mxu0 0.0
  %1052 = vmatpush1.msra.mxu0 %v678
  %1053 = vmatprep.subr.mxu0 0.0
  %1054 = vmatpush1.msra.mxu0 %v679
  %1055 = vmatprep.subr.mxu0 0.0
  %1056 = vmatpush1.msra.mxu0 %v680
  %1057 = vmatprep.subr.mxu0 0.0
  %1058 = vmatpush1.msra.mxu0 %v681
  %1059 = vmatprep.subr.mxu0 0.0
  %1060 = vmatpush1.msra.mxu0 %v682
  %1061 = vmatprep.subr.mxu0 0.0
  %1062 = vmatpush1.msra.mxu0 %v683
  %1063 = vmatprep.subr.mxu0 0.0
  %1064 = vmatpush1.msra.mxu0 %v684
  %1065 = vmatprep.subr.mxu0 0.0
  %1066 = vmatpush1.msra.mxu0 %v685
  %1067 = vmatprep.subr.mxu0 0.0
  %1068 = vmatpush1.msra.mxu0 %v686
  %1069 = vmatprep.subr.mxu0 0.0
  %1070 = vmatpush1.msra.mxu0 %v687
  %1071 = vmatprep.subr.mxu0 0.0
  %1072 = vmatpush1.msra.mxu0 %v688
  %1073 = vmatprep.subr.mxu0 0.0
  %1074 = vmatpush1.msra.mxu0 %v689
  %1075 = vmatprep.subr.mxu0 0.0
  %1076 = vmatpush1.msra.mxu0 %v690
  %1077 = vmatprep.subr.mxu0 0.0
  %1078 = vmatpush1.msra.mxu0 %v691
  %1079 = vmatprep.subr.mxu0 0.0
  %1080 = vmatpush1.msra.mxu0 %v692
  %1081 = vmatprep.subr.mxu0 0.0
  %1082 = vmatpush1.msra.mxu0 %v693
  %1083 = vmatprep.subr.mxu0 0.0
  %1084 = vmatpush1.msra.mxu0 %v694
  %1085 = vmatprep.subr.mxu0 0.0
  %1086 = vmatpush1.msra.mxu0 %v695
  %1087 = vmatprep.subr.mxu0 0.0
  %1088 = vmatpush1.msra.mxu0 %v696
  %1089 = vmatprep.subr.mxu0 0.0
  %1090 = vmatpush1.msra.mxu0 %v697
  %1091 = vmatprep.subr.mxu0 0.0
  %1092 = vmatpush1.msra.mxu0 %v698
  %1093 = vmatprep.subr.mxu0 0.0
  %1094 = vmatpush1.msra.mxu0 %v699
  %1095 = vmatprep.subr.mxu0 0.0
  %1096 = vmatpush1.msra.mxu0 %v700
  %1097 = vmatprep.mubr.f32.mxu0 %v898
  %1098 = vmatmul.mubr.f32.gmra.mrb[0].mxu0 %v884
  %v1099 = vpop.f32.mrb[0].mxu0
  %v1100 = vadd.f32 %v1030, %v1099
  %v1101 = vpop.f32.mrb[0].mxu0
  %1102 = vdwg.mxu0
  %1103 = vmatprep.subr.mxu0 0.0
  %1104 = vmatpush1.msra.mxu0 %v701
  %1105 = vmatprep.subr.mxu0 0.0
  %1106 = vmatpush1.msra.mxu0 %v702
  %1107 = vmatprep.subr.mxu0 0.0
  %1108 = vmatpush1.msra.mxu0 %v703
  %1109 = vmatprep.subr.mxu0 0.0
  %1110 = vmatpush1.msra.mxu0 %v704
  %1111 = vmatprep.subr.mxu0 0.0
  %1112 = vmatpush1.msra.mxu0 %v705
  %1113 = vmatprep.subr.mxu0 0.0
  %1114 = vmatpush1.msra.mxu0 %v706
  %1115 = vmatprep.subr.mxu0 0.0
  %1116 = vmatpush1.msra.mxu0 %v707
  %1117 = vmatprep.subr.mxu0 0.0
  %1118 = vmatpush1.msra.mxu0 %v708
  %1119 = vmatprep.subr.mxu0 0.0
  %1120 = vmatpush1.msra.mxu0 %v709
  %1121 = vmatprep.subr.mxu0 0.0
  %1122 = vmatpush1.msra.mxu0 %v710
  %1123 = vmatprep.subr.mxu0 0.0
  %1124 = vmatpush1.msra.mxu0 %v711
  %1125 = vmatprep.subr.mxu0 0.0
  %1126 = vmatpush1.msra.mxu0 %v712
  %1127 = vmatprep.subr.mxu0 0.0
  %1128 = vmatpush1.msra.mxu0 %v713
  %1129 = vmatprep.subr.mxu0 0.0
  %1130 = vmatpush1.msra.mxu0 %v714
  %1131 = vmatprep.subr.mxu0 0.0
  %1132 = vmatpush1.msra.mxu0 %v715
  %1133 = vmatprep.subr.mxu0 0.0
  %1134 = vmatpush1.msra.mxu0 %v716
  %1135 = vmatprep.subr.mxu0 0.0
  %1136 = vmatpush1.msra.mxu0 %v717
  %1137 = vmatprep.subr.mxu0 0.0
  %1138 = vmatpush1.msra.mxu0 %v718
  %1139 = vmatprep.subr.mxu0 0.0
  %1140 = vmatpush1.msra.mxu0 %v719
  %1141 = vmatprep.subr.mxu0 0.0
  %1142 = vmatpush1.msra.mxu0 %v720
  %1143 = vmatprep.subr.mxu0 0.0
  %1144 = vmatpush1.msra.mxu0 %v721
  %1145 = vmatprep.subr.mxu0 0.0
  %1146 = vmatpush1.msra.mxu0 %v722
  %1147 = vmatprep.subr.mxu0 0.0
  %1148 = vmatpush1.msra.mxu0 %v723
  %1149 = vmatprep.subr.mxu0 0.0
  %1150 = vmatpush1.msra.mxu0 %v724
  %1151 = vmatprep.subr.mxu0 0.0
  %1152 = vmatpush1.msra.mxu0 %v725
  %1153 = vmatprep.subr.mxu0 0.0
  %1154 = vmatpush1.msra.mxu0 %v726
  %1155 = vmatprep.subr.mxu0 0.0
  %1156 = vmatpush1.msra.mxu0 %v727
  %1157 = vmatprep.subr.mxu0 0.0
  %1158 = vmatpush1.msra.mxu0 %v728
  %1159 = vmatprep.subr.mxu0 0.0
  %1160 = vmatpush1.msra.mxu0 %v729
  %1161 = vmatprep.subr.mxu0 0.0
  %1162 = vmatpush1.msra.mxu0 %v730
  %1163 = vmatprep.subr.mxu0 0.0
  %1164 = vmatpush1.msra.mxu0 %v731
  %1165 = vmatprep.subr.mxu0 0.0
  %1166 = vmatpush1.msra.mxu0 %v732
  %1167 = vmatprep.mubr.f32.mxu0 %v926
  %1168 = vmatmul.mubr.f32.gmra.mrb[0].mxu0 %v912
  %v1169 = vpop.f32.mrb[0].mxu0
  %v1170 = vadd.f32 %v1100, %v1169
  %v1171 = vpop.f32.mrb[0].mxu0
  %1172 = vdwg.mxu0
  %1173 = vmatprep.subr.mxu0 0.0
  %1174 = vmatpush1.msra.mxu0 %v733
  %1175 = vmatprep.subr.mxu0 0.0
  %1176 = vmatpush1.msra.mxu0 %v734
  %1177 = vmatprep.subr.mxu0 0.0
  %1178 = vmatpush1.msra.mxu0 %v735
  %1179 = vmatprep.subr.mxu0 0.0
  %1180 = vmatpush1.msra.mxu0 %v736
  %1181 = vmatprep.subr.mxu0 0.0
  %1182 = vmatpush1.msra.mxu0 %v737
  %1183 = vmatprep.subr.mxu0 0.0
  %1184 = vmatpush1.msra.mxu0 %v738
  %1185 = vmatprep.subr.mxu0 0.0
  %1186 = vmatpush1.msra.mxu0 %v739
  %1187 = vmatprep.subr.mxu0 0.0
  %1188 = vmatpush1.msra.mxu0 %v740
  %1189 = vmatprep.subr.mxu0 0.0
  %1190 = vmatpush1.msra.mxu0 %v741
  %1191 = vmatprep.subr.mxu0 0.0
  %1192 = vmatpush1.msra.mxu0 %v742
  %1193 = vmatprep.subr.mxu0 0.0
  %1194 = vmatpush1.msra.mxu0 %v743
  %1195 = vmatprep.subr.mxu0 0.0
  %1196 = vmatpush1.msra.mxu0 %v744
  %1197 = vmatprep.subr.mxu0 0.0
  %1198 = vmatpush1.msra.mxu0 %v745
  %1199 = vmatprep.subr.mxu0 0.0
  %1200 = vmatpush1.msra.mxu0 %v746
  %1201 = vmatprep.subr.mxu0 0.0
  %1202 = vmatpush1.msra.mxu0 %v747
  %1203 = vmatprep.subr.mxu0 0.0
  %1204 = vmatpush1.msra.mxu0 %v748
  %1205 = vmatprep.subr.mxu0 0.0
  %1206 = vmatpush1.msra.mxu0 %v749
  %1207 = vmatprep.subr.mxu0 0.0
  %1208 = vmatpush1.msra.mxu0 %v750
  %1209 = vmatprep.subr.mxu0 0.0
  %1210 = vmatpush1.msra.mxu0 %v751
  %1211 = vmatprep.subr.mxu0 0.0
  %1212 = vmatpush1.msra.mxu0 %v752
  %1213 = vmatprep.subr.mxu0 0.0
  %1214 = vmatpush1.msra.mxu0 %v753
  %1215 = vmatprep.subr.mxu0 0.0
  %1216 = vmatpush1.msra.mxu0 %v754
  %1217 = vmatprep.subr.mxu0 0.0
  %1218 = vmatpush1.msra.mxu0 %v755
  %1219 = vmatprep.subr.mxu0 0.0
  %1220 = vmatpush1.msra.mxu0 %v756
  %1221 = vmatprep.subr.mxu0 0.0
  %1222 = vmatpush1.msra.mxu0 %v757
  %1223 = vmatprep.subr.mxu0 0.0
  %1224 = vmatpush1.msra.mxu0 %v758
  %1225 = vmatprep.subr.mxu0 0.0
  %1226 = vmatpush1.msra.mxu0 %v759
  %1227 = vmatprep.subr.mxu0 0.0
  %1228 = vmatpush1.msra.mxu0 %v760
  %1229 = vmatprep.subr.mxu0 0.0
  %1230 = vmatpush1.msra.mxu0 %v761
  %1231 = vmatprep.subr.mxu0 0.0
  %1232 = vmatpush1.msra.mxu0 %v762
  %1233 = vmatprep.subr.mxu0 0.0
  %1234 = vmatpush1.msra.mxu0 %v763
  %1235 = vmatprep.subr.mxu0 0.0
  %1236 = vmatpush1.msra.mxu0 %v764
  %1237 = vmatprep.mubr.f32.mxu0 %v954
  %1238 = vmatmul.mubr.f32.gmra.mrb[0].mxu0 %v940
  %v1239 = vpop.f32.mrb[0].mxu0
  %v1240 = vadd.f32 %v1170, %v1239
  %v1241 = vpop.f32.mrb[0].mxu0
  %1242 = vdwg.mxu0
  %1243 = vst [vmem:[%s4] sm:$0xff] %v1240
  // Predicated region
  $region18: #{fmow_forward.3} parent=0 // pred_check
    _
  $region19: #{fmow_forward.3} parent=0 // pred_check_branch
    %1245 = sbr.rel (0) target = $region21
  $region20: #{fmow_forward.3} parent=0 // pred_region
    _
  $region21: #{fmow_forward.3} parent=0 // pred_fallthru
    _
  // Predicated region
  $region22: #{fmow_forward.3} parent=0 // pred_check
    _
  $region23: #{fmow_forward.3} parent=0 // pred_check_branch
    %1247 = sbr.rel (0) target = $region25
  $region24: #{fmow_forward.3} parent=0 // pred_region
    _
  $region25: #{fmow_forward.3} parent=0 // pred_fallthru
    _

</llo_original>
